<compile_context>
chip_gen: v7x
topology: tpu7x:2x2x1
jax: 0.10.0
libtpu: 0.0.40
codegen_flags: <defaults>
</compile_context>

<pallas_src>
import numpy as np
import jax
import jax.numpy as jnp
from jax.experimental import pallas as pl
from jax.experimental.pallas import tpu as pltpu

# ---- hyper-parameters (small demo sizes; real module: L=1000, H1=512, H2=256,
#      n_actions=1000 -- identical architecture) ----
B = 2              # batch
L = 32             # input length             (module: 1000)
C1, K1 = 64, 4     # conv1
C2, K2 = 128, 4    # conv2
C3, K3 = 64, 2     # conv3
H1 = 128           # lstm1 hidden             (module: 512)
H2 = 64            # lstm2 hidden             (module: 256)
N_ACTIONS = 128    # module: 1000 (at real size pad fc output to 1024 for lane-dense stores)
BN_EPS = 1e-5

L3 = L - (K1 - 1) - (K2 - 1) - (K3 - 1)      # conv-stack output length
F = C3 * L3                                   # flattened feature size

# Reduction / output tiles for the big lstm1 input matmul (see header for sizing rationale).
TK = 2048                                     # reduction tile over F (sweepable)
TN = min(1024, 4 * H1)                        # output tile over 4*H1 (>=2 blocks at real size)
assert (4 * H1) % TN == 0
F_PAD = ((F + TK - 1) // TK) * TK             # zero-padded, lane-dense reduction length

_VMEM_LIMIT = 32 * 1024 * 1024                # ample for <=10 MiB actual use, valid on all gens


# ---------------- shared math helpers (used by kernels and the pure-JAX reference) ------

def _lstm_gates(g, H):
    # PyTorch gate order along 4H: i, f, g, o.  c0 = 0 -> the forget-gate term vanishes.
    i = jax.nn.sigmoid(g[:, 0:H])
    c_tilde = jnp.tanh(g[:, 2 * H:3 * H])
    o = jax.nn.sigmoid(g[:, 3 * H:4 * H])
    return o * jnp.tanh(i * c_tilde)


# ---------------- kernel 1: fused conv1/2/3 + BatchNorm1d (train mode) + ReLU ------------

def _conv_bn_relu_block(x, w_ref, b_ref, ga_ref, be_ref):
    """One Conv1d (stride 1, valid) + train-mode BN + ReLU on a VMEM-resident activation."""
    K, Cin, Cout = w_ref.shape
    Bk, Lin, _ = x.shape
    Lout = Lin - K + 1
    acc = jnp.zeros((Bk, Lout, Cout), jnp.float32)
    for k in range(K):                               # statically unrolled taps
        xs = x[:, k:k + Lout, :]                     # (B, Lout, Cin)
        wk = w_ref[k]                                # (Cin, Cout)
        if Cin == 1:
            # degenerate contraction -> lane-broadcast multiply on the VPU
            acc = acc + xs * wk.reshape(1, 1, Cout)
        else:
            acc = acc + jnp.einsum('blc,cd->bld', xs, wk,
                                   preferred_element_type=jnp.float32)
    acc = acc + b_ref[...]                           # conv bias (1, 1, Cout)
    # BatchNorm1d, training mode: batch stats over (B, L), biased variance.
    mean = jnp.mean(acc, axis=(0, 1), keepdims=True)
    var = jnp.mean(jnp.square(acc - mean), axis=(0, 1), keepdims=True)
    y = (acc - mean) * jax.lax.rsqrt(var + BN_EPS) * ga_ref[...] + be_ref[...]
    return jnp.maximum(y, 0.0)                       # ReLU


def _fused_conv_kernel(x_ref,
                       w1_ref, b1_ref, ga1_ref, be1_ref,
                       w2_ref, b2_ref, ga2_ref, be2_ref,
                       w3_ref, b3_ref, ga3_ref, be3_ref,
                       o_ref):
    h = _conv_bn_relu_block(x_ref[...], w1_ref, b1_ref, ga1_ref, be1_ref)
    h = _conv_bn_relu_block(h, w2_ref, b2_ref, ga2_ref, be2_ref)
    h = _conv_bn_relu_block(h, w3_ref, b3_ref, ga3_ref, be3_ref)
    o_ref[...] = h                                   # (B, L3, C3), channels-last


def fused_conv_stack(xc, p):
    Bx, Lin, _ = xc.shape
    L3o = Lin - (K1 - 1) - (K2 - 1) - (K3 - 1)
    vmem = pl.BlockSpec(memory_space=pltpu.MemorySpace.VMEM)
    return pl.pallas_call(
        _fused_conv_kernel,
        out_shape=jax.ShapeDtypeStruct((Bx, L3o, C3), jnp.float32),
        in_specs=[vmem] * 13,
        out_specs=vmem,
        compiler_params=pltpu.CompilerParams(vmem_limit_bytes=_VMEM_LIMIT),
    )(xc, p['w1'], p['b1'], p['g1'], p['be1'],
      p['w2'], p['b2'], p['g2'], p['be2'],
      p['w3'], p['b3'], p['g3'], p['be3'])


# ---------------- kernel 2: gridded lstm1 input matmul (weight streaming) ----------------

def _g1_matmul_kernel(x_ref, w_ref, b_ref, o_ref, acc_ref):
    k = pl.program_id(1)

    @pl.when(k == 0)
    def _():
        acc_ref[...] = jnp.zeros_like(acc_ref)

    acc_ref[...] += jnp.dot(x_ref[...], w_ref[...],
                            preferred_element_type=jnp.float32)

    @pl.when(k == pl.num_programs(1) - 1)
    def _():
        o_ref[...] = acc_ref[...] + b_ref[...]


def g1_matmul(flat_p, wih1, bih1):
    Bx, Fp = flat_p.shape
    _, N4 = wih1.shape
    assert Fp % TK == 0 and N4 % TN == 0
    grid = (N4 // TN, Fp // TK)                       # (N parallel, K reduction innermost)
    return pl.pallas_call(
        _g1_matmul_kernel,
        out_shape=jax.ShapeDtypeStruct((Bx, N4), jnp.float32),
        grid_spec=pltpu.PrefetchScalarGridSpec(
            num_scalar_prefetch=0,
            grid=grid,
            in_specs=[
                pl.BlockSpec((Bx, TK), lambda n, k: (0, k)),   # activations (bf16, tiny)
                pl.BlockSpec((TK, TN), lambda n, k: (k, n)),   # streamed bf16 weight tile
                pl.BlockSpec((1, TN), lambda n, k: (0, n)),    # combined LSTM bias (f32)
            ],
            out_specs=pl.BlockSpec((Bx, TN), lambda n, k: (0, n)),
            scratch_shapes=[pltpu.VMEM((Bx, TN), jnp.float32)],
        ),
        compiler_params=pltpu.CompilerParams(
            dimension_semantics=("parallel", "arbitrary"),
            vmem_limit_bytes=_VMEM_LIMIT,
        ),
    )(flat_p, wih1, bih1)


# ---------------- kernel 3: LSTM nonlinearities + lstm2 + fc -----------------------------

def _lstm_tail_kernel(g1_ref, w2_ref, b2_ref, wfc_ref, bfc_ref, o_ref):
    h1 = _lstm_gates(g1_ref[...], H1)                             # (B, H1) f32
    g2 = jnp.dot(h1.astype(jnp.bfloat16), w2_ref[...],
                 preferred_element_type=jnp.float32) + b2_ref[...]
    h2 = _lstm_gates(g2, H2)                                      # (B, H2) f32
    o_ref[...] = jnp.dot(h2.astype(jnp.bfloat16), wfc_ref[...],
                         preferred_element_type=jnp.float32) + bfc_ref[...]


def lstm_tail(gates1, wih2, bih2, wfc, bfc):
    vmem = pl.BlockSpec(memory_space=pltpu.MemorySpace.VMEM)
    return pl.pallas_call(
        _lstm_tail_kernel,
        out_shape=jax.ShapeDtypeStruct((gates1.shape[0], N_ACTIONS), jnp.float32),
        in_specs=[vmem] * 5,
        out_specs=vmem,
        compiler_params=pltpu.CompilerParams(vmem_limit_bytes=_VMEM_LIMIT),
    )(gates1, wih2, bih2, wfc, bfc)


# ---------------- parameters & forward ---------------------------------------------------

def init_params(key):
    ks = jax.random.split(key, 14)

    def u(k, shape, fan_in):
        bound = 1.0 / np.sqrt(fan_in)
        return jax.random.uniform(k, shape, jnp.float32, -bound, bound)

    # lstm1 input weight: rows in channels-last-flatten order (l*C3 + c), zero-padded to
    # F_PAD so every reduction tile of the gridded matmul is lane dense.  Stored bf16.
    wih1 = u(ks[6], (F, 4 * H1), H1)
    wih1 = jnp.pad(wih1, ((0, F_PAD - F), (0, 0))).astype(jnp.bfloat16)

    return dict(
        w1=u(ks[0], (K1, 1, C1), 1 * K1),  b1=u(ks[1], (1, 1, C1), 1 * K1),
        g1=jnp.ones((1, 1, C1), jnp.float32), be1=jnp.zeros((1, 1, C1), jnp.float32),
        w2=u(ks[2], (K2, C1, C2), C1 * K2), b2=u(ks[3], (1, 1, C2), C1 * K2),
        g2=jnp.ones((1, 1, C2), jnp.float32), be2=jnp.zeros((1, 1, C2), jnp.float32),
        w3=u(ks[4], (K3, C2, C3), C2 * K3), b3=u(ks[5], (1, 1, C3), C2 * K3),
        g3=jnp.ones((1, 1, C3), jnp.float32), be3=jnp.zeros((1, 1, C3), jnp.float32),
        wih1=wih1,
        bih1=u(ks[7], (1, 4 * H1), H1) + u(ks[8], (1, 4 * H1), H1),     # b_ih + b_hh
        wih2=u(ks[9], (H1, 4 * H2), H2).astype(jnp.bfloat16),
        bih2=u(ks[10], (1, 4 * H2), H2) + u(ks[11], (1, 4 * H2), H2),
        wfc=u(ks[12], (H2, N_ACTIONS), H2).astype(jnp.bfloat16),
        bfc=u(ks[13], (1, N_ACTIONS), H2),
    )


def dqn_forward(x, p):
    Bx, Lx = x.shape
    # unsqueeze(1) in NCW == add the channel dim.  Kept on the XLA side: the (B, L, 1)
    # layout only affects conv1's input (~1 MiB of padded VMEM even at L=1000).
    xc = x[:, :, None]
    h = fused_conv_stack(xc, p)                                   # (B, L3, C3)
    Bh, L3o, Ch = h.shape
    # channels-last flatten: a plain reshape (no transpose); wih1 rows are stored in the
    # matching (l*C3 + c) order, so this is equivalent to PyTorch's x.view(B, 1, -1).
    # Pad + bf16-cast stay in XLA: the (B, F) intermediate is <0.5 MiB at real size, so
    # the round trip is negligible next to the weight streaming it feeds.
    flat = h.reshape(Bh, L3o * Ch)
    Fp = p['wih1'].shape[0]
    flat_p = jnp.pad(flat, ((0, 0), (0, Fp - L3o * Ch))).astype(jnp.bfloat16)
    gates1 = g1_matmul(flat_p, p['wih1'], p['bih1'])              # (B, 4*H1) f32
    return lstm_tail(gates1, p['wih2'], p['bih2'], p['wfc'], p['bfc'])


# ---------------- pure-JAX reference (same math, no Pallas) ------------------------------

def _conv_bn_relu_ref(x, w, b, gamma, beta):
    K, Cin, Cout = w.shape
    Lout = x.shape[1] - K + 1
    acc = jnp.zeros((x.shape[0], Lout, Cout), jnp.float32)
    for k in range(K):
        xs = x[:, k:k + Lout, :]
        if Cin == 1:
            acc = acc + xs * w[k].reshape(1, 1, Cout)
        else:
            acc = acc + jnp.einsum('blc,cd->bld', xs, w[k],
                                   preferred_element_type=jnp.float32,
                                   precision=jax.lax.Precision.HIGHEST)
    acc = acc + b
    mean = jnp.mean(acc, axis=(0, 1), keepdims=True)
    var = jnp.mean(jnp.square(acc - mean), axis=(0, 1), keepdims=True)
    y = (acc - mean) * jax.lax.rsqrt(var + BN_EPS) * gamma + beta
    return jnp.maximum(y, 0.0)


def dqn_forward_ref(x, p):
    xc = x[:, :, None]
    h = _conv_bn_relu_ref(xc, p['w1'], p['b1'], p['g1'], p['be1'])
    h = _conv_bn_relu_ref(h, p['w2'], p['b2'], p['g2'], p['be2'])
    h = _conv_bn_relu_ref(h, p['w3'], p['b3'], p['g3'], p['be3'])
    Bh, L3o, Ch = h.shape
    flat = h.reshape(Bh, L3o * Ch)
    Fp = p['wih1'].shape[0]
    flat_p = jnp.pad(flat, ((0, 0), (0, Fp - L3o * Ch)))
    # Mirror the kernel's bf16 quantisation of activations/weights exactly (bf16 products
    # are exact in f32, so only accumulation order / EUP rounding differ).
    flat_b = flat_p.astype(jnp.bfloat16).astype(jnp.float32)
    gg1 = flat_b @ p['wih1'].astype(jnp.float32) + p['bih1']
    hh1 = _lstm_gates(gg1, H1)
    gg2 = hh1.astype(jnp.bfloat16).astype(jnp.float32) @ p['wih2'].astype(jnp.float32) + p['bih2']
    hh2 = _lstm_gates(gg2, H2)
    return hh2.astype(jnp.bfloat16).astype(jnp.float32) @ p['wfc'].astype(jnp.float32) + p['bfc']


if __name__ == "__main__":
    key = jax.random.PRNGKey(0)
    kx, kp = jax.random.split(key)
    x = jax.random.normal(kx, (B, L), jnp.float32)
    params = init_params(kp)

    q = jax.block_until_ready(dqn_forward(x, params))
    assert q.shape == (B, N_ACTIONS) and q.dtype == jnp.float32

    q_ref = jax.block_until_ready(dqn_forward_ref(x, params))
    # Residual slack covers MXU pass-count / EUP approximation differences between the
    # Mosaic and XLA lowerings.
    assert np.allclose(np.asarray(q), np.asarray(q_ref), rtol=2e-3, atol=2e-3), \
        "Pallas output does not match pure-JAX reference"

    print("KERNEL_OK")
</pallas_src>

<mosaic_0001>
module attributes {stable_mosaic.version = 11 : i64} {
  func.func @_fused_conv_kernel(%arg0: memref<2x32x1xf32, #tpu.memory_space<vmem>>, %arg1: memref<4x1x64xf32, #tpu.memory_space<vmem>>, %arg2: memref<1x1x64xf32, #tpu.memory_space<vmem>>, %arg3: memref<1x1x64xf32, #tpu.memory_space<vmem>>, %arg4: memref<1x1x64xf32, #tpu.memory_space<vmem>>, %arg5: memref<4x64x128xf32, #tpu.memory_space<vmem>>, %arg6: memref<1x1x128xf32, #tpu.memory_space<vmem>>, %arg7: memref<1x1x128xf32, #tpu.memory_space<vmem>>, %arg8: memref<1x1x128xf32, #tpu.memory_space<vmem>>, %arg9: memref<2x128x64xf32, #tpu.memory_space<vmem>>, %arg10: memref<1x1x64xf32, #tpu.memory_space<vmem>>, %arg11: memref<1x1x64xf32, #tpu.memory_space<vmem>>, %arg12: memref<1x1x64xf32, #tpu.memory_space<vmem>>, %arg13: memref<2x25x64xf32, #tpu.memory_space<vmem>>) attributes {dimension_semantics = [], scalar_prefetch = 0 : i64, scratch_operands = 0 : i64, tpu.core_type = #tpu.core_type<tc>} {
    %c0 = arith.constant 0 : index
    %c0_0 = arith.constant 0 : index
    %c0_1 = arith.constant 0 : index
    %0 = vector.load %arg0[%c0, %c0_0, %c0_1] : memref<2x32x1xf32, #tpu.memory_space<vmem>>, vector<2x32x1xf32>
    %cst = arith.constant 0.000000e+00 : f32
    %1 = vector.broadcast %cst : f32 to vector<2x29x64xf32>
    %2 = vector.extract_strided_slice %0 {offsets = [0, 0, 0], sizes = [2, 29, 1], strides = [1, 1, 1]} : vector<2x32x1xf32> to vector<2x29x1xf32>
    %c0_2 = arith.constant 0 : index
    %c0_3 = arith.constant 0 : index
    %c0_4 = arith.constant 0 : index
    %3 = vector.load %arg1[%c0_2, %c0_3, %c0_4] : memref<4x1x64xf32, #tpu.memory_space<vmem>>, vector<1x1x64xf32>
    %4 = vector.shape_cast %3 : vector<1x1x64xf32> to vector<1x64xf32>
    %5 = vector.shape_cast %4 : vector<1x64xf32> to vector<1x1x64xf32>
    %6 = vector.broadcast %2 : vector<2x29x1xf32> to vector<2x29x64xf32>
    %7 = vector.broadcast %5 : vector<1x1x64xf32> to vector<2x29x64xf32>
    %8 = arith.mulf %6, %7 : vector<2x29x64xf32>
    %9 = arith.addf %1, %8 : vector<2x29x64xf32>
    %10 = vector.extract_strided_slice %0 {offsets = [0, 1, 0], sizes = [2, 29, 1], strides = [1, 1, 1]} : vector<2x32x1xf32> to vector<2x29x1xf32>
    %c1 = arith.constant 1 : index
    %c0_5 = arith.constant 0 : index
    %c0_6 = arith.constant 0 : index
    %11 = vector.load %arg1[%c1, %c0_5, %c0_6] : memref<4x1x64xf32, #tpu.memory_space<vmem>>, vector<1x1x64xf32>
    %12 = vector.shape_cast %11 : vector<1x1x64xf32> to vector<1x64xf32>
    %13 = vector.shape_cast %12 : vector<1x64xf32> to vector<1x1x64xf32>
    %14 = vector.broadcast %10 : vector<2x29x1xf32> to vector<2x29x64xf32>
    %15 = vector.broadcast %13 : vector<1x1x64xf32> to vector<2x29x64xf32>
    %16 = arith.mulf %14, %15 : vector<2x29x64xf32>
    %17 = arith.addf %9, %16 : vector<2x29x64xf32>
    %18 = vector.extract_strided_slice %0 {offsets = [0, 2, 0], sizes = [2, 29, 1], strides = [1, 1, 1]} : vector<2x32x1xf32> to vector<2x29x1xf32>
    %c2 = arith.constant 2 : index
    %c0_7 = arith.constant 0 : index
    %c0_8 = arith.constant 0 : index
    %19 = vector.load %arg1[%c2, %c0_7, %c0_8] : memref<4x1x64xf32, #tpu.memory_space<vmem>>, vector<1x1x64xf32>
    %20 = vector.shape_cast %19 : vector<1x1x64xf32> to vector<1x64xf32>
    %21 = vector.shape_cast %20 : vector<1x64xf32> to vector<1x1x64xf32>
    %22 = vector.broadcast %18 : vector<2x29x1xf32> to vector<2x29x64xf32>
    %23 = vector.broadcast %21 : vector<1x1x64xf32> to vector<2x29x64xf32>
    %24 = arith.mulf %22, %23 : vector<2x29x64xf32>
    %25 = arith.addf %17, %24 : vector<2x29x64xf32>
    %26 = vector.extract_strided_slice %0 {offsets = [0, 3, 0], sizes = [2, 29, 1], strides = [1, 1, 1]} : vector<2x32x1xf32> to vector<2x29x1xf32>
    %c3 = arith.constant 3 : index
    %c0_9 = arith.constant 0 : index
    %c0_10 = arith.constant 0 : index
    %27 = vector.load %arg1[%c3, %c0_9, %c0_10] : memref<4x1x64xf32, #tpu.memory_space<vmem>>, vector<1x1x64xf32>
    %28 = vector.shape_cast %27 : vector<1x1x64xf32> to vector<1x64xf32>
    %29 = vector.shape_cast %28 : vector<1x64xf32> to vector<1x1x64xf32>
    %30 = vector.broadcast %26 : vector<2x29x1xf32> to vector<2x29x64xf32>
    %31 = vector.broadcast %29 : vector<1x1x64xf32> to vector<2x29x64xf32>
    %32 = arith.mulf %30, %31 : vector<2x29x64xf32>
    %33 = arith.addf %25, %32 : vector<2x29x64xf32>
    %c0_11 = arith.constant 0 : index
    %c0_12 = arith.constant 0 : index
    %c0_13 = arith.constant 0 : index
    %34 = vector.load %arg2[%c0_11, %c0_12, %c0_13] : memref<1x1x64xf32, #tpu.memory_space<vmem>>, vector<1x1x64xf32>
    %35 = vector.broadcast %34 : vector<1x1x64xf32> to vector<2x29x64xf32>
    %36 = arith.addf %33, %35 : vector<2x29x64xf32>
    %cst_14 = arith.constant dense<0.000000e+00> : vector<64xf32>
    %37 = vector.multi_reduction <add>, %36, %cst_14 [0, 1] : vector<2x29x64xf32> to vector<64xf32>
    %38 = vector.shape_cast %37 : vector<64xf32> to vector<1x1x64xf32>
    %cst_15 = arith.constant 5.800000e+01 : f32
    %39 = vector.broadcast %cst_15 : f32 to vector<1x1x64xf32>
    %40 = arith.divf %38, %39 : vector<1x1x64xf32>
    %41 = vector.broadcast %40 : vector<1x1x64xf32> to vector<2x29x64xf32>
    %42 = arith.subf %36, %41 : vector<2x29x64xf32>
    %43 = arith.mulf %42, %42 : vector<2x29x64xf32>
    %cst_16 = arith.constant dense<0.000000e+00> : vector<64xf32>
    %44 = vector.multi_reduction <add>, %43, %cst_16 [0, 1] : vector<2x29x64xf32> to vector<64xf32>
    %45 = vector.shape_cast %44 : vector<64xf32> to vector<1x1x64xf32>
    %cst_17 = arith.constant 5.800000e+01 : f32
    %46 = vector.broadcast %cst_17 : f32 to vector<1x1x64xf32>
    %47 = arith.divf %45, %46 : vector<1x1x64xf32>
    %48 = vector.broadcast %40 : vector<1x1x64xf32> to vector<2x29x64xf32>
    %49 = arith.subf %36, %48 : vector<2x29x64xf32>
    %cst_18 = arith.constant 9.99999974E-6 : f32
    %50 = vector.broadcast %cst_18 : f32 to vector<1x1x64xf32>
    %51 = arith.addf %47, %50 : vector<1x1x64xf32>
    %52 = math.rsqrt %51 : vector<1x1x64xf32>
    %53 = vector.broadcast %52 : vector<1x1x64xf32> to vector<2x29x64xf32>
    %54 = arith.mulf %49, %53 : vector<2x29x64xf32>
    %c0_19 = arith.constant 0 : index
    %c0_20 = arith.constant 0 : index
    %c0_21 = arith.constant 0 : index
    %55 = vector.load %arg3[%c0_19, %c0_20, %c0_21] : memref<1x1x64xf32, #tpu.memory_space<vmem>>, vector<1x1x64xf32>
    %56 = vector.broadcast %55 : vector<1x1x64xf32> to vector<2x29x64xf32>
    %57 = arith.mulf %54, %56 : vector<2x29x64xf32>
    %c0_22 = arith.constant 0 : index
    %c0_23 = arith.constant 0 : index
    %c0_24 = arith.constant 0 : index
    %58 = vector.load %arg4[%c0_22, %c0_23, %c0_24] : memref<1x1x64xf32, #tpu.memory_space<vmem>>, vector<1x1x64xf32>
    %59 = vector.broadcast %58 : vector<1x1x64xf32> to vector<2x29x64xf32>
    %60 = arith.addf %57, %59 : vector<2x29x64xf32>
    %cst_25 = arith.constant 0.000000e+00 : f32
    %61 = vector.broadcast %cst_25 : f32 to vector<2x29x64xf32>
    %62 = arith.maximumf %60, %61 : vector<2x29x64xf32>
    %cst_26 = arith.constant 0.000000e+00 : f32
    %63 = vector.broadcast %cst_26 : f32 to vector<2x26x128xf32>
    %64 = vector.extract_strided_slice %62 {offsets = [0, 0, 0], sizes = [2, 26, 64], strides = [1, 1, 1]} : vector<2x29x64xf32> to vector<2x26x64xf32>
    %c0_27 = arith.constant 0 : index
    %c0_28 = arith.constant 0 : index
    %c0_29 = arith.constant 0 : index
    %65 = vector.load %arg5[%c0_27, %c0_28, %c0_29] : memref<4x64x128xf32, #tpu.memory_space<vmem>>, vector<1x64x128xf32>
    %66 = vector.shape_cast %65 : vector<1x64x128xf32> to vector<64x128xf32>
    "tpu.trace_start"() <{level = 10 : i32, message = "blc,cd->bld"}> : () -> ()
    %cst_30 = arith.constant dense<0.000000e+00> : vector<2x26x128xf32>
    %67 = tpu.matmul %64, %66, %cst_30 {dimension_numbers = #tpu.dot_dimension_numbers<[2], [0], [0, 1], [1], [0, 0, 0, 1, 1, 1], [], []>} : vector<2x26x64xf32>, vector<64x128xf32>, vector<2x26x128xf32> -> vector<2x26x128xf32>
    "tpu.trace_stop"() : () -> ()
    %68 = arith.addf %63, %67 : vector<2x26x128xf32>
    %69 = vector.extract_strided_slice %62 {offsets = [0, 1, 0], sizes = [2, 26, 64], strides = [1, 1, 1]} : vector<2x29x64xf32> to vector<2x26x64xf32>
    %c1_31 = arith.constant 1 : index
    %c0_32 = arith.constant 0 : index
    %c0_33 = arith.constant 0 : index
    %70 = vector.load %arg5[%c1_31, %c0_32, %c0_33] : memref<4x64x128xf32, #tpu.memory_space<vmem>>, vector<1x64x128xf32>
    %71 = vector.shape_cast %70 : vector<1x64x128xf32> to vector<64x128xf32>
    "tpu.trace_start"() <{level = 10 : i32, message = "blc,cd->bld"}> : () -> ()
    %cst_34 = arith.constant dense<0.000000e+00> : vector<2x26x128xf32>
    %72 = tpu.matmul %69, %71, %cst_34 {dimension_numbers = #tpu.dot_dimension_numbers<[2], [0], [0, 1], [1], [0, 0, 0, 1, 1, 1], [], []>} : vector<2x26x64xf32>, vector<64x128xf32>, vector<2x26x128xf32> -> vector<2x26x128xf32>
    "tpu.trace_stop"() : () -> ()
    %73 = arith.addf %68, %72 : vector<2x26x128xf32>
    %74 = vector.extract_strided_slice %62 {offsets = [0, 2, 0], sizes = [2, 26, 64], strides = [1, 1, 1]} : vector<2x29x64xf32> to vector<2x26x64xf32>
    %c2_35 = arith.constant 2 : index
    %c0_36 = arith.constant 0 : index
    %c0_37 = arith.constant 0 : index
    %75 = vector.load %arg5[%c2_35, %c0_36, %c0_37] : memref<4x64x128xf32, #tpu.memory_space<vmem>>, vector<1x64x128xf32>
    %76 = vector.shape_cast %75 : vector<1x64x128xf32> to vector<64x128xf32>
    "tpu.trace_start"() <{level = 10 : i32, message = "blc,cd->bld"}> : () -> ()
    %cst_38 = arith.constant dense<0.000000e+00> : vector<2x26x128xf32>
    %77 = tpu.matmul %74, %76, %cst_38 {dimension_numbers = #tpu.dot_dimension_numbers<[2], [0], [0, 1], [1], [0, 0, 0, 1, 1, 1], [], []>} : vector<2x26x64xf32>, vector<64x128xf32>, vector<2x26x128xf32> -> vector<2x26x128xf32>
    "tpu.trace_stop"() : () -> ()
    %78 = arith.addf %73, %77 : vector<2x26x128xf32>
    %79 = vector.extract_strided_slice %62 {offsets = [0, 3, 0], sizes = [2, 26, 64], strides = [1, 1, 1]} : vector<2x29x64xf32> to vector<2x26x64xf32>
    %c3_39 = arith.constant 3 : index
    %c0_40 = arith.constant 0 : index
    %c0_41 = arith.constant 0 : index
    %80 = vector.load %arg5[%c3_39, %c0_40, %c0_41] : memref<4x64x128xf32, #tpu.memory_space<vmem>>, vector<1x64x128xf32>
    %81 = vector.shape_cast %80 : vector<1x64x128xf32> to vector<64x128xf32>
    "tpu.trace_start"() <{level = 10 : i32, message = "blc,cd->bld"}> : () -> ()
    %cst_42 = arith.constant dense<0.000000e+00> : vector<2x26x128xf32>
    %82 = tpu.matmul %79, %81, %cst_42 {dimension_numbers = #tpu.dot_dimension_numbers<[2], [0], [0, 1], [1], [0, 0, 0, 1, 1, 1], [], []>} : vector<2x26x64xf32>, vector<64x128xf32>, vector<2x26x128xf32> -> vector<2x26x128xf32>
    "tpu.trace_stop"() : () -> ()
    %83 = arith.addf %78, %82 : vector<2x26x128xf32>
    %c0_43 = arith.constant 0 : index
    %c0_44 = arith.constant 0 : index
    %c0_45 = arith.constant 0 : index
    %84 = vector.load %arg6[%c0_43, %c0_44, %c0_45] : memref<1x1x128xf32, #tpu.memory_space<vmem>>, vector<1x1x128xf32>
    %85 = vector.broadcast %84 : vector<1x1x128xf32> to vector<2x26x128xf32>
    %86 = arith.addf %83, %85 : vector<2x26x128xf32>
    %cst_46 = arith.constant dense<0.000000e+00> : vector<128xf32>
    %87 = vector.multi_reduction <add>, %86, %cst_46 [0, 1] : vector<2x26x128xf32> to vector<128xf32>
    %88 = vector.shape_cast %87 : vector<128xf32> to vector<1x1x128xf32>
    %cst_47 = arith.constant 5.200000e+01 : f32
    %89 = vector.broadcast %cst_47 : f32 to vector<1x1x128xf32>
    %90 = arith.divf %88, %89 : vector<1x1x128xf32>
    %91 = vector.broadcast %90 : vector<1x1x128xf32> to vector<2x26x128xf32>
    %92 = arith.subf %86, %91 : vector<2x26x128xf32>
    %93 = arith.mulf %92, %92 : vector<2x26x128xf32>
    %cst_48 = arith.constant dense<0.000000e+00> : vector<128xf32>
    %94 = vector.multi_reduction <add>, %93, %cst_48 [0, 1] : vector<2x26x128xf32> to vector<128xf32>
    %95 = vector.shape_cast %94 : vector<128xf32> to vector<1x1x128xf32>
    %cst_49 = arith.constant 5.200000e+01 : f32
    %96 = vector.broadcast %cst_49 : f32 to vector<1x1x128xf32>
    %97 = arith.divf %95, %96 : vector<1x1x128xf32>
    %98 = vector.broadcast %90 : vector<1x1x128xf32> to vector<2x26x128xf32>
    %99 = arith.subf %86, %98 : vector<2x26x128xf32>
    %cst_50 = arith.constant 9.99999974E-6 : f32
    %100 = vector.broadcast %cst_50 : f32 to vector<1x1x128xf32>
    %101 = arith.addf %97, %100 : vector<1x1x128xf32>
    %102 = math.rsqrt %101 : vector<1x1x128xf32>
    %103 = vector.broadcast %102 : vector<1x1x128xf32> to vector<2x26x128xf32>
    %104 = arith.mulf %99, %103 : vector<2x26x128xf32>
    %c0_51 = arith.constant 0 : index
    %c0_52 = arith.constant 0 : index
    %c0_53 = arith.constant 0 : index
    %105 = vector.load %arg7[%c0_51, %c0_52, %c0_53] : memref<1x1x128xf32, #tpu.memory_space<vmem>>, vector<1x1x128xf32>
    %106 = vector.broadcast %105 : vector<1x1x128xf32> to vector<2x26x128xf32>
    %107 = arith.mulf %104, %106 : vector<2x26x128xf32>
    %c0_54 = arith.constant 0 : index
    %c0_55 = arith.constant 0 : index
    %c0_56 = arith.constant 0 : index
    %108 = vector.load %arg8[%c0_54, %c0_55, %c0_56] : memref<1x1x128xf32, #tpu.memory_space<vmem>>, vector<1x1x128xf32>
    %109 = vector.broadcast %108 : vector<1x1x128xf32> to vector<2x26x128xf32>
    %110 = arith.addf %107, %109 : vector<2x26x128xf32>
    %cst_57 = arith.constant 0.000000e+00 : f32
    %111 = vector.broadcast %cst_57 : f32 to vector<2x26x128xf32>
    %112 = arith.maximumf %110, %111 : vector<2x26x128xf32>
    %cst_58 = arith.constant 0.000000e+00 : f32
    %113 = vector.broadcast %cst_58 : f32 to vector<2x25x64xf32>
    %114 = vector.extract_strided_slice %112 {offsets = [0, 0, 0], sizes = [2, 25, 128], strides = [1, 1, 1]} : vector<2x26x128xf32> to vector<2x25x128xf32>
    %c0_59 = arith.constant 0 : index
    %c0_60 = arith.constant 0 : index
    %c0_61 = arith.constant 0 : index
    %115 = vector.load %arg9[%c0_59, %c0_60, %c0_61] : memref<2x128x64xf32, #tpu.memory_space<vmem>>, vector<1x128x64xf32>
    %116 = vector.shape_cast %115 : vector<1x128x64xf32> to vector<128x64xf32>
    "tpu.trace_start"() <{level = 10 : i32, message = "blc,cd->bld"}> : () -> ()
    %cst_62 = arith.constant dense<0.000000e+00> : vector<2x25x64xf32>
    %117 = tpu.matmul %114, %116, %cst_62 {dimension_numbers = #tpu.dot_dimension_numbers<[2], [0], [0, 1], [1], [0, 0, 0, 1, 1, 1], [], []>} : vector<2x25x128xf32>, vector<128x64xf32>, vector<2x25x64xf32> -> vector<2x25x64xf32>
    "tpu.trace_stop"() : () -> ()
    %118 = arith.addf %113, %117 : vector<2x25x64xf32>
    %119 = vector.extract_strided_slice %112 {offsets = [0, 1, 0], sizes = [2, 25, 128], strides = [1, 1, 1]} : vector<2x26x128xf32> to vector<2x25x128xf32>
    %c1_63 = arith.constant 1 : index
    %c0_64 = arith.constant 0 : index
    %c0_65 = arith.constant 0 : index
    %120 = vector.load %arg9[%c1_63, %c0_64, %c0_65] : memref<2x128x64xf32, #tpu.memory_space<vmem>>, vector<1x128x64xf32>
    %121 = vector.shape_cast %120 : vector<1x128x64xf32> to vector<128x64xf32>
    "tpu.trace_start"() <{level = 10 : i32, message = "blc,cd->bld"}> : () -> ()
    %cst_66 = arith.constant dense<0.000000e+00> : vector<2x25x64xf32>
    %122 = tpu.matmul %119, %121, %cst_66 {dimension_numbers = #tpu.dot_dimension_numbers<[2], [0], [0, 1], [1], [0, 0, 0, 1, 1, 1], [], []>} : vector<2x25x128xf32>, vector<128x64xf32>, vector<2x25x64xf32> -> vector<2x25x64xf32>
    "tpu.trace_stop"() : () -> ()
    %123 = arith.addf %118, %122 : vector<2x25x64xf32>
    %c0_67 = arith.constant 0 : index
    %c0_68 = arith.constant 0 : index
    %c0_69 = arith.constant 0 : index
    %124 = vector.load %arg10[%c0_67, %c0_68, %c0_69] : memref<1x1x64xf32, #tpu.memory_space<vmem>>, vector<1x1x64xf32>
    %125 = vector.broadcast %124 : vector<1x1x64xf32> to vector<2x25x64xf32>
    %126 = arith.addf %123, %125 : vector<2x25x64xf32>
    %cst_70 = arith.constant dense<0.000000e+00> : vector<64xf32>
    %127 = vector.multi_reduction <add>, %126, %cst_70 [0, 1] : vector<2x25x64xf32> to vector<64xf32>
    %128 = vector.shape_cast %127 : vector<64xf32> to vector<1x1x64xf32>
    %cst_71 = arith.constant 5.000000e+01 : f32
    %129 = vector.broadcast %cst_71 : f32 to vector<1x1x64xf32>
    %130 = arith.divf %128, %129 : vector<1x1x64xf32>
    %131 = vector.broadcast %130 : vector<1x1x64xf32> to vector<2x25x64xf32>
    %132 = arith.subf %126, %131 : vector<2x25x64xf32>
    %133 = arith.mulf %132, %132 : vector<2x25x64xf32>
    %cst_72 = arith.constant dense<0.000000e+00> : vector<64xf32>
    %134 = vector.multi_reduction <add>, %133, %cst_72 [0, 1] : vector<2x25x64xf32> to vector<64xf32>
    %135 = vector.shape_cast %134 : vector<64xf32> to vector<1x1x64xf32>
    %cst_73 = arith.constant 5.000000e+01 : f32
    %136 = vector.broadcast %cst_73 : f32 to vector<1x1x64xf32>
    %137 = arith.divf %135, %136 : vector<1x1x64xf32>
    %138 = vector.broadcast %130 : vector<1x1x64xf32> to vector<2x25x64xf32>
    %139 = arith.subf %126, %138 : vector<2x25x64xf32>
    %cst_74 = arith.constant 9.99999974E-6 : f32
    %140 = vector.broadcast %cst_74 : f32 to vector<1x1x64xf32>
    %141 = arith.addf %137, %140 : vector<1x1x64xf32>
    %142 = math.rsqrt %141 : vector<1x1x64xf32>
    %143 = vector.broadcast %142 : vector<1x1x64xf32> to vector<2x25x64xf32>
    %144 = arith.mulf %139, %143 : vector<2x25x64xf32>
    %c0_75 = arith.constant 0 : index
    %c0_76 = arith.constant 0 : index
    %c0_77 = arith.constant 0 : index
    %145 = vector.load %arg11[%c0_75, %c0_76, %c0_77] : memref<1x1x64xf32, #tpu.memory_space<vmem>>, vector<1x1x64xf32>
    %146 = vector.broadcast %145 : vector<1x1x64xf32> to vector<2x25x64xf32>
    %147 = arith.mulf %144, %146 : vector<2x25x64xf32>
    %c0_78 = arith.constant 0 : index
    %c0_79 = arith.constant 0 : index
    %c0_80 = arith.constant 0 : index
    %148 = vector.load %arg12[%c0_78, %c0_79, %c0_80] : memref<1x1x64xf32, #tpu.memory_space<vmem>>, vector<1x1x64xf32>
    %149 = vector.broadcast %148 : vector<1x1x64xf32> to vector<2x25x64xf32>
    %150 = arith.addf %147, %149 : vector<2x25x64xf32>
    %cst_81 = arith.constant 0.000000e+00 : f32
    %151 = vector.broadcast %cst_81 : f32 to vector<2x25x64xf32>
    %152 = arith.maximumf %150, %151 : vector<2x25x64xf32>
    %c0_82 = arith.constant 0 : index
    %c0_83 = arith.constant 0 : index
    %c0_84 = arith.constant 0 : index
    %153 = vector.load %arg13[%c0_82, %c0_83, %c0_84] : memref<2x25x64xf32, #tpu.memory_space<vmem>>, vector<2x25x64xf32>
    tpu.vector_store %arg13[%c0_82, %c0_83, %c0_84], %152 {strides = array<i32>} : memref<2x25x64xf32, #tpu.memory_space<vmem>>, vector<2x25x64xf32>,
    return
  }
}

</mosaic_0001>

<llo_original>
// kernel: tpu_custom_call.1
$region0: #{tpu_custom_call.1}
  #allocation0 [shape = 'u32[]', space=smem, size = 0x4, offset = 0x4, fixed_abs, tag = 'smem constant byte address 0x4 - core index']
  #allocation1 [shape = 'u32[144,128]{1,0:T(1,128)}', space=vmem, size = 0x12000, scoped, tag = 'internal scratch']
  %s0 = inlined_call_operand.vmem [shape: f32[2,32,1], index: 0, kind: input, shape index: {}]
  %s1 = inlined_call_operand.vmem [shape: f32[4,1,64], index: 1, kind: input, shape index: {}]
  %s2 = inlined_call_operand.vmem [shape: f32[1,1,64], index: 2, kind: input, shape index: {}]
  %s3 = inlined_call_operand.vmem [shape: f32[1,1,64], index: 3, kind: input, shape index: {}]
  %s4 = inlined_call_operand.vmem [shape: f32[1,1,64], index: 4, kind: input, shape index: {}]
  %s5 = inlined_call_operand.vmem [shape: f32[4,64,128], index: 5, kind: input, shape index: {}]
  %s6 = inlined_call_operand.vmem [shape: f32[1,1,128], index: 6, kind: input, shape index: {}]
  %s7 = inlined_call_operand.vmem [shape: f32[1,1,128], index: 7, kind: input, shape index: {}]
  %s8 = inlined_call_operand.vmem [shape: f32[1,1,128], index: 8, kind: input, shape index: {}]
  %s9 = inlined_call_operand.vmem [shape: f32[2,128,64], index: 9, kind: input, shape index: {}]
  %s10 = inlined_call_operand.vmem [shape: f32[1,1,64], index: 10, kind: input, shape index: {}]
  %s11 = inlined_call_operand.vmem [shape: f32[1,1,64], index: 11, kind: input, shape index: {}]
  %s12 = inlined_call_operand.vmem [shape: f32[1,1,64], index: 12, kind: input, shape index: {}]
  %s13 = inlined_call_operand.vmem [shape: f32[2,25,64], index: 13, kind: output, shape index: {}]
  %s14 = sld [smem:[#allocation0]]
  $region62: #{tpu_custom_call.1} parent=0
    _
  %s16 = ssub.s32 1, %s14
  %s17 = scalar_select 0, %s16, %s14
  // Predicated region
  $region2: #{tpu_custom_call.1} parent=0 // pred_check
    _
  $region3: #{tpu_custom_call.1} parent=0 // pred_check_branch
    %19 = sbr.rel (0) target = $region5
  $region4: #{tpu_custom_call.1} parent=0 // pred_region
    _
  $region5: #{tpu_custom_call.1} parent=0 // pred_fallthru
    _
  // Predicated region
  $region6: #{tpu_custom_call.1} parent=0 // pred_check
    _
  $region7: #{tpu_custom_call.1} parent=0 // pred_check_branch
    %21 = sbr.rel (0) target = $region9
  $region8: #{tpu_custom_call.1} parent=0 // pred_region
    _
  $region9: #{tpu_custom_call.1} parent=0 // pred_fallthru
    _
  // Predicated region
  $region10: #{tpu_custom_call.1} parent=0 // pred_check
    _
  $region11: #{tpu_custom_call.1} parent=0 // pred_check_branch
    %23 = sbr.rel (0) target = $region13
  $region12: #{tpu_custom_call.1} parent=0 // pred_region
    _
  $region13: #{tpu_custom_call.1} parent=0 // pred_fallthru
    _
  // Predicated region
  $region14: #{tpu_custom_call.1} parent=0 // pred_check
    _
  $region15: #{tpu_custom_call.1} parent=0 // pred_check_branch
    %25 = sbr.rel (0) target = $region17
  $region16: #{tpu_custom_call.1} parent=0 // pred_region
    _
  $region17: #{tpu_custom_call.1} parent=0 // pred_fallthru
    _
  // Predicated region
  $region18: #{tpu_custom_call.1} parent=0 // pred_check
    _
  $region19: #{tpu_custom_call.1} parent=0 // pred_check_branch
    %27 = sbr.rel (0) target = $region21
  $region20: #{tpu_custom_call.1} parent=0 // pred_region
    _
  $region21: #{tpu_custom_call.1} parent=0 // pred_fallthru
    _
  // Predicated region
  $region22: #{tpu_custom_call.1} parent=0 // pred_check
    _
  $region23: #{tpu_custom_call.1} parent=0 // pred_check_branch
    %29 = sbr.rel (0) target = $region25
  $region24: #{tpu_custom_call.1} parent=0 // pred_region
    _
  $region25: #{tpu_custom_call.1} parent=0 // pred_fallthru
    _
  // Predicated region
  $region26: #{tpu_custom_call.1} parent=0 // pred_check
    _
  $region27: #{tpu_custom_call.1} parent=0 // pred_check_branch
    %31 = sbr.rel (0) target = $region29
  $region28: #{tpu_custom_call.1} parent=0 // pred_region
    _
  $region29: #{tpu_custom_call.1} parent=0 // pred_fallthru
    _
  // Predicated region
  $region30: #{tpu_custom_call.1} parent=0 // pred_check
    _
  $region31: #{tpu_custom_call.1} parent=0 // pred_check_branch
    %33 = sbr.rel (0) target = $region33
  $region32: #{tpu_custom_call.1} parent=0 // pred_region
    _
  $region33: #{tpu_custom_call.1} parent=0 // pred_fallthru
    _
  // Predicated region
  $region34: #{tpu_custom_call.1} parent=0 // pred_check
    _
  $region35: #{tpu_custom_call.1} parent=0 // pred_check_branch
    %35 = sbr.rel (0) target = $region37
  $region36: #{tpu_custom_call.1} parent=0 // pred_region
    _
  $region37: #{tpu_custom_call.1} parent=0 // pred_fallthru
    _
  // Predicated region
  $region38: #{tpu_custom_call.1} parent=0 // pred_check
    _
  $region39: #{tpu_custom_call.1} parent=0 // pred_check_branch
    %37 = sbr.rel (0) target = $region41
  $region40: #{tpu_custom_call.1} parent=0 // pred_region
    _
  $region41: #{tpu_custom_call.1} parent=0 // pred_fallthru
    _
  // Predicated region
  $region42: #{tpu_custom_call.1} parent=0 // pred_check
    _
  $region43: #{tpu_custom_call.1} parent=0 // pred_check_branch
    %39 = sbr.rel (0) target = $region45
  $region44: #{tpu_custom_call.1} parent=0 // pred_region
    _
  $region45: #{tpu_custom_call.1} parent=0 // pred_fallthru
    _
  // Predicated region
  $region46: #{tpu_custom_call.1} parent=0 // pred_check
    _
  $region47: #{tpu_custom_call.1} parent=0 // pred_check_branch
    %41 = sbr.rel (0) target = $region49
  $region48: #{tpu_custom_call.1} parent=0 // pred_region
    _
  $region49: #{tpu_custom_call.1} parent=0 // pred_fallthru
    _
  // Predicated region
  $region50: #{tpu_custom_call.1} parent=0 // pred_check
    _
  $region51: #{tpu_custom_call.1} parent=0 // pred_check_branch
    %43 = sbr.rel (0) target = $region53
  $region52: #{tpu_custom_call.1} parent=0 // pred_region
    _
  $region53: #{tpu_custom_call.1} parent=0 // pred_fallthru
    _
  %v44 = vld [vmem:[%s0] sm:$0xff]
  %v45 = vld [vmem:[%s0 + $0x8] sm:$0xff]
  %v46 = vld [vmem:[%s0 + $0x10] sm:$0xff]
  %v47 = vld [vmem:[%s0 + $0x18] sm:$0xff]
  %v48 = vld [vmem:[%s0 + $0x20] sm:$0xff]
  %v49 = vld [vmem:[%s0 + $0x28] sm:$0xff]
  %v50 = vld [vmem:[%s0 + $0x30] sm:$0xff]
  %v51 = vld [vmem:[%s0 + $0x38] sm:$0xff]
  %v52 = vld [vmem:[%s1] sm:$0x1]
  %54 = vset.pattern.permute.xlu0 0
  %55 = vperm.xlu0 %54, %v44
  %v56 = vpop.permute.xlu0 %55
  %59 = vset.pattern.permute.xlu0 0
  %60 = vperm.xlu0 %59, %v45
  %v61 = vpop.permute.xlu0 %60
  %64 = vset.pattern.permute.xlu0 0
  %65 = vperm.xlu0 %64, %v46
  %v66 = vpop.permute.xlu0 %65
  %69 = vset.pattern.permute.xlu0 0
  %70 = vperm.xlu0 %69, %v47
  %v71 = vpop.permute.xlu0 %70
  %74 = vset.pattern.permute.xlu0 0
  %75 = vperm.xlu0 %74, %v48
  %v76 = vpop.permute.xlu0 %75
  %79 = vset.pattern.permute.xlu0 0
  %80 = vperm.xlu0 %79, %v49
  %v81 = vpop.permute.xlu0 %80
  %84 = vset.pattern.permute.xlu0 0
  %85 = vperm.xlu0 %84, %v50
  %v86 = vpop.permute.xlu0 %85
  %89 = vset.pattern.permute.xlu0 0
  %90 = vperm.xlu0 %89, %v51
  %v91 = vpop.permute.xlu0 %90
  %v94 = vlaneseq
  %v95 = vshrl.u32 %v94, 7
  %v96 = vsub.s32 0, %v95
  %v97 = vrot.slane %v52, %v96
  %v99 = vmul.f32 %v56, %v97
  %v100 = vmul.f32 %v61, %v97
  %v101 = vmul.f32 %v66, %v97
  %v102 = vmul.f32 %v71, %v97
  %v103 = vmul.f32 %v76, %v97
  %v104 = vmul.f32 %v81, %v97
  %v105 = vmul.f32 %v86, %v97
  %v106 = vmul.f32 %v91, %v97
  %v107 = vadd.f32 %v99, 0.0
  %v108 = vadd.f32 %v100, 0.0
  %v109 = vadd.f32 %v101, 0.0
  %v110 = vadd.f32 %v102, 0.0
  %v111 = vadd.f32 %v103, 0.0
  %v112 = vadd.f32 %v104, 0.0
  %v113 = vadd.f32 %v105, 0.0
  %v114 = vadd.f32 %v106, 0.0
  %s115 = scalar_lea.vmem %s1, 1
  %v116 = vld [vmem:[%s115] sm:$0x1]
  %v118 = vlaneseq
  %v119 = vshrl.u32 %v118, 7
  %v120 = vsub.s32 0, %v119
  %v121 = vrot.slane %v116, %v120
  %v123 = vmul.f32 %v56, %v121
  %v124 = vmul.f32 %v61, %v121
  %v125 = vmul.f32 %v66, %v121
  %v126 = vmul.f32 %v71, %v121
  %v127 = vmul.f32 %v76, %v121
  %v128 = vmul.f32 %v81, %v121
  %v129 = vmul.f32 %v86, %v121
  %v130 = vmul.f32 %v91, %v121
  %vm139 = vcmask 1046528
  %v140 = vrot.slane %v123, 1
  %v141 = vrot.slane %v124, 1
  %v142 = vsel %vm139, %v140, %v141
  %v143 = vrot.slane %v125, 1
  %v144 = vsel %vm139, %v141, %v143
  %v145 = vrot.slane %v126, 1
  %v146 = vsel %vm139, %v143, %v145
  %v147 = vrot.slane %v127, 1
  %v148 = vrot.slane %v128, 1
  %v149 = vsel %vm139, %v147, %v148
  %v150 = vrot.slane %v129, 1
  %v151 = vsel %vm139, %v148, %v150
  %v152 = vrot.slane %v130, 1
  %v153 = vsel %vm139, %v150, %v152
  %v162 = vadd.f32 %v107, %v142
  %v163 = vadd.f32 %v108, %v144
  %v164 = vadd.f32 %v109, %v146
  %v165 = vadd.f32 %v110, %v145
  %v166 = vadd.f32 %v111, %v149
  %v167 = vadd.f32 %v112, %v151
  %v168 = vadd.f32 %v113, %v153
  %v169 = vadd.f32 %v114, %v152
  %s170 = scalar_lea.vmem %s1, 2
  %v171 = vld [vmem:[%s170] sm:$0x1]
  %v173 = vlaneseq
  %v174 = vshrl.u32 %v173, 7
  %v175 = vsub.s32 0, %v174
  %v176 = vrot.slane %v171, %v175
  %v178 = vmul.f32 %v56, %v176
  %v179 = vmul.f32 %v61, %v176
  %v180 = vmul.f32 %v66, %v176
  %v181 = vmul.f32 %v71, %v176
  %v182 = vmul.f32 %v76, %v176
  %v183 = vmul.f32 %v81, %v176
  %v184 = vmul.f32 %v86, %v176
  %v185 = vmul.f32 %v91, %v176
  %vm194 = vcmask 1045504
  %v195 = vrot.slane %v178, 2
  %v196 = vrot.slane %v179, 2
  %v197 = vsel %vm194, %v195, %v196
  %v198 = vrot.slane %v180, 2
  %v199 = vsel %vm194, %v196, %v198
  %v200 = vrot.slane %v181, 2
  %v201 = vsel %vm194, %v198, %v200
  %v202 = vrot.slane %v182, 2
  %v203 = vrot.slane %v183, 2
  %v204 = vsel %vm194, %v202, %v203
  %v205 = vrot.slane %v184, 2
  %v206 = vsel %vm194, %v203, %v205
  %v207 = vrot.slane %v185, 2
  %v208 = vsel %vm194, %v205, %v207
  %v217 = vadd.f32 %v162, %v197
  %v218 = vadd.f32 %v163, %v199
  %v219 = vadd.f32 %v164, %v201
  %v220 = vadd.f32 %v165, %v200
  %v221 = vadd.f32 %v166, %v204
  %v222 = vadd.f32 %v167, %v206
  %v223 = vadd.f32 %v168, %v208
  %v224 = vadd.f32 %v169, %v207
  %s225 = scalar_lea.vmem %s1, 3
  %v226 = vld [vmem:[%s225] sm:$0x1]
  %v228 = vlaneseq
  %v229 = vshrl.u32 %v228, 7
  %v230 = vsub.s32 0, %v229
  %v231 = vrot.slane %v226, %v230
  %v233 = vmul.f32 %v56, %v231
  %v234 = vmul.f32 %v61, %v231
  %v235 = vmul.f32 %v66, %v231
  %v236 = vmul.f32 %v71, %v231
  %v237 = vmul.f32 %v76, %v231
  %v238 = vmul.f32 %v81, %v231
  %v239 = vmul.f32 %v86, %v231
  %v240 = vmul.f32 %v91, %v231
  %vm249 = vcmask 1044480
  %v250 = vrot.slane %v233, 3
  %v251 = vrot.slane %v234, 3
  %v252 = vsel %vm249, %v250, %v251
  %v253 = vrot.slane %v235, 3
  %v254 = vsel %vm249, %v251, %v253
  %v255 = vrot.slane %v236, 3
  %v256 = vsel %vm249, %v253, %v255
  %v257 = vrot.slane %v237, 3
  %v258 = vrot.slane %v238, 3
  %v259 = vsel %vm249, %v257, %v258
  %v260 = vrot.slane %v239, 3
  %v261 = vsel %vm249, %v258, %v260
  %v262 = vrot.slane %v240, 3
  %v263 = vsel %vm249, %v260, %v262
  %v272 = vadd.f32 %v217, %v252
  %v273 = vadd.f32 %v218, %v254
  %v274 = vadd.f32 %v219, %v256
  %v275 = vadd.f32 %v220, %v255
  %v276 = vadd.f32 %v221, %v259
  %v277 = vadd.f32 %v222, %v261
  %v278 = vadd.f32 %v223, %v263
  %v279 = vadd.f32 %v224, %v262
  %v280 = vld [vmem:[%s2] sm:$0x1]
  %v282 = vlaneseq
  %v283 = vshrl.u32 %v282, 7
  %v284 = vsub.s32 0, %v283
  %v285 = vrot.slane %v280, %v284
  %v287 = vadd.f32 %v272, %v285
  %v288 = vadd.f32 %v273, %v285
  %v289 = vadd.f32 %v274, %v285
  %v290 = vadd.f32 %v275, %v285
  %v291 = vadd.f32 %v276, %v285
  %v292 = vadd.f32 %v277, %v285
  %v293 = vadd.f32 %v278, %v285
  %v294 = vadd.f32 %v279, %v285
  %vm295 = vcmask 523264
  %v296 = vsel %vm295, %v287, 0.0
  %v297 = vsel %vm295, %v288, 0.0
  %v298 = vadd.f32 %v296, %v297
  %v299 = vsel %vm295, %v289, 0.0
  %v300 = vadd.f32 %v298, %v299
  %vm301 = vcmask 520192
  %v302 = vsel %vm301, %v290, 0.0
  %v303 = vadd.f32 %v300, %v302
  %v304 = vsel %vm295, %v291, 0.0
  %v305 = vadd.f32 %v303, %v304
  %v306 = vsel %vm295, %v292, 0.0
  %v307 = vadd.f32 %v305, %v306
  %v308 = vsel %vm295, %v293, 0.0
  %v309 = vadd.f32 %v307, %v308
  %v310 = vsel %vm301, %v294, 0.0
  %v311 = vadd.f32 %v309, %v310
  %v312 = vrot.slane %v311, 4
  %v313 = vadd.f32 %v311, %v312
  %v314 = vrot.slane %v313, 2
  %v315 = vadd.f32 %v313, %v314
  %v316 = vrot.slane %v315, 1
  %v317 = vadd.f32 %v315, %v316
  %v318 = vrcp.pop 58.0
  %v319 = vmul.f32 %v317, %v318
  %v320 = vsub.f32 %v287, %v319
  %v321 = vsub.f32 %v288, %v319
  %v322 = vsub.f32 %v289, %v319
  %v323 = vsub.f32 %v290, %v319
  %v324 = vsub.f32 %v291, %v319
  %v325 = vsub.f32 %v292, %v319
  %v326 = vsub.f32 %v293, %v319
  %v327 = vsub.f32 %v294, %v319
  %v328 = vmul.f32 %v320, %v320
  %v329 = vmul.f32 %v321, %v321
  %v330 = vmul.f32 %v322, %v322
  %v331 = vmul.f32 %v323, %v323
  %v332 = vmul.f32 %v324, %v324
  %v333 = vmul.f32 %v325, %v325
  %v334 = vmul.f32 %v326, %v326
  %v335 = vmul.f32 %v327, %v327
  %v336 = vsel %vm295, %v328, 0.0
  %v337 = vsel %vm295, %v329, 0.0
  %v338 = vadd.f32 %v336, %v337
  %v339 = vsel %vm295, %v330, 0.0
  %v340 = vadd.f32 %v338, %v339
  %v341 = vsel %vm301, %v331, 0.0
  %v342 = vadd.f32 %v340, %v341
  %v343 = vsel %vm295, %v332, 0.0
  %v344 = vadd.f32 %v342, %v343
  %v345 = vsel %vm295, %v333, 0.0
  %v346 = vadd.f32 %v344, %v345
  %v347 = vsel %vm295, %v334, 0.0
  %v348 = vadd.f32 %v346, %v347
  %v349 = vsel %vm301, %v335, 0.0
  %v350 = vadd.f32 %v348, %v349
  %v351 = vrot.slane %v350, 4
  %v352 = vadd.f32 %v350, %v351
  %v353 = vrot.slane %v352, 2
  %v354 = vadd.f32 %v352, %v353
  %v355 = vrot.slane %v354, 1
  %v356 = vadd.f32 %v354, %v355
  %v357 = vmul.f32 %v356, %v318
  %v358 = vadd.f32 %v357, 1e-05
  %v359 = vrsqrt.pop %v358
  %v360 = vmul.f32 %v320, %v359
  %v361 = vmul.f32 %v321, %v359
  %v362 = vmul.f32 %v322, %v359
  %v363 = vmul.f32 %v323, %v359
  %v364 = vmul.f32 %v324, %v359
  %v365 = vmul.f32 %v325, %v359
  %v366 = vmul.f32 %v326, %v359
  %v367 = vmul.f32 %v327, %v359
  %v368 = vld [vmem:[%s3] sm:$0x1]
  %v370 = vlaneseq
  %v371 = vshrl.u32 %v370, 7
  %v372 = vsub.s32 0, %v371
  %v373 = vrot.slane %v368, %v372
  %v375 = vmul.f32 %v360, %v373
  %v376 = vmul.f32 %v361, %v373
  %v377 = vmul.f32 %v362, %v373
  %v378 = vmul.f32 %v363, %v373
  %v379 = vmul.f32 %v364, %v373
  %v380 = vmul.f32 %v365, %v373
  %v381 = vmul.f32 %v366, %v373
  %v382 = vmul.f32 %v367, %v373
  %v383 = vld [vmem:[%s4] sm:$0x1]
  %v385 = vlaneseq
  %v386 = vshrl.u32 %v385, 7
  %v387 = vsub.s32 0, %v386
  %v388 = vrot.slane %v383, %v387
  %v390 = vadd.f32 %v375, %v388
  %v391 = vadd.f32 %v376, %v388
  %v392 = vadd.f32 %v377, %v388
  %v393 = vadd.f32 %v378, %v388
  %v394 = vadd.f32 %v379, %v388
  %v395 = vadd.f32 %v380, %v388
  %v396 = vadd.f32 %v381, %v388
  %v397 = vadd.f32 %v382, %v388
  %v398 = vmax.f32 %v390, 0.0
  %v399 = vmax.f32 %v391, 0.0
  %v400 = vmax.f32 %v392, 0.0
  %v401 = vmax.f32 %v393, 0.0
  %v402 = vmax.f32 %v394, 0.0
  %v403 = vmax.f32 %v395, 0.0
  %v404 = vmax.f32 %v396, 0.0
  %v405 = vmax.f32 %v397, 0.0
  %v406 = vld [vmem:[%s5] sm:$0xff]
  %v407 = vld [vmem:[%s5 + $0x8] sm:$0xff]
  %v408 = vld [vmem:[%s5 + $0x10] sm:$0xff]
  %v409 = vld [vmem:[%s5 + $0x18] sm:$0xff]
  %v410 = vld [vmem:[%s5 + $0x20] sm:$0xff]
  %v411 = vld [vmem:[%s5 + $0x28] sm:$0xff]
  %v412 = vld [vmem:[%s5 + $0x30] sm:$0xff]
  %v413 = vld [vmem:[%s5 + $0x38] sm:$0xff]
  %s414 = scalar_lea.vmem %s5, 64
  %v415 = vld [vmem:[%s414] sm:$0xff]
  %v416 = vld [vmem:[%s414 + $0x8] sm:$0xff]
  %v417 = vld [vmem:[%s414 + $0x10] sm:$0xff]
  %v418 = vld [vmem:[%s414 + $0x18] sm:$0xff]
  %v419 = vld [vmem:[%s414 + $0x20] sm:$0xff]
  %v420 = vld [vmem:[%s414 + $0x28] sm:$0xff]
  %v421 = vld [vmem:[%s414 + $0x30] sm:$0xff]
  %v422 = vld [vmem:[%s414 + $0x38] sm:$0xff]
  %v431 = vcombine.high %v398, %v398
  %v433 = vunpack.c.l.s4 1983009808
  %v434 = vunpack.c.0.s8 %v433
  %v435 = vlaneseq
  %v436 = vshrl.u32 %v435, 7
  %v437 = vsub.s32 %v434, %v436
  %v438 = vrot.slane %v398, %v437
  %v440 = vunpack.c.l.s4 1983009808
  %v441 = vunpack.c.0.s8 %v440
  %v442 = vlaneseq
  %v443 = vshrl.u32 %v442, 7
  %v444 = vsub.s32 %v441, %v443
  %v445 = vrot.slane %v431, %v444
  %v446 = vcombine.high %v438, %v438
  %v447 = vcombine.high %v445, %v445
  %v448 = vcombine.high %v399, %v399
  %v450 = vunpack.c.l.s4 1983009808
  %v451 = vunpack.c.0.s8 %v450
  %v452 = vlaneseq
  %v453 = vshrl.u32 %v452, 7
  %v454 = vsub.s32 %v451, %v453
  %v455 = vrot.slane %v399, %v454
  %v457 = vunpack.c.l.s4 1983009808
  %v458 = vunpack.c.0.s8 %v457
  %v459 = vlaneseq
  %v460 = vshrl.u32 %v459, 7
  %v461 = vsub.s32 %v458, %v460
  %v462 = vrot.slane %v448, %v461
  %v463 = vcombine.high %v455, %v455
  %v464 = vcombine.high %v462, %v462
  %v465 = vcombine.high %v400, %v400
  %v467 = vunpack.c.l.s4 1983009808
  %v468 = vunpack.c.0.s8 %v467
  %v469 = vlaneseq
  %v470 = vshrl.u32 %v469, 7
  %v471 = vsub.s32 %v468, %v470
  %v472 = vrot.slane %v400, %v471
  %v474 = vunpack.c.l.s4 1983009808
  %v475 = vunpack.c.0.s8 %v474
  %v476 = vlaneseq
  %v477 = vshrl.u32 %v476, 7
  %v478 = vsub.s32 %v475, %v477
  %v479 = vrot.slane %v465, %v478
  %v480 = vcombine.high %v472, %v472
  %v481 = vcombine.high %v479, %v479
  %v483 = vunpack.c.l.s4 1983009808
  %v484 = vunpack.c.0.s8 %v483
  %v485 = vlaneseq
  %v486 = vshrl.u32 %v485, 7
  %v487 = vsub.s32 %v484, %v486
  %v488 = vrot.slane %v401, %v487
  %v489 = vcombine.high %v488, %v488
  %v490 = vcombine.high %v402, %v402
  %v492 = vunpack.c.l.s4 1983009808
  %v493 = vunpack.c.0.s8 %v492
  %v494 = vlaneseq
  %v495 = vshrl.u32 %v494, 7
  %v496 = vsub.s32 %v493, %v495
  %v497 = vrot.slane %v402, %v496
  %v499 = vunpack.c.l.s4 1983009808
  %v500 = vunpack.c.0.s8 %v499
  %v501 = vlaneseq
  %v502 = vshrl.u32 %v501, 7
  %v503 = vsub.s32 %v500, %v502
  %v504 = vrot.slane %v490, %v503
  %v505 = vcombine.high %v497, %v497
  %v506 = vcombine.high %v504, %v504
  %v507 = vcombine.high %v403, %v403
  %v509 = vunpack.c.l.s4 1983009808
  %v510 = vunpack.c.0.s8 %v509
  %v511 = vlaneseq
  %v512 = vshrl.u32 %v511, 7
  %v513 = vsub.s32 %v510, %v512
  %v514 = vrot.slane %v403, %v513
  %v516 = vunpack.c.l.s4 1983009808
  %v517 = vunpack.c.0.s8 %v516
  %v518 = vlaneseq
  %v519 = vshrl.u32 %v518, 7
  %v520 = vsub.s32 %v517, %v519
  %v521 = vrot.slane %v507, %v520
  %v522 = vcombine.high %v514, %v514
  %v523 = vcombine.high %v521, %v521
  %v524 = vcombine.high %v404, %v404
  %v526 = vunpack.c.l.s4 1983009808
  %v527 = vunpack.c.0.s8 %v526
  %v528 = vlaneseq
  %v529 = vshrl.u32 %v528, 7
  %v530 = vsub.s32 %v527, %v529
  %v531 = vrot.slane %v404, %v530
  %v533 = vunpack.c.l.s4 1983009808
  %v534 = vunpack.c.0.s8 %v533
  %v535 = vlaneseq
  %v536 = vshrl.u32 %v535, 7
  %v537 = vsub.s32 %v534, %v536
  %v538 = vrot.slane %v524, %v537
  %v539 = vcombine.high %v531, %v531
  %v540 = vcombine.high %v538, %v538
  %v542 = vunpack.c.l.s4 1983009808
  %v543 = vunpack.c.0.s8 %v542
  %v544 = vlaneseq
  %v545 = vshrl.u32 %v544, 7
  %v546 = vsub.s32 %v543, %v545
  %v547 = vrot.slane %v405, %v546
  %v548 = vcombine.high %v547, %v547
  %vm549 = vcmask 1040384
  %vm550 = vcmask 1042434
  %vm551 = vmor %vm549, %vm550
  %vm552 = vcmask 1044484
  %vm553 = vmor %vm551, %vm552
  %vm554 = vcmask 1046534
  %vm555 = vmor %vm553, %vm554
  %v556 = vrot.slane %v438, 7
  %v557 = vrot.slane %v556, 2
  %v558 = vrot.slane %v446, 7
  %v559 = vsel %vm555, %v557, %v558
  %v560 = vrot.slane %v558, 2
  %v561 = vrot.slane %v445, 7
  %v562 = vsel %vm555, %v560, %v561
  %v563 = vrot.slane %v561, 2
  %v564 = vrot.slane %v447, 7
  %v565 = vsel %vm555, %v563, %v564
  %v566 = vrot.slane %v564, 2
  %v567 = vrot.slane %v455, 7
  %v568 = vsel %vm555, %v566, %v567
  %v569 = vrot.slane %v567, 2
  %v570 = vrot.slane %v463, 7
  %v571 = vsel %vm555, %v569, %v570
  %v572 = vrot.slane %v570, 2
  %v573 = vrot.slane %v462, 7
  %v574 = vsel %vm555, %v572, %v573
  %v575 = vrot.slane %v573, 2
  %v576 = vrot.slane %v464, 7
  %v577 = vsel %vm555, %v575, %v576
  %v578 = vrot.slane %v576, 2
  %v579 = vrot.slane %v472, 7
  %v580 = vsel %vm555, %v578, %v579
  %v581 = vrot.slane %v579, 2
  %v582 = vrot.slane %v480, 7
  %v583 = vsel %vm555, %v581, %v582
  %v584 = vrot.slane %v582, 2
  %v585 = vrot.slane %v479, 7
  %v586 = vsel %vm555, %v584, %v585
  %v587 = vrot.slane %v585, 2
  %v588 = vrot.slane %v481, 7
  %v589 = vsel %vm555, %v587, %v588
  %v590 = vrot.slane %v588, 2
  %v591 = vrot.slane %v488, 7
  %v592 = vsel %vm555, %v590, %v591
  %v593 = vrot.slane %v591, 2
  %v594 = vrot.slane %v489, 7
  %v595 = vsel %vm555, %v593, %v594
  %v596 = vrot.slane %v497, 7
  %v597 = vrot.slane %v596, 2
  %v598 = vrot.slane %v505, 7
  %v599 = vsel %vm555, %v597, %v598
  %v600 = vrot.slane %v598, 2
  %v601 = vrot.slane %v504, 7
  %v602 = vsel %vm555, %v600, %v601
  %v603 = vrot.slane %v601, 2
  %v604 = vrot.slane %v506, 7
  %v605 = vsel %vm555, %v603, %v604
  %v606 = vrot.slane %v604, 2
  %v607 = vrot.slane %v514, 7
  %v608 = vsel %vm555, %v606, %v607
  %v609 = vrot.slane %v607, 2
  %v610 = vrot.slane %v522, 7
  %v611 = vsel %vm555, %v609, %v610
  %v612 = vrot.slane %v610, 2
  %v613 = vrot.slane %v521, 7
  %v614 = vsel %vm555, %v612, %v613
  %v615 = vrot.slane %v613, 2
  %v616 = vrot.slane %v523, 7
  %v617 = vsel %vm555, %v615, %v616
  %v618 = vrot.slane %v616, 2
  %v619 = vrot.slane %v531, 7
  %v620 = vsel %vm555, %v618, %v619
  %v621 = vrot.slane %v619, 2
  %v622 = vrot.slane %v539, 7
  %v623 = vsel %vm555, %v621, %v622
  %v624 = vrot.slane %v622, 2
  %v625 = vrot.slane %v538, 7
  %v626 = vsel %vm555, %v624, %v625
  %v627 = vrot.slane %v625, 2
  %v628 = vrot.slane %v540, 7
  %v629 = vsel %vm555, %v627, %v628
  %v630 = vrot.slane %v628, 2
  %v631 = vrot.slane %v547, 7
  %v632 = vsel %vm555, %v630, %v631
  %v633 = vrot.slane %v631, 2
  %v634 = vrot.slane %v548, 7
  %v635 = vsel %vm555, %v633, %v634
  %v636 = vcombine.low %v559, %v562
  %v637 = vcombine.low %v565, %v568
  %v639 = vunpack.c.l.s4 1983009808
  %v640 = vunpack.c.0.s8 %v639
  %v641 = vlaneseq
  %v642 = vshrl.u32 %v641, 7
  %v643 = vsub.s32 %v640, %v642
  %v644 = vrot.slane %v636, %v643
  %v646 = vunpack.c.l.s4 1983009808
  %v647 = vunpack.c.0.s8 %v646
  %v648 = vlaneseq
  %v649 = vshrl.u32 %v648, 7
  %v650 = vsub.s32 %v647, %v649
  %v651 = vrot.slane %v637, %v650
  %v652 = vcombine.low %v644, %v651
  %v653 = vcombine.low %v571, %v574
  %v654 = vcombine.low %v577, %v580
  %v656 = vunpack.c.l.s4 1983009808
  %v657 = vunpack.c.0.s8 %v656
  %v658 = vlaneseq
  %v659 = vshrl.u32 %v658, 7
  %v660 = vsub.s32 %v657, %v659
  %v661 = vrot.slane %v653, %v660
  %v663 = vunpack.c.l.s4 1983009808
  %v664 = vunpack.c.0.s8 %v663
  %v665 = vlaneseq
  %v666 = vshrl.u32 %v665, 7
  %v667 = vsub.s32 %v664, %v666
  %v668 = vrot.slane %v654, %v667
  %v669 = vcombine.low %v661, %v668
  %v670 = vcombine.low %v583, %v586
  %v671 = vcombine.low %v589, %v592
  %v673 = vunpack.c.l.s4 1983009808
  %v674 = vunpack.c.0.s8 %v673
  %v675 = vlaneseq
  %v676 = vshrl.u32 %v675, 7
  %v677 = vsub.s32 %v674, %v676
  %v678 = vrot.slane %v670, %v677
  %v680 = vunpack.c.l.s4 1983009808
  %v681 = vunpack.c.0.s8 %v680
  %v682 = vlaneseq
  %v683 = vshrl.u32 %v682, 7
  %v684 = vsub.s32 %v681, %v683
  %v685 = vrot.slane %v671, %v684
  %v686 = vcombine.low %v678, %v685
  %v687 = vcombine.low %v595, %v599
  %v688 = vcombine.low %v602, %v605
  %v690 = vunpack.c.l.s4 1983009808
  %v691 = vunpack.c.0.s8 %v690
  %v692 = vlaneseq
  %v693 = vshrl.u32 %v692, 7
  %v694 = vsub.s32 %v691, %v693
  %v695 = vrot.slane %v687, %v694
  %v697 = vunpack.c.l.s4 1983009808
  %v698 = vunpack.c.0.s8 %v697
  %v699 = vlaneseq
  %v700 = vshrl.u32 %v699, 7
  %v701 = vsub.s32 %v698, %v700
  %v702 = vrot.slane %v688, %v701
  %v703 = vcombine.low %v695, %v702
  %v704 = vcombine.low %v608, %v611
  %v705 = vcombine.low %v614, %v617
  %v707 = vunpack.c.l.s4 1983009808
  %v708 = vunpack.c.0.s8 %v707
  %v709 = vlaneseq
  %v710 = vshrl.u32 %v709, 7
  %v711 = vsub.s32 %v708, %v710
  %v712 = vrot.slane %v704, %v711
  %v714 = vunpack.c.l.s4 1983009808
  %v715 = vunpack.c.0.s8 %v714
  %v716 = vlaneseq
  %v717 = vshrl.u32 %v716, 7
  %v718 = vsub.s32 %v715, %v717
  %v719 = vrot.slane %v705, %v718
  %v720 = vcombine.low %v712, %v719
  %v721 = vcombine.low %v620, %v623
  %v722 = vcombine.low %v626, %v629
  %v724 = vunpack.c.l.s4 1983009808
  %v725 = vunpack.c.0.s8 %v724
  %v726 = vlaneseq
  %v727 = vshrl.u32 %v726, 7
  %v728 = vsub.s32 %v725, %v727
  %v729 = vrot.slane %v721, %v728
  %v731 = vunpack.c.l.s4 1983009808
  %v732 = vunpack.c.0.s8 %v731
  %v733 = vlaneseq
  %v734 = vshrl.u32 %v733, 7
  %v735 = vsub.s32 %v732, %v734
  %v736 = vrot.slane %v722, %v735
  %v737 = vcombine.low %v729, %v736
  %v738 = vcombine.low %v632, %v635
  %v740 = vunpack.c.l.s4 1983009808
  %v741 = vunpack.c.0.s8 %v740
  %v742 = vlaneseq
  %v743 = vshrl.u32 %v742, 7
  %v744 = vsub.s32 %v741, %v743
  %v745 = vrot.slane %v738, %v744
  %v746 = vsel %vm295, %v652, 0
  %v748 = vsel %vm295, %v669, 0
  %v750 = vsel %vm295, %v686, 0
  %v752 = vsel %vm295, %v703, 0
  %v754 = vsel %vm295, %v720, 0
  %v756 = vsel %vm295, %v737, 0
  %v758 = vsel %vm295, %v745, 0
  %760 = vmatprep.subr.mxu0 0.0
  %761 = vmatpush1.msra.mxu0 %v415
  %762 = vmatprep.subr.mxu0 0.0
  %763 = vmatpush1.msra.mxu0 %v416
  %764 = vmatprep.subr.mxu0 0.0
  %765 = vmatpush1.msra.mxu0 %v417
  %766 = vmatprep.subr.mxu0 0.0
  %767 = vmatpush1.msra.mxu0 %v418
  %768 = vmatprep.subr.mxu0 0.0
  %769 = vmatpush1.msra.mxu0 %v419
  %770 = vmatprep.subr.mxu0 0.0
  %771 = vmatpush1.msra.mxu0 %v420
  %772 = vmatprep.subr.mxu0 0.0
  %773 = vmatpush1.msra.mxu0 %v421
  %774 = vmatprep.subr.mxu0 0.0
  %775 = vmatpush1.msra.mxu0 %v422
  %776 = vmatprep.subr.mxu0 0.0
  %777 = vmatpush1.msra.mxu0 0.0
  %778 = vmatprep.subr.mxu0 0.0
  %779 = vmatpush1.msra.mxu0 0.0
  %780 = vmatprep.subr.mxu0 0.0
  %781 = vmatpush1.msra.mxu0 0.0
  %782 = vmatprep.subr.mxu0 0.0
  %783 = vmatpush1.msra.mxu0 0.0
  %784 = vmatprep.subr.mxu0 0.0
  %785 = vmatpush1.msra.mxu0 0.0
  %786 = vmatprep.subr.mxu0 0.0
  %787 = vmatpush1.msra.mxu0 0.0
  %788 = vmatprep.subr.mxu0 0.0
  %789 = vmatpush1.msra.mxu0 0.0
  %790 = vmatprep.subr.mxu0 0.0
  %791 = vmatpush1.msra.mxu0 0.0
  %792 = vmatprep.subr.mxu0 0.0
  %793 = vmatpush1.msra.mxu0 0.0
  %794 = vmatprep.subr.mxu0 0.0
  %795 = vmatpush1.msra.mxu0 0.0
  %796 = vmatprep.subr.mxu0 0.0
  %797 = vmatpush1.msra.mxu0 0.0
  %798 = vmatprep.subr.mxu0 0.0
  %799 = vmatpush1.msra.mxu0 0.0
  %800 = vmatprep.subr.mxu0 0.0
  %801 = vmatpush1.msra.mxu0 0.0
  %802 = vmatprep.subr.mxu0 0.0
  %803 = vmatpush1.msra.mxu0 0.0
  %804 = vmatprep.subr.mxu0 0.0
  %805 = vmatpush1.msra.mxu0 0.0
  %806 = vmatprep.subr.mxu0 0.0
  %807 = vmatpush1.msra.mxu0 0.0
  %808 = vmatprep.subr.mxu0 0.0
  %809 = vmatpush1.msra.mxu0 0.0
  %810 = vmatprep.subr.mxu0 0.0
  %811 = vmatpush1.msra.mxu0 0.0
  %812 = vmatprep.subr.mxu0 0.0
  %813 = vmatpush1.msra.mxu0 0.0
  %814 = vmatprep.subr.mxu0 0.0
  %815 = vmatpush1.msra.mxu0 0.0
  %816 = vmatprep.subr.mxu0 0.0
  %817 = vmatpush1.msra.mxu0 0.0
  %818 = vmatprep.subr.mxu0 0.0
  %819 = vmatpush1.msra.mxu0 0.0
  %820 = vmatprep.subr.mxu0 0.0
  %821 = vmatpush1.msra.mxu0 0.0
  %822 = vmatprep.subr.mxu0 0.0
  %823 = vmatpush1.msra.mxu0 0.0
  %824 = vmatprep.mubr.f32.mxu0 0.0
  %825 = vmatmul.mubr.f32.gmra.mrb[0].mxu0 %v746
  %v826 = vpop.f32.mrb[0].mxu0
  %v827 = vadd.f32 0.0, %v826
  %v828 = vpop.f32.mrb[0].mxu0
  %829 = vmatprep.mubr.f32.mxu0 0.0
  %830 = vmatmul.mubr.f32.gmra.mrb[0].mxu0 %v748
  %v831 = vpop.f32.mrb[0].mxu0
  %v832 = vadd.f32 0.0, %v831
  %v833 = vpop.f32.mrb[0].mxu0
  %834 = vmatprep.mubr.f32.mxu0 0.0
  %835 = vmatmul.mubr.f32.gmra.mrb[0].mxu0 %v750
  %v836 = vpop.f32.mrb[0].mxu0
  %v837 = vadd.f32 0.0, %v836
  %v838 = vpop.f32.mrb[0].mxu0
  %839 = vmatprep.mubr.f32.mxu0 0.0
  %840 = vmatmul.mubr.f32.gmra.mrb[0].mxu0 %v752
  %v841 = vpop.f32.mrb[0].mxu0
  %v842 = vadd.f32 0.0, %v841
  %v843 = vpop.f32.mrb[0].mxu0
  %844 = vmatprep.mubr.f32.mxu0 0.0
  %845 = vmatmul.mubr.f32.gmra.mrb[0].mxu0 %v754
  %v846 = vpop.f32.mrb[0].mxu0
  %v847 = vadd.f32 0.0, %v846
  %v848 = vpop.f32.mrb[0].mxu0
  %849 = vmatprep.mubr.f32.mxu0 0.0
  %850 = vmatmul.mubr.f32.gmra.mrb[0].mxu0 %v756
  %v851 = vpop.f32.mrb[0].mxu0
  %v852 = vadd.f32 0.0, %v851
  %v853 = vpop.f32.mrb[0].mxu0
  %854 = vmatprep.mubr.f32.mxu0 0.0
  %855 = vmatmul.mubr.f32.gmra.mrb[0].mxu0 %v758
  %v856 = vpop.f32.mrb[0].mxu0
  %v857 = vadd.f32 0.0, %v856
  %v858 = vpop.f32.mrb[0].mxu0
  %859 = vdwg.mxu0
  %v860 = vcombine.low %v438, %v446
  %v861 = vcombine.low %v445, %v447
  %v863 = vunpack.c.l.s4 1983009808
  %v864 = vunpack.c.0.s8 %v863
  %v865 = vlaneseq
  %v866 = vshrl.u32 %v865, 7
  %v867 = vsub.s32 %v864, %v866
  %v868 = vrot.slane %v860, %v867
  %v870 = vunpack.c.l.s4 1983009808
  %v871 = vunpack.c.0.s8 %v870
  %v872 = vlaneseq
  %v873 = vshrl.u32 %v872, 7
  %v874 = vsub.s32 %v871, %v873
  %v875 = vrot.slane %v861, %v874
  %v876 = vcombine.low %v868, %v875
  %v877 = vcombine.low %v455, %v463
  %v878 = vcombine.low %v462, %v464
  %v880 = vunpack.c.l.s4 1983009808
  %v881 = vunpack.c.0.s8 %v880
  %v882 = vlaneseq
  %v883 = vshrl.u32 %v882, 7
  %v884 = vsub.s32 %v881, %v883
  %v885 = vrot.slane %v877, %v884
  %v887 = vunpack.c.l.s4 1983009808
  %v888 = vunpack.c.0.s8 %v887
  %v889 = vlaneseq
  %v890 = vshrl.u32 %v889, 7
  %v891 = vsub.s32 %v888, %v890
  %v892 = vrot.slane %v878, %v891
  %v893 = vcombine.low %v885, %v892
  %v894 = vcombine.low %v472, %v480
  %v895 = vcombine.low %v479, %v481
  %v897 = vunpack.c.l.s4 1983009808
  %v898 = vunpack.c.0.s8 %v897
  %v899 = vlaneseq
  %v900 = vshrl.u32 %v899, 7
  %v901 = vsub.s32 %v898, %v900
  %v902 = vrot.slane %v894, %v901
  %v904 = vunpack.c.l.s4 1983009808
  %v905 = vunpack.c.0.s8 %v904
  %v906 = vlaneseq
  %v907 = vshrl.u32 %v906, 7
  %v908 = vsub.s32 %v905, %v907
  %v909 = vrot.slane %v895, %v908
  %v910 = vcombine.low %v902, %v909
  %v911 = vcombine.low %v488, %v497
  %v912 = vcombine.low %v505, %v504
  %v914 = vunpack.c.l.s4 1983009808
  %v915 = vunpack.c.0.s8 %v914
  %v916 = vlaneseq
  %v917 = vshrl.u32 %v916, 7
  %v918 = vsub.s32 %v915, %v917
  %v919 = vrot.slane %v911, %v918
  %v921 = vunpack.c.l.s4 1983009808
  %v922 = vunpack.c.0.s8 %v921
  %v923 = vlaneseq
  %v924 = vshrl.u32 %v923, 7
  %v925 = vsub.s32 %v922, %v924
  %v926 = vrot.slane %v912, %v925
  %v927 = vcombine.low %v919, %v926
  %v928 = vcombine.low %v506, %v514
  %v929 = vcombine.low %v522, %v521
  %v931 = vunpack.c.l.s4 1983009808
  %v932 = vunpack.c.0.s8 %v931
  %v933 = vlaneseq
  %v934 = vshrl.u32 %v933, 7
  %v935 = vsub.s32 %v932, %v934
  %v936 = vrot.slane %v928, %v935
  %v938 = vunpack.c.l.s4 1983009808
  %v939 = vunpack.c.0.s8 %v938
  %v940 = vlaneseq
  %v941 = vshrl.u32 %v940, 7
  %v942 = vsub.s32 %v939, %v941
  %v943 = vrot.slane %v929, %v942
  %v944 = vcombine.low %v936, %v943
  %v945 = vcombine.low %v523, %v531
  %v946 = vcombine.low %v539, %v538
  %v948 = vunpack.c.l.s4 1983009808
  %v949 = vunpack.c.0.s8 %v948
  %v950 = vlaneseq
  %v951 = vshrl.u32 %v950, 7
  %v952 = vsub.s32 %v949, %v951
  %v953 = vrot.slane %v945, %v952
  %v955 = vunpack.c.l.s4 1983009808
  %v956 = vunpack.c.0.s8 %v955
  %v957 = vlaneseq
  %v958 = vshrl.u32 %v957, 7
  %v959 = vsub.s32 %v956, %v958
  %v960 = vrot.slane %v946, %v959
  %v961 = vcombine.low %v953, %v960
  %v962 = vcombine.low %v540, %v547
  %v964 = vunpack.c.l.s4 1983009808
  %v965 = vunpack.c.0.s8 %v964
  %v966 = vlaneseq
  %v967 = vshrl.u32 %v966, 7
  %v968 = vsub.s32 %v965, %v967
  %v969 = vrot.slane %v962, %v968
  %v970 = vsel %vm295, %v876, 0
  %v972 = vsel %vm295, %v893, 0
  %v974 = vsel %vm295, %v910, 0
  %v976 = vsel %vm295, %v927, 0
  %v978 = vsel %vm295, %v944, 0
  %v980 = vsel %vm295, %v961, 0
  %v982 = vsel %vm295, %v969, 0
  %984 = vmatprep.subr.mxu0 0.0
  %985 = vmatpush1.msra.mxu0 %v406
  %986 = vmatprep.subr.mxu0 0.0
  %987 = vmatpush1.msra.mxu0 %v407
  %988 = vmatprep.subr.mxu0 0.0
  %989 = vmatpush1.msra.mxu0 %v408
  %990 = vmatprep.subr.mxu0 0.0
  %991 = vmatpush1.msra.mxu0 %v409
  %992 = vmatprep.subr.mxu0 0.0
  %993 = vmatpush1.msra.mxu0 %v410
  %994 = vmatprep.subr.mxu0 0.0
  %995 = vmatpush1.msra.mxu0 %v411
  %996 = vmatprep.subr.mxu0 0.0
  %997 = vmatpush1.msra.mxu0 %v412
  %998 = vmatprep.subr.mxu0 0.0
  %999 = vmatpush1.msra.mxu0 %v413
  %1000 = vmatprep.subr.mxu0 0.0
  %1001 = vmatpush1.msra.mxu0 0.0
  %1002 = vmatprep.subr.mxu0 0.0
  %1003 = vmatpush1.msra.mxu0 0.0
  %1004 = vmatprep.subr.mxu0 0.0
  %1005 = vmatpush1.msra.mxu0 0.0
  %1006 = vmatprep.subr.mxu0 0.0
  %1007 = vmatpush1.msra.mxu0 0.0
  %1008 = vmatprep.subr.mxu0 0.0
  %1009 = vmatpush1.msra.mxu0 0.0
  %1010 = vmatprep.subr.mxu0 0.0
  %1011 = vmatpush1.msra.mxu0 0.0
  %1012 = vmatprep.subr.mxu0 0.0
  %1013 = vmatpush1.msra.mxu0 0.0
  %1014 = vmatprep.subr.mxu0 0.0
  %1015 = vmatpush1.msra.mxu0 0.0
  %1016 = vmatprep.subr.mxu0 0.0
  %1017 = vmatpush1.msra.mxu0 0.0
  %1018 = vmatprep.subr.mxu0 0.0
  %1019 = vmatpush1.msra.mxu0 0.0
  %1020 = vmatprep.subr.mxu0 0.0
  %1021 = vmatpush1.msra.mxu0 0.0
  %1022 = vmatprep.subr.mxu0 0.0
  %1023 = vmatpush1.msra.mxu0 0.0
  %1024 = vmatprep.subr.mxu0 0.0
  %1025 = vmatpush1.msra.mxu0 0.0
  %1026 = vmatprep.subr.mxu0 0.0
  %1027 = vmatpush1.msra.mxu0 0.0
  %1028 = vmatprep.subr.mxu0 0.0
  %1029 = vmatpush1.msra.mxu0 0.0
  %1030 = vmatprep.subr.mxu0 0.0
  %1031 = vmatpush1.msra.mxu0 0.0
  %1032 = vmatprep.subr.mxu0 0.0
  %1033 = vmatpush1.msra.mxu0 0.0
  %1034 = vmatprep.subr.mxu0 0.0
  %1035 = vmatpush1.msra.mxu0 0.0
  %1036 = vmatprep.subr.mxu0 0.0
  %1037 = vmatpush1.msra.mxu0 0.0
  %1038 = vmatprep.subr.mxu0 0.0
  %1039 = vmatpush1.msra.mxu0 0.0
  %1040 = vmatprep.subr.mxu0 0.0
  %1041 = vmatpush1.msra.mxu0 0.0
  %1042 = vmatprep.subr.mxu0 0.0
  %1043 = vmatpush1.msra.mxu0 0.0
  %1044 = vmatprep.subr.mxu0 0.0
  %1045 = vmatpush1.msra.mxu0 0.0
  %1046 = vmatprep.subr.mxu0 0.0
  %1047 = vmatpush1.msra.mxu0 0.0
  %1048 = vmatprep.mubr.f32.mxu0 0.0
  %1049 = vmatmul.mubr.f32.gmra.mrb[0].mxu0 %v970
  %v1050 = vpop.f32.mrb[0].mxu0
  %v1051 = vadd.f32 %v827, %v1050
  %v1052 = vpop.f32.mrb[0].mxu0
  %1053 = vmatprep.mubr.f32.mxu0 0.0
  %1054 = vmatmul.mubr.f32.gmra.mrb[0].mxu0 %v972
  %v1055 = vpop.f32.mrb[0].mxu0
  %v1056 = vadd.f32 %v832, %v1055
  %v1057 = vpop.f32.mrb[0].mxu0
  %1058 = vmatprep.mubr.f32.mxu0 0.0
  %1059 = vmatmul.mubr.f32.gmra.mrb[0].mxu0 %v974
  %v1060 = vpop.f32.mrb[0].mxu0
  %v1061 = vadd.f32 %v837, %v1060
  %v1062 = vpop.f32.mrb[0].mxu0
  %1063 = vmatprep.mubr.f32.mxu0 0.0
  %1064 = vmatmul.mubr.f32.gmra.mrb[0].mxu0 %v976
  %v1065 = vpop.f32.mrb[0].mxu0
  %v1066 = vadd.f32 %v842, %v1065
  %v1067 = vpop.f32.mrb[0].mxu0
  %1068 = vmatprep.mubr.f32.mxu0 0.0
  %1069 = vmatmul.mubr.f32.gmra.mrb[0].mxu0 %v978
  %v1070 = vpop.f32.mrb[0].mxu0
  %v1071 = vadd.f32 %v847, %v1070
  %v1072 = vpop.f32.mrb[0].mxu0
  %1073 = vmatprep.mubr.f32.mxu0 0.0
  %1074 = vmatmul.mubr.f32.gmra.mrb[0].mxu0 %v980
  %v1075 = vpop.f32.mrb[0].mxu0
  %v1076 = vadd.f32 %v852, %v1075
  %v1077 = vpop.f32.mrb[0].mxu0
  %1078 = vmatprep.mubr.f32.mxu0 0.0
  %1079 = vmatmul.mubr.f32.gmra.mrb[0].mxu0 %v982
  %v1080 = vpop.f32.mrb[0].mxu0
  %v1081 = vadd.f32 %v857, %v1080
  %v1082 = vpop.f32.mrb[0].mxu0
  %1083 = vdwg.mxu0
  %v1091 = vcombine.high %v1051, %v1051
  %v1093 = vunpack.c.l.s4 1983009808
  %v1094 = vunpack.c.0.s8 %v1093
  %v1095 = vlaneseq
  %v1096 = vshrl.u32 %v1095, 7
  %v1097 = vsub.s32 %v1094, %v1096
  %v1098 = vrot.slane %v1051, %v1097
  %v1100 = vunpack.c.l.s4 1983009808
  %v1101 = vunpack.c.0.s8 %v1100
  %v1102 = vlaneseq
  %v1103 = vshrl.u32 %v1102, 7
  %v1104 = vsub.s32 %v1101, %v1103
  %v1105 = vrot.slane %v1091, %v1104
  %v1106 = vcombine.high %v1098, %v1098
  %v1107 = vcombine.high %v1105, %v1105
  %v1108 = vcombine.high %v1056, %v1056
  %v1110 = vunpack.c.l.s4 1983009808
  %v1111 = vunpack.c.0.s8 %v1110
  %v1112 = vlaneseq
  %v1113 = vshrl.u32 %v1112, 7
  %v1114 = vsub.s32 %v1111, %v1113
  %v1115 = vrot.slane %v1056, %v1114
  %v1117 = vunpack.c.l.s4 1983009808
  %v1118 = vunpack.c.0.s8 %v1117
  %v1119 = vlaneseq
  %v1120 = vshrl.u32 %v1119, 7
  %v1121 = vsub.s32 %v1118, %v1120
  %v1122 = vrot.slane %v1108, %v1121
  %v1123 = vcombine.high %v1115, %v1115
  %v1124 = vcombine.high %v1122, %v1122
  %v1125 = vcombine.high %v1061, %v1061
  %v1127 = vunpack.c.l.s4 1983009808
  %v1128 = vunpack.c.0.s8 %v1127
  %v1129 = vlaneseq
  %v1130 = vshrl.u32 %v1129, 7
  %v1131 = vsub.s32 %v1128, %v1130
  %v1132 = vrot.slane %v1061, %v1131
  %v1134 = vunpack.c.l.s4 1983009808
  %v1135 = vunpack.c.0.s8 %v1134
  %v1136 = vlaneseq
  %v1137 = vshrl.u32 %v1136, 7
  %v1138 = vsub.s32 %v1135, %v1137
  %v1139 = vrot.slane %v1125, %v1138
  %v1140 = vcombine.high %v1132, %v1132
  %v1141 = vcombine.high %v1139, %v1139
  %v1142 = vcombine.high %v1066, %v1066
  %v1144 = vunpack.c.l.s4 1983009808
  %v1145 = vunpack.c.0.s8 %v1144
  %v1146 = vlaneseq
  %v1147 = vshrl.u32 %v1146, 7
  %v1148 = vsub.s32 %v1145, %v1147
  %v1149 = vrot.slane %v1066, %v1148
  %v1151 = vunpack.c.l.s4 1983009808
  %v1152 = vunpack.c.0.s8 %v1151
  %v1153 = vlaneseq
  %v1154 = vshrl.u32 %v1153, 7
  %v1155 = vsub.s32 %v1152, %v1154
  %v1156 = vrot.slane %v1142, %v1155
  %v1157 = vcombine.high %v1149, %v1149
  %v1158 = vcombine.high %v1156, %v1156
  %v1159 = vcombine.high %v1071, %v1071
  %v1161 = vunpack.c.l.s4 1983009808
  %v1162 = vunpack.c.0.s8 %v1161
  %v1163 = vlaneseq
  %v1164 = vshrl.u32 %v1163, 7
  %v1165 = vsub.s32 %v1162, %v1164
  %v1166 = vrot.slane %v1071, %v1165
  %v1168 = vunpack.c.l.s4 1983009808
  %v1169 = vunpack.c.0.s8 %v1168
  %v1170 = vlaneseq
  %v1171 = vshrl.u32 %v1170, 7
  %v1172 = vsub.s32 %v1169, %v1171
  %v1173 = vrot.slane %v1159, %v1172
  %v1174 = vcombine.high %v1166, %v1166
  %v1175 = vcombine.high %v1173, %v1173
  %v1176 = vcombine.high %v1076, %v1076
  %v1178 = vunpack.c.l.s4 1983009808
  %v1179 = vunpack.c.0.s8 %v1178
  %v1180 = vlaneseq
  %v1181 = vshrl.u32 %v1180, 7
  %v1182 = vsub.s32 %v1179, %v1181
  %v1183 = vrot.slane %v1076, %v1182
  %v1185 = vunpack.c.l.s4 1983009808
  %v1186 = vunpack.c.0.s8 %v1185
  %v1187 = vlaneseq
  %v1188 = vshrl.u32 %v1187, 7
  %v1189 = vsub.s32 %v1186, %v1188
  %v1190 = vrot.slane %v1176, %v1189
  %v1191 = vcombine.high %v1183, %v1183
  %v1192 = vcombine.high %v1190, %v1190
  %v1194 = vunpack.c.l.s4 1983009808
  %v1195 = vunpack.c.0.s8 %v1194
  %v1196 = vlaneseq
  %v1197 = vshrl.u32 %v1196, 7
  %v1198 = vsub.s32 %v1195, %v1197
  %v1199 = vrot.slane %v1081, %v1198
  %v1200 = vcombine.high %v1199, %v1199
  %s1227 = scalar_lea.vmem %s5, 128
  %v1228 = vld [vmem:[%s1227] sm:$0xff]
  %v1229 = vld [vmem:[%s1227 + $0x8] sm:$0xff]
  %v1230 = vld [vmem:[%s1227 + $0x10] sm:$0xff]
  %v1231 = vld [vmem:[%s1227 + $0x18] sm:$0xff]
  %v1232 = vld [vmem:[%s1227 + $0x20] sm:$0xff]
  %v1233 = vld [vmem:[%s1227 + $0x28] sm:$0xff]
  %v1234 = vld [vmem:[%s1227 + $0x30] sm:$0xff]
  %v1235 = vld [vmem:[%s1227 + $0x38] sm:$0xff]
  %v1236 = vcombine.low %v446, %v445
  %v1237 = vcombine.low %v447, %v455
  %v1239 = vunpack.c.l.s4 1983009808
  %v1240 = vunpack.c.0.s8 %v1239
  %v1241 = vlaneseq
  %v1242 = vshrl.u32 %v1241, 7
  %v1243 = vsub.s32 %v1240, %v1242
  %v1244 = vrot.slane %v1236, %v1243
  %v1246 = vunpack.c.l.s4 1983009808
  %v1247 = vunpack.c.0.s8 %v1246
  %v1248 = vlaneseq
  %v1249 = vshrl.u32 %v1248, 7
  %v1250 = vsub.s32 %v1247, %v1249
  %v1251 = vrot.slane %v1237, %v1250
  %v1252 = vcombine.low %v1244, %v1251
  %v1253 = vcombine.low %v463, %v462
  %v1254 = vcombine.low %v464, %v472
  %v1256 = vunpack.c.l.s4 1983009808
  %v1257 = vunpack.c.0.s8 %v1256
  %v1258 = vlaneseq
  %v1259 = vshrl.u32 %v1258, 7
  %v1260 = vsub.s32 %v1257, %v1259
  %v1261 = vrot.slane %v1253, %v1260
  %v1263 = vunpack.c.l.s4 1983009808
  %v1264 = vunpack.c.0.s8 %v1263
  %v1265 = vlaneseq
  %v1266 = vshrl.u32 %v1265, 7
  %v1267 = vsub.s32 %v1264, %v1266
  %v1268 = vrot.slane %v1254, %v1267
  %v1269 = vcombine.low %v1261, %v1268
  %v1270 = vcombine.low %v480, %v479
  %v1271 = vcombine.low %v481, %v488
  %v1273 = vunpack.c.l.s4 1983009808
  %v1274 = vunpack.c.0.s8 %v1273
  %v1275 = vlaneseq
  %v1276 = vshrl.u32 %v1275, 7
  %v1277 = vsub.s32 %v1274, %v1276
  %v1278 = vrot.slane %v1270, %v1277
  %v1280 = vunpack.c.l.s4 1983009808
  %v1281 = vunpack.c.0.s8 %v1280
  %v1282 = vlaneseq
  %v1283 = vshrl.u32 %v1282, 7
  %v1284 = vsub.s32 %v1281, %v1283
  %v1285 = vrot.slane %v1271, %v1284
  %v1286 = vcombine.low %v1278, %v1285
  %v1287 = vcombine.low %v489, %v505
  %v1288 = vcombine.low %v504, %v506
  %v1290 = vunpack.c.l.s4 1983009808
  %v1291 = vunpack.c.0.s8 %v1290
  %v1292 = vlaneseq
  %v1293 = vshrl.u32 %v1292, 7
  %v1294 = vsub.s32 %v1291, %v1293
  %v1295 = vrot.slane %v1287, %v1294
  %v1297 = vunpack.c.l.s4 1983009808
  %v1298 = vunpack.c.0.s8 %v1297
  %v1299 = vlaneseq
  %v1300 = vshrl.u32 %v1299, 7
  %v1301 = vsub.s32 %v1298, %v1300
  %v1302 = vrot.slane %v1288, %v1301
  %v1303 = vcombine.low %v1295, %v1302
  %v1304 = vcombine.low %v514, %v522
  %v1305 = vcombine.low %v521, %v523
  %v1307 = vunpack.c.l.s4 1983009808
  %v1308 = vunpack.c.0.s8 %v1307
  %v1309 = vlaneseq
  %v1310 = vshrl.u32 %v1309, 7
  %v1311 = vsub.s32 %v1308, %v1310
  %v1312 = vrot.slane %v1304, %v1311
  %v1314 = vunpack.c.l.s4 1983009808
  %v1315 = vunpack.c.0.s8 %v1314
  %v1316 = vlaneseq
  %v1317 = vshrl.u32 %v1316, 7
  %v1318 = vsub.s32 %v1315, %v1317
  %v1319 = vrot.slane %v1305, %v1318
  %v1320 = vcombine.low %v1312, %v1319
  %v1321 = vcombine.low %v531, %v539
  %v1322 = vcombine.low %v538, %v540
  %v1324 = vunpack.c.l.s4 1983009808
  %v1325 = vunpack.c.0.s8 %v1324
  %v1326 = vlaneseq
  %v1327 = vshrl.u32 %v1326, 7
  %v1328 = vsub.s32 %v1325, %v1327
  %v1329 = vrot.slane %v1321, %v1328
  %v1331 = vunpack.c.l.s4 1983009808
  %v1332 = vunpack.c.0.s8 %v1331
  %v1333 = vlaneseq
  %v1334 = vshrl.u32 %v1333, 7
  %v1335 = vsub.s32 %v1332, %v1334
  %v1336 = vrot.slane %v1322, %v1335
  %v1337 = vcombine.low %v1329, %v1336
  %v1338 = vcombine.low %v547, %v548
  %v1340 = vunpack.c.l.s4 1983009808
  %v1341 = vunpack.c.0.s8 %v1340
  %v1342 = vlaneseq
  %v1343 = vshrl.u32 %v1342, 7
  %v1344 = vsub.s32 %v1341, %v1343
  %v1345 = vrot.slane %v1338, %v1344
  %v1346 = vsel %vm295, %v1252, 0
  %v1348 = vsel %vm295, %v1269, 0
  %v1350 = vsel %vm295, %v1286, 0
  %v1352 = vsel %vm295, %v1303, 0
  %v1354 = vsel %vm295, %v1320, 0
  %v1356 = vsel %vm295, %v1337, 0
  %v1358 = vsel %vm295, %v1345, 0
  %1360 = vmatprep.subr.mxu0 0.0
  %1361 = vmatpush1.msra.mxu0 %v1228
  %1362 = vmatprep.subr.mxu0 0.0
  %1363 = vmatpush1.msra.mxu0 %v1229
  %1364 = vmatprep.subr.mxu0 0.0
  %1365 = vmatpush1.msra.mxu0 %v1230
  %1366 = vmatprep.subr.mxu0 0.0
  %1367 = vmatpush1.msra.mxu0 %v1231
  %1368 = vmatprep.subr.mxu0 0.0
  %1369 = vmatpush1.msra.mxu0 %v1232
  %1370 = vmatprep.subr.mxu0 0.0
  %1371 = vmatpush1.msra.mxu0 %v1233
  %1372 = vmatprep.subr.mxu0 0.0
  %1373 = vmatpush1.msra.mxu0 %v1234
  %1374 = vmatprep.subr.mxu0 0.0
  %1375 = vmatpush1.msra.mxu0 %v1235
  %1376 = vmatprep.subr.mxu0 0.0
  %1377 = vmatpush1.msra.mxu0 0.0
  %1378 = vmatprep.subr.mxu0 0.0
  %1379 = vmatpush1.msra.mxu0 0.0
  %1380 = vmatprep.subr.mxu0 0.0
  %1381 = vmatpush1.msra.mxu0 0.0
  %1382 = vmatprep.subr.mxu0 0.0
  %1383 = vmatpush1.msra.mxu0 0.0
  %1384 = vmatprep.subr.mxu0 0.0
  %1385 = vmatpush1.msra.mxu0 0.0
  %1386 = vmatprep.subr.mxu0 0.0
  %1387 = vmatpush1.msra.mxu0 0.0
  %1388 = vmatprep.subr.mxu0 0.0
  %1389 = vmatpush1.msra.mxu0 0.0
  %1390 = vmatprep.subr.mxu0 0.0
  %1391 = vmatpush1.msra.mxu0 0.0
  %1392 = vmatprep.subr.mxu0 0.0
  %1393 = vmatpush1.msra.mxu0 0.0
  %1394 = vmatprep.subr.mxu0 0.0
  %1395 = vmatpush1.msra.mxu0 0.0
  %1396 = vmatprep.subr.mxu0 0.0
  %1397 = vmatpush1.msra.mxu0 0.0
  %1398 = vmatprep.subr.mxu0 0.0
  %1399 = vmatpush1.msra.mxu0 0.0
  %1400 = vmatprep.subr.mxu0 0.0
  %1401 = vmatpush1.msra.mxu0 0.0
  %1402 = vmatprep.subr.mxu0 0.0
  %1403 = vmatpush1.msra.mxu0 0.0
  %1404 = vmatprep.subr.mxu0 0.0
  %1405 = vmatpush1.msra.mxu0 0.0
  %1406 = vmatprep.subr.mxu0 0.0
  %1407 = vmatpush1.msra.mxu0 0.0
  %1408 = vmatprep.subr.mxu0 0.0
  %1409 = vmatpush1.msra.mxu0 0.0
  %1410 = vmatprep.subr.mxu0 0.0
  %1411 = vmatpush1.msra.mxu0 0.0
  %1412 = vmatprep.subr.mxu0 0.0
  %1413 = vmatpush1.msra.mxu0 0.0
  %1414 = vmatprep.subr.mxu0 0.0
  %1415 = vmatpush1.msra.mxu0 0.0
  %1416 = vmatprep.subr.mxu0 0.0
  %1417 = vmatpush1.msra.mxu0 0.0
  %1418 = vmatprep.subr.mxu0 0.0
  %1419 = vmatpush1.msra.mxu0 0.0
  %1420 = vmatprep.subr.mxu0 0.0
  %1421 = vmatpush1.msra.mxu0 0.0
  %1422 = vmatprep.subr.mxu0 0.0
  %1423 = vmatpush1.msra.mxu0 0.0
  %1424 = vmatprep.mubr.f32.mxu0 0.0
  %1425 = vmatmul.mubr.f32.gmra.mrb[0].mxu0 %v1346
  %v1426 = vpop.f32.mrb[0].mxu0
  %v1427 = vadd.f32 0.0, %v1426
  %v1428 = vpop.f32.mrb[0].mxu0
  %1429 = vmatprep.mubr.f32.mxu0 0.0
  %1430 = vmatmul.mubr.f32.gmra.mrb[0].mxu0 %v1348
  %v1431 = vpop.f32.mrb[0].mxu0
  %v1432 = vadd.f32 0.0, %v1431
  %v1433 = vpop.f32.mrb[0].mxu0
  %1434 = vmatprep.mubr.f32.mxu0 0.0
  %1435 = vmatmul.mubr.f32.gmra.mrb[0].mxu0 %v1350
  %v1436 = vpop.f32.mrb[0].mxu0
  %v1437 = vadd.f32 0.0, %v1436
  %v1438 = vpop.f32.mrb[0].mxu0
  %1439 = vmatprep.mubr.f32.mxu0 0.0
  %1440 = vmatmul.mubr.f32.gmra.mrb[0].mxu0 %v1352
  %v1441 = vpop.f32.mrb[0].mxu0
  %v1442 = vadd.f32 0.0, %v1441
  %v1443 = vpop.f32.mrb[0].mxu0
  %1444 = vmatprep.mubr.f32.mxu0 0.0
  %1445 = vmatmul.mubr.f32.gmra.mrb[0].mxu0 %v1354
  %v1446 = vpop.f32.mrb[0].mxu0
  %v1447 = vadd.f32 0.0, %v1446
  %v1448 = vpop.f32.mrb[0].mxu0
  %1449 = vmatprep.mubr.f32.mxu0 0.0
  %1450 = vmatmul.mubr.f32.gmra.mrb[0].mxu0 %v1356
  %v1451 = vpop.f32.mrb[0].mxu0
  %v1452 = vadd.f32 0.0, %v1451
  %v1453 = vpop.f32.mrb[0].mxu0
  %1454 = vmatprep.mubr.f32.mxu0 0.0
  %1455 = vmatmul.mubr.f32.gmra.mrb[0].mxu0 %v1358
  %v1456 = vpop.f32.mrb[0].mxu0
  %v1457 = vadd.f32 0.0, %v1456
  %v1458 = vpop.f32.mrb[0].mxu0
  %1459 = vdwg.mxu0
  %v1467 = vcombine.high %v1427, %v1427
  %v1469 = vunpack.c.l.s4 1983009808
  %v1470 = vunpack.c.0.s8 %v1469
  %v1471 = vlaneseq
  %v1472 = vshrl.u32 %v1471, 7
  %v1473 = vsub.s32 %v1470, %v1472
  %v1474 = vrot.slane %v1427, %v1473
  %v1476 = vunpack.c.l.s4 1983009808
  %v1477 = vunpack.c.0.s8 %v1476
  %v1478 = vlaneseq
  %v1479 = vshrl.u32 %v1478, 7
  %v1480 = vsub.s32 %v1477, %v1479
  %v1481 = vrot.slane %v1467, %v1480
  %v1482 = vcombine.high %v1474, %v1474
  %v1483 = vcombine.high %v1481, %v1481
  %v1484 = vcombine.high %v1432, %v1432
  %v1486 = vunpack.c.l.s4 1983009808
  %v1487 = vunpack.c.0.s8 %v1486
  %v1488 = vlaneseq
  %v1489 = vshrl.u32 %v1488, 7
  %v1490 = vsub.s32 %v1487, %v1489
  %v1491 = vrot.slane %v1432, %v1490
  %v1493 = vunpack.c.l.s4 1983009808
  %v1494 = vunpack.c.0.s8 %v1493
  %v1495 = vlaneseq
  %v1496 = vshrl.u32 %v1495, 7
  %v1497 = vsub.s32 %v1494, %v1496
  %v1498 = vrot.slane %v1484, %v1497
  %v1499 = vcombine.high %v1491, %v1491
  %v1500 = vcombine.high %v1498, %v1498
  %v1501 = vcombine.high %v1437, %v1437
  %v1503 = vunpack.c.l.s4 1983009808
  %v1504 = vunpack.c.0.s8 %v1503
  %v1505 = vlaneseq
  %v1506 = vshrl.u32 %v1505, 7
  %v1507 = vsub.s32 %v1504, %v1506
  %v1508 = vrot.slane %v1437, %v1507
  %v1510 = vunpack.c.l.s4 1983009808
  %v1511 = vunpack.c.0.s8 %v1510
  %v1512 = vlaneseq
  %v1513 = vshrl.u32 %v1512, 7
  %v1514 = vsub.s32 %v1511, %v1513
  %v1515 = vrot.slane %v1501, %v1514
  %v1516 = vcombine.high %v1508, %v1508
  %v1517 = vcombine.high %v1515, %v1515
  %v1518 = vcombine.high %v1442, %v1442
  %v1520 = vunpack.c.l.s4 1983009808
  %v1521 = vunpack.c.0.s8 %v1520
  %v1522 = vlaneseq
  %v1523 = vshrl.u32 %v1522, 7
  %v1524 = vsub.s32 %v1521, %v1523
  %v1525 = vrot.slane %v1442, %v1524
  %v1527 = vunpack.c.l.s4 1983009808
  %v1528 = vunpack.c.0.s8 %v1527
  %v1529 = vlaneseq
  %v1530 = vshrl.u32 %v1529, 7
  %v1531 = vsub.s32 %v1528, %v1530
  %v1532 = vrot.slane %v1518, %v1531
  %v1533 = vcombine.high %v1525, %v1525
  %v1534 = vcombine.high %v1532, %v1532
  %v1535 = vcombine.high %v1447, %v1447
  %v1537 = vunpack.c.l.s4 1983009808
  %v1538 = vunpack.c.0.s8 %v1537
  %v1539 = vlaneseq
  %v1540 = vshrl.u32 %v1539, 7
  %v1541 = vsub.s32 %v1538, %v1540
  %v1542 = vrot.slane %v1447, %v1541
  %v1544 = vunpack.c.l.s4 1983009808
  %v1545 = vunpack.c.0.s8 %v1544
  %v1546 = vlaneseq
  %v1547 = vshrl.u32 %v1546, 7
  %v1548 = vsub.s32 %v1545, %v1547
  %v1549 = vrot.slane %v1535, %v1548
  %v1550 = vcombine.high %v1542, %v1542
  %v1551 = vcombine.high %v1549, %v1549
  %v1552 = vcombine.high %v1452, %v1452
  %v1554 = vunpack.c.l.s4 1983009808
  %v1555 = vunpack.c.0.s8 %v1554
  %v1556 = vlaneseq
  %v1557 = vshrl.u32 %v1556, 7
  %v1558 = vsub.s32 %v1555, %v1557
  %v1559 = vrot.slane %v1452, %v1558
  %v1561 = vunpack.c.l.s4 1983009808
  %v1562 = vunpack.c.0.s8 %v1561
  %v1563 = vlaneseq
  %v1564 = vshrl.u32 %v1563, 7
  %v1565 = vsub.s32 %v1562, %v1564
  %v1566 = vrot.slane %v1552, %v1565
  %v1567 = vcombine.high %v1559, %v1559
  %v1568 = vcombine.high %v1566, %v1566
  %v1570 = vunpack.c.l.s4 1983009808
  %v1571 = vunpack.c.0.s8 %v1570
  %v1572 = vlaneseq
  %v1573 = vshrl.u32 %v1572, 7
  %v1574 = vsub.s32 %v1571, %v1573
  %v1575 = vrot.slane %v1457, %v1574
  %v1576 = vcombine.high %v1575, %v1575
  %v1603 = vadd.f32 %v1098, %v1474
  %v1604 = vadd.f32 %v1106, %v1482
  %v1605 = vadd.f32 %v1105, %v1481
  %v1606 = vadd.f32 %v1107, %v1483
  %v1607 = vadd.f32 %v1115, %v1491
  %v1608 = vadd.f32 %v1123, %v1499
  %v1609 = vadd.f32 %v1122, %v1498
  %v1610 = vadd.f32 %v1124, %v1500
  %v1611 = vadd.f32 %v1132, %v1508
  %v1612 = vadd.f32 %v1140, %v1516
  %v1613 = vadd.f32 %v1139, %v1515
  %v1614 = vadd.f32 %v1141, %v1517
  %v1615 = vadd.f32 %v1149, %v1525
  %v1616 = vadd.f32 %v1157, %v1533
  %v1617 = vadd.f32 %v1156, %v1532
  %v1618 = vadd.f32 %v1158, %v1534
  %v1619 = vadd.f32 %v1166, %v1542
  %v1620 = vadd.f32 %v1174, %v1550
  %v1621 = vadd.f32 %v1173, %v1549
  %v1622 = vadd.f32 %v1175, %v1551
  %v1623 = vadd.f32 %v1183, %v1559
  %v1624 = vadd.f32 %v1191, %v1567
  %v1625 = vadd.f32 %v1190, %v1566
  %v1626 = vadd.f32 %v1192, %v1568
  %v1627 = vadd.f32 %v1199, %v1575
  %v1628 = vadd.f32 %v1200, %v1576
  %s1629 = scalar_lea.vmem %s5, 192
  %v1630 = vld [vmem:[%s1629] sm:$0xff]
  %v1631 = vld [vmem:[%s1629 + $0x8] sm:$0xff]
  %v1632 = vld [vmem:[%s1629 + $0x10] sm:$0xff]
  %v1633 = vld [vmem:[%s1629 + $0x18] sm:$0xff]
  %v1634 = vld [vmem:[%s1629 + $0x20] sm:$0xff]
  %v1635 = vld [vmem:[%s1629 + $0x28] sm:$0xff]
  %v1636 = vld [vmem:[%s1629 + $0x30] sm:$0xff]
  %v1637 = vld [vmem:[%s1629 + $0x38] sm:$0xff]
  %v1638 = vcombine.high %v401, %v401
  %v1640 = vunpack.c.l.s4 1983009808
  %v1641 = vunpack.c.0.s8 %v1640
  %v1642 = vlaneseq
  %v1643 = vshrl.u32 %v1642, 7
  %v1644 = vsub.s32 %v1641, %v1643
  %v1645 = vrot.slane %v1638, %v1644
  %v1646 = vcombine.high %v405, %v405
  %v1648 = vunpack.c.l.s4 1983009808
  %v1649 = vunpack.c.0.s8 %v1648
  %v1650 = vlaneseq
  %v1651 = vshrl.u32 %v1650, 7
  %v1652 = vsub.s32 %v1649, %v1651
  %v1653 = vrot.slane %v1646, %v1652
  %v1654 = vrot.slane %v594, 2
  %v1655 = vrot.slane %v1645, 7
  %v1656 = vsel %vm555, %v1654, %v1655
  %v1657 = vrot.slane %v634, 2
  %v1658 = vrot.slane %v1653, 7
  %v1659 = vsel %vm555, %v1657, %v1658
  %v1660 = vcombine.low %v562, %v565
  %v1661 = vcombine.low %v568, %v571
  %v1663 = vunpack.c.l.s4 1983009808
  %v1664 = vunpack.c.0.s8 %v1663
  %v1665 = vlaneseq
  %v1666 = vshrl.u32 %v1665, 7
  %v1667 = vsub.s32 %v1664, %v1666
  %v1668 = vrot.slane %v1660, %v1667
  %v1670 = vunpack.c.l.s4 1983009808
  %v1671 = vunpack.c.0.s8 %v1670
  %v1672 = vlaneseq
  %v1673 = vshrl.u32 %v1672, 7
  %v1674 = vsub.s32 %v1671, %v1673
  %v1675 = vrot.slane %v1661, %v1674
  %v1676 = vcombine.low %v1668, %v1675
  %v1677 = vcombine.low %v574, %v577
  %v1678 = vcombine.low %v580, %v583
  %v1680 = vunpack.c.l.s4 1983009808
  %v1681 = vunpack.c.0.s8 %v1680
  %v1682 = vlaneseq
  %v1683 = vshrl.u32 %v1682, 7
  %v1684 = vsub.s32 %v1681, %v1683
  %v1685 = vrot.slane %v1677, %v1684
  %v1687 = vunpack.c.l.s4 1983009808
  %v1688 = vunpack.c.0.s8 %v1687
  %v1689 = vlaneseq
  %v1690 = vshrl.u32 %v1689, 7
  %v1691 = vsub.s32 %v1688, %v1690
  %v1692 = vrot.slane %v1678, %v1691
  %v1693 = vcombine.low %v1685, %v1692
  %v1694 = vcombine.low %v586, %v589
  %v1695 = vcombine.low %v592, %v595
  %v1697 = vunpack.c.l.s4 1983009808
  %v1698 = vunpack.c.0.s8 %v1697
  %v1699 = vlaneseq
  %v1700 = vshrl.u32 %v1699, 7
  %v1701 = vsub.s32 %v1698, %v1700
  %v1702 = vrot.slane %v1694, %v1701
  %v1704 = vunpack.c.l.s4 1983009808
  %v1705 = vunpack.c.0.s8 %v1704
  %v1706 = vlaneseq
  %v1707 = vshrl.u32 %v1706, 7
  %v1708 = vsub.s32 %v1705, %v1707
  %v1709 = vrot.slane %v1695, %v1708
  %v1710 = vcombine.low %v1702, %v1709
  %v1711 = vcombine.low %v1656, %v602
  %v1712 = vcombine.low %v605, %v608
  %v1714 = vunpack.c.l.s4 1983009808
  %v1715 = vunpack.c.0.s8 %v1714
  %v1716 = vlaneseq
  %v1717 = vshrl.u32 %v1716, 7
  %v1718 = vsub.s32 %v1715, %v1717
  %v1719 = vrot.slane %v1711, %v1718
  %v1721 = vunpack.c.l.s4 1983009808
  %v1722 = vunpack.c.0.s8 %v1721
  %v1723 = vlaneseq
  %v1724 = vshrl.u32 %v1723, 7
  %v1725 = vsub.s32 %v1722, %v1724
  %v1726 = vrot.slane %v1712, %v1725
  %v1727 = vcombine.low %v1719, %v1726
  %v1728 = vcombine.low %v611, %v614
  %v1729 = vcombine.low %v617, %v620
  %v1731 = vunpack.c.l.s4 1983009808
  %v1732 = vunpack.c.0.s8 %v1731
  %v1733 = vlaneseq
  %v1734 = vshrl.u32 %v1733, 7
  %v1735 = vsub.s32 %v1732, %v1734
  %v1736 = vrot.slane %v1728, %v1735
  %v1738 = vunpack.c.l.s4 1983009808
  %v1739 = vunpack.c.0.s8 %v1738
  %v1740 = vlaneseq
  %v1741 = vshrl.u32 %v1740, 7
  %v1742 = vsub.s32 %v1739, %v1741
  %v1743 = vrot.slane %v1729, %v1742
  %v1744 = vcombine.low %v1736, %v1743
  %v1745 = vcombine.low %v623, %v626
  %v1746 = vcombine.low %v629, %v632
  %v1748 = vunpack.c.l.s4 1983009808
  %v1749 = vunpack.c.0.s8 %v1748
  %v1750 = vlaneseq
  %v1751 = vshrl.u32 %v1750, 7
  %v1752 = vsub.s32 %v1749, %v1751
  %v1753 = vrot.slane %v1745, %v1752
  %v1755 = vunpack.c.l.s4 1983009808
  %v1756 = vunpack.c.0.s8 %v1755
  %v1757 = vlaneseq
  %v1758 = vshrl.u32 %v1757, 7
  %v1759 = vsub.s32 %v1756, %v1758
  %v1760 = vrot.slane %v1746, %v1759
  %v1761 = vcombine.low %v1753, %v1760
  %v1762 = vcombine.low %v635, %v1659
  %v1764 = vunpack.c.l.s4 1983009808
  %v1765 = vunpack.c.0.s8 %v1764
  %v1766 = vlaneseq
  %v1767 = vshrl.u32 %v1766, 7
  %v1768 = vsub.s32 %v1765, %v1767
  %v1769 = vrot.slane %v1762, %v1768
  %v1770 = vsel %vm295, %v1676, 0
  %v1772 = vsel %vm295, %v1693, 0
  %v1774 = vsel %vm295, %v1710, 0
  %v1776 = vsel %vm295, %v1727, 0
  %v1778 = vsel %vm295, %v1744, 0
  %v1780 = vsel %vm295, %v1761, 0
  %v1782 = vsel %vm295, %v1769, 0
  %1784 = vmatprep.subr.mxu0 0.0
  %1785 = vmatpush1.msra.mxu0 %v1630
  %1786 = vmatprep.subr.mxu0 0.0
  %1787 = vmatpush1.msra.mxu0 %v1631
  %1788 = vmatprep.subr.mxu0 0.0
  %1789 = vmatpush1.msra.mxu0 %v1632
  %1790 = vmatprep.subr.mxu0 0.0
  %1791 = vmatpush1.msra.mxu0 %v1633
  %1792 = vmatprep.subr.mxu0 0.0
  %1793 = vmatpush1.msra.mxu0 %v1634
  %1794 = vmatprep.subr.mxu0 0.0
  %1795 = vmatpush1.msra.mxu0 %v1635
  %1796 = vmatprep.subr.mxu0 0.0
  %1797 = vmatpush1.msra.mxu0 %v1636
  %1798 = vmatprep.subr.mxu0 0.0
  %1799 = vmatpush1.msra.mxu0 %v1637
  %1800 = vmatprep.subr.mxu0 0.0
  %1801 = vmatpush1.msra.mxu0 0.0
  %1802 = vmatprep.subr.mxu0 0.0
  %1803 = vmatpush1.msra.mxu0 0.0
  %1804 = vmatprep.subr.mxu0 0.0
  %1805 = vmatpush1.msra.mxu0 0.0
  %1806 = vmatprep.subr.mxu0 0.0
  %1807 = vmatpush1.msra.mxu0 0.0
  %1808 = vmatprep.subr.mxu0 0.0
  %1809 = vmatpush1.msra.mxu0 0.0
  %1810 = vmatprep.subr.mxu0 0.0
  %1811 = vmatpush1.msra.mxu0 0.0
  %1812 = vmatprep.subr.mxu0 0.0
  %1813 = vmatpush1.msra.mxu0 0.0
  %1814 = vmatprep.subr.mxu0 0.0
  %1815 = vmatpush1.msra.mxu0 0.0
  %1816 = vmatprep.subr.mxu0 0.0
  %1817 = vmatpush1.msra.mxu0 0.0
  %1818 = vmatprep.subr.mxu0 0.0
  %1819 = vmatpush1.msra.mxu0 0.0
  %1820 = vmatprep.subr.mxu0 0.0
  %1821 = vmatpush1.msra.mxu0 0.0
  %1822 = vmatprep.subr.mxu0 0.0
  %1823 = vmatpush1.msra.mxu0 0.0
  %1824 = vmatprep.subr.mxu0 0.0
  %1825 = vmatpush1.msra.mxu0 0.0
  %1826 = vmatprep.subr.mxu0 0.0
  %1827 = vmatpush1.msra.mxu0 0.0
  %1828 = vmatprep.subr.mxu0 0.0
  %1829 = vmatpush1.msra.mxu0 0.0
  %1830 = vmatprep.subr.mxu0 0.0
  %1831 = vmatpush1.msra.mxu0 0.0
  %1832 = vmatprep.subr.mxu0 0.0
  %1833 = vmatpush1.msra.mxu0 0.0
  %1834 = vmatprep.subr.mxu0 0.0
  %1835 = vmatpush1.msra.mxu0 0.0
  %1836 = vmatprep.subr.mxu0 0.0
  %1837 = vmatpush1.msra.mxu0 0.0
  %1838 = vmatprep.subr.mxu0 0.0
  %1839 = vmatpush1.msra.mxu0 0.0
  %1840 = vmatprep.subr.mxu0 0.0
  %1841 = vmatpush1.msra.mxu0 0.0
  %1842 = vmatprep.subr.mxu0 0.0
  %1843 = vmatpush1.msra.mxu0 0.0
  %1844 = vmatprep.subr.mxu0 0.0
  %1845 = vmatpush1.msra.mxu0 0.0
  %1846 = vmatprep.subr.mxu0 0.0
  %1847 = vmatpush1.msra.mxu0 0.0
  %1848 = vmatprep.mubr.f32.mxu0 0.0
  %1849 = vmatmul.mubr.f32.gmra.mrb[0].mxu0 %v1770
  %v1850 = vpop.f32.mrb[0].mxu0
  %v1851 = vadd.f32 0.0, %v1850
  %v1852 = vpop.f32.mrb[0].mxu0
  %1853 = vmatprep.mubr.f32.mxu0 0.0
  %1854 = vmatmul.mubr.f32.gmra.mrb[0].mxu0 %v1772
  %v1855 = vpop.f32.mrb[0].mxu0
  %v1856 = vadd.f32 0.0, %v1855
  %v1857 = vpop.f32.mrb[0].mxu0
  %1858 = vmatprep.mubr.f32.mxu0 0.0
  %1859 = vmatmul.mubr.f32.gmra.mrb[0].mxu0 %v1774
  %v1860 = vpop.f32.mrb[0].mxu0
  %v1861 = vadd.f32 0.0, %v1860
  %v1862 = vpop.f32.mrb[0].mxu0
  %1863 = vmatprep.mubr.f32.mxu0 0.0
  %1864 = vmatmul.mubr.f32.gmra.mrb[0].mxu0 %v1776
  %v1865 = vpop.f32.mrb[0].mxu0
  %v1866 = vadd.f32 0.0, %v1865
  %v1867 = vpop.f32.mrb[0].mxu0
  %1868 = vmatprep.mubr.f32.mxu0 0.0
  %1869 = vmatmul.mubr.f32.gmra.mrb[0].mxu0 %v1778
  %v1870 = vpop.f32.mrb[0].mxu0
  %v1871 = vadd.f32 0.0, %v1870
  %v1872 = vpop.f32.mrb[0].mxu0
  %1873 = vmatprep.mubr.f32.mxu0 0.0
  %1874 = vmatmul.mubr.f32.gmra.mrb[0].mxu0 %v1780
  %v1875 = vpop.f32.mrb[0].mxu0
  %v1876 = vadd.f32 0.0, %v1875
  %v1877 = vpop.f32.mrb[0].mxu0
  %1878 = vmatprep.mubr.f32.mxu0 0.0
  %1879 = vmatmul.mubr.f32.gmra.mrb[0].mxu0 %v1782
  %v1880 = vpop.f32.mrb[0].mxu0
  %v1881 = vadd.f32 0.0, %v1880
  %v1882 = vpop.f32.mrb[0].mxu0
  %1883 = vdwg.mxu0
  %v1891 = vcombine.high %v1851, %v1851
  %v1893 = vunpack.c.l.s4 1983009808
  %v1894 = vunpack.c.0.s8 %v1893
  %v1895 = vlaneseq
  %v1896 = vshrl.u32 %v1895, 7
  %v1897 = vsub.s32 %v1894, %v1896
  %v1898 = vrot.slane %v1851, %v1897
  %v1900 = vunpack.c.l.s4 1983009808
  %v1901 = vunpack.c.0.s8 %v1900
  %v1902 = vlaneseq
  %v1903 = vshrl.u32 %v1902, 7
  %v1904 = vsub.s32 %v1901, %v1903
  %v1905 = vrot.slane %v1891, %v1904
  %v1906 = vcombine.high %v1898, %v1898
  %v1907 = vcombine.high %v1905, %v1905
  %v1908 = vcombine.high %v1856, %v1856
  %v1910 = vunpack.c.l.s4 1983009808
  %v1911 = vunpack.c.0.s8 %v1910
  %v1912 = vlaneseq
  %v1913 = vshrl.u32 %v1912, 7
  %v1914 = vsub.s32 %v1911, %v1913
  %v1915 = vrot.slane %v1856, %v1914
  %v1917 = vunpack.c.l.s4 1983009808
  %v1918 = vunpack.c.0.s8 %v1917
  %v1919 = vlaneseq
  %v1920 = vshrl.u32 %v1919, 7
  %v1921 = vsub.s32 %v1918, %v1920
  %v1922 = vrot.slane %v1908, %v1921
  %v1923 = vcombine.high %v1915, %v1915
  %v1924 = vcombine.high %v1922, %v1922
  %v1925 = vcombine.high %v1861, %v1861
  %v1927 = vunpack.c.l.s4 1983009808
  %v1928 = vunpack.c.0.s8 %v1927
  %v1929 = vlaneseq
  %v1930 = vshrl.u32 %v1929, 7
  %v1931 = vsub.s32 %v1928, %v1930
  %v1932 = vrot.slane %v1861, %v1931
  %v1934 = vunpack.c.l.s4 1983009808
  %v1935 = vunpack.c.0.s8 %v1934
  %v1936 = vlaneseq
  %v1937 = vshrl.u32 %v1936, 7
  %v1938 = vsub.s32 %v1935, %v1937
  %v1939 = vrot.slane %v1925, %v1938
  %v1940 = vcombine.high %v1932, %v1932
  %v1941 = vcombine.high %v1939, %v1939
  %v1942 = vcombine.high %v1866, %v1866
  %v1944 = vunpack.c.l.s4 1983009808
  %v1945 = vunpack.c.0.s8 %v1944
  %v1946 = vlaneseq
  %v1947 = vshrl.u32 %v1946, 7
  %v1948 = vsub.s32 %v1945, %v1947
  %v1949 = vrot.slane %v1866, %v1948
  %v1951 = vunpack.c.l.s4 1983009808
  %v1952 = vunpack.c.0.s8 %v1951
  %v1953 = vlaneseq
  %v1954 = vshrl.u32 %v1953, 7
  %v1955 = vsub.s32 %v1952, %v1954
  %v1956 = vrot.slane %v1942, %v1955
  %v1957 = vcombine.high %v1949, %v1949
  %v1958 = vcombine.high %v1956, %v1956
  %v1959 = vcombine.high %v1871, %v1871
  %v1961 = vunpack.c.l.s4 1983009808
  %v1962 = vunpack.c.0.s8 %v1961
  %v1963 = vlaneseq
  %v1964 = vshrl.u32 %v1963, 7
  %v1965 = vsub.s32 %v1962, %v1964
  %v1966 = vrot.slane %v1871, %v1965
  %v1968 = vunpack.c.l.s4 1983009808
  %v1969 = vunpack.c.0.s8 %v1968
  %v1970 = vlaneseq
  %v1971 = vshrl.u32 %v1970, 7
  %v1972 = vsub.s32 %v1969, %v1971
  %v1973 = vrot.slane %v1959, %v1972
  %v1974 = vcombine.high %v1966, %v1966
  %v1975 = vcombine.high %v1973, %v1973
  %v1976 = vcombine.high %v1876, %v1876
  %v1978 = vunpack.c.l.s4 1983009808
  %v1979 = vunpack.c.0.s8 %v1978
  %v1980 = vlaneseq
  %v1981 = vshrl.u32 %v1980, 7
  %v1982 = vsub.s32 %v1979, %v1981
  %v1983 = vrot.slane %v1876, %v1982
  %v1985 = vunpack.c.l.s4 1983009808
  %v1986 = vunpack.c.0.s8 %v1985
  %v1987 = vlaneseq
  %v1988 = vshrl.u32 %v1987, 7
  %v1989 = vsub.s32 %v1986, %v1988
  %v1990 = vrot.slane %v1976, %v1989
  %v1991 = vcombine.high %v1983, %v1983
  %v1992 = vcombine.high %v1990, %v1990
  %v1994 = vunpack.c.l.s4 1983009808
  %v1995 = vunpack.c.0.s8 %v1994
  %v1996 = vlaneseq
  %v1997 = vshrl.u32 %v1996, 7
  %v1998 = vsub.s32 %v1995, %v1997
  %v1999 = vrot.slane %v1881, %v1998
  %v2000 = vcombine.high %v1999, %v1999
  %v2027 = vadd.f32 %v1603, %v1898
  %v2028 = vadd.f32 %v1604, %v1906
  %v2029 = vadd.f32 %v1605, %v1905
  %v2030 = vadd.f32 %v1606, %v1907
  %v2031 = vadd.f32 %v1607, %v1915
  %v2032 = vadd.f32 %v1608, %v1923
  %v2033 = vadd.f32 %v1609, %v1922
  %v2034 = vadd.f32 %v1610, %v1924
  %v2035 = vadd.f32 %v1611, %v1932
  %v2036 = vadd.f32 %v1612, %v1940
  %v2037 = vadd.f32 %v1613, %v1939
  %v2038 = vadd.f32 %v1614, %v1941
  %v2039 = vadd.f32 %v1615, %v1949
  %v2040 = vadd.f32 %v1616, %v1957
  %v2041 = vadd.f32 %v1617, %v1956
  %v2042 = vadd.f32 %v1618, %v1958
  %v2043 = vadd.f32 %v1619, %v1966
  %v2044 = vadd.f32 %v1620, %v1974
  %v2045 = vadd.f32 %v1621, %v1973
  %v2046 = vadd.f32 %v1622, %v1975
  %v2047 = vadd.f32 %v1623, %v1983
  %v2048 = vadd.f32 %v1624, %v1991
  %v2049 = vadd.f32 %v1625, %v1990
  %v2050 = vadd.f32 %v1626, %v1992
  %v2051 = vadd.f32 %v1627, %v1999
  %v2052 = vadd.f32 %v1628, %v2000
  %v2053 = vld [vmem:[%s6] sm:$0x1]
  %v2055 = vlaneseq
  %v2056 = vshrl.u32 %v2055, 7
  %v2057 = vsub.s32 0, %v2056
  %v2058 = vrot.slane %v2053, %v2057
  %v2059 = vcombine.high %v2058, %v2058
  %v2061 = vunpack.c.l.s4 1983009808
  %v2062 = vunpack.c.0.s8 %v2061
  %v2063 = vlaneseq
  %v2064 = vshrl.u32 %v2063, 7
  %v2065 = vsub.s32 %v2062, %v2064
  %v2066 = vrot.slane %v2058, %v2065
  %v2068 = vunpack.c.l.s4 1983009808
  %v2069 = vunpack.c.0.s8 %v2068
  %v2070 = vlaneseq
  %v2071 = vshrl.u32 %v2070, 7
  %v2072 = vsub.s32 %v2069, %v2071
  %v2073 = vrot.slane %v2059, %v2072
  %v2074 = vcombine.high %v2066, %v2066
  %v2075 = vcombine.high %v2073, %v2073
  %v2080 = vadd.f32 %v2027, %v2066
  %v2081 = vadd.f32 %v2028, %v2074
  %v2082 = vadd.f32 %v2029, %v2073
  %v2083 = vadd.f32 %v2030, %v2075
  %v2084 = vadd.f32 %v2031, %v2066
  %v2085 = vadd.f32 %v2032, %v2074
  %v2086 = vadd.f32 %v2033, %v2073
  %v2087 = vadd.f32 %v2034, %v2075
  %v2088 = vadd.f32 %v2035, %v2066
  %v2089 = vadd.f32 %v2036, %v2074
  %v2090 = vadd.f32 %v2037, %v2073
  %v2091 = vadd.f32 %v2038, %v2075
  %v2092 = vadd.f32 %v2039, %v2066
  %v2093 = vadd.f32 %v2040, %v2066
  %v2094 = vadd.f32 %v2041, %v2074
  %v2095 = vadd.f32 %v2042, %v2073
  %v2096 = vadd.f32 %v2043, %v2075
  %v2097 = vadd.f32 %v2044, %v2066
  %v2098 = vadd.f32 %v2045, %v2074
  %v2099 = vadd.f32 %v2046, %v2073
  %v2100 = vadd.f32 %v2047, %v2075
  %v2101 = vadd.f32 %v2048, %v2066
  %v2102 = vadd.f32 %v2049, %v2074
  %v2103 = vadd.f32 %v2050, %v2073
  %v2104 = vadd.f32 %v2051, %v2075
  %v2105 = vadd.f32 %v2052, %v2066
  %v2132 = vcombine.low %v2080, %v2081
  %v2133 = vcombine.low %v2082, %v2083
  %v2135 = vunpack.c.l.s4 1983009808
  %v2136 = vunpack.c.0.s8 %v2135
  %v2137 = vlaneseq
  %v2138 = vshrl.u32 %v2137, 7
  %v2139 = vsub.s32 %v2136, %v2138
  %v2140 = vrot.slane %v2132, %v2139
  %v2142 = vunpack.c.l.s4 1983009808
  %v2143 = vunpack.c.0.s8 %v2142
  %v2144 = vlaneseq
  %v2145 = vshrl.u32 %v2144, 7
  %v2146 = vsub.s32 %v2143, %v2145
  %v2147 = vrot.slane %v2133, %v2146
  %v2148 = vcombine.low %v2140, %v2147
  %v2149 = vcombine.low %v2084, %v2085
  %v2150 = vcombine.low %v2086, %v2087
  %v2152 = vunpack.c.l.s4 1983009808
  %v2153 = vunpack.c.0.s8 %v2152
  %v2154 = vlaneseq
  %v2155 = vshrl.u32 %v2154, 7
  %v2156 = vsub.s32 %v2153, %v2155
  %v2157 = vrot.slane %v2149, %v2156
  %v2159 = vunpack.c.l.s4 1983009808
  %v2160 = vunpack.c.0.s8 %v2159
  %v2161 = vlaneseq
  %v2162 = vshrl.u32 %v2161, 7
  %v2163 = vsub.s32 %v2160, %v2162
  %v2164 = vrot.slane %v2150, %v2163
  %v2165 = vcombine.low %v2157, %v2164
  %v2166 = vcombine.low %v2088, %v2089
  %v2167 = vcombine.low %v2090, %v2091
  %v2169 = vunpack.c.l.s4 1983009808
  %v2170 = vunpack.c.0.s8 %v2169
  %v2171 = vlaneseq
  %v2172 = vshrl.u32 %v2171, 7
  %v2173 = vsub.s32 %v2170, %v2172
  %v2174 = vrot.slane %v2166, %v2173
  %v2176 = vunpack.c.l.s4 1983009808
  %v2177 = vunpack.c.0.s8 %v2176
  %v2178 = vlaneseq
  %v2179 = vshrl.u32 %v2178, 7
  %v2180 = vsub.s32 %v2177, %v2179
  %v2181 = vrot.slane %v2167, %v2180
  %v2182 = vcombine.low %v2174, %v2181
  %v2184 = vunpack.c.l.s4 1983009808
  %v2185 = vunpack.c.0.s8 %v2184
  %v2186 = vlaneseq
  %v2187 = vshrl.u32 %v2186, 7
  %v2188 = vsub.s32 %v2185, %v2187
  %v2189 = vrot.slane %v2092, %v2188
  %v2190 = vcombine.low %v2093, %v2094
  %v2191 = vcombine.low %v2095, %v2096
  %v2193 = vunpack.c.l.s4 1983009808
  %v2194 = vunpack.c.0.s8 %v2193
  %v2195 = vlaneseq
  %v2196 = vshrl.u32 %v2195, 7
  %v2197 = vsub.s32 %v2194, %v2196
  %v2198 = vrot.slane %v2190, %v2197
  %v2200 = vunpack.c.l.s4 1983009808
  %v2201 = vunpack.c.0.s8 %v2200
  %v2202 = vlaneseq
  %v2203 = vshrl.u32 %v2202, 7
  %v2204 = vsub.s32 %v2201, %v2203
  %v2205 = vrot.slane %v2191, %v2204
  %v2206 = vcombine.low %v2198, %v2205
  %v2207 = vcombine.low %v2097, %v2098
  %v2208 = vcombine.low %v2099, %v2100
  %v2210 = vunpack.c.l.s4 1983009808
  %v2211 = vunpack.c.0.s8 %v2210
  %v2212 = vlaneseq
  %v2213 = vshrl.u32 %v2212, 7
  %v2214 = vsub.s32 %v2211, %v2213
  %v2215 = vrot.slane %v2207, %v2214
  %v2217 = vunpack.c.l.s4 1983009808
  %v2218 = vunpack.c.0.s8 %v2217
  %v2219 = vlaneseq
  %v2220 = vshrl.u32 %v2219, 7
  %v2221 = vsub.s32 %v2218, %v2220
  %v2222 = vrot.slane %v2208, %v2221
  %v2223 = vcombine.low %v2215, %v2222
  %v2224 = vcombine.low %v2101, %v2102
  %v2225 = vcombine.low %v2103, %v2104
  %v2227 = vunpack.c.l.s4 1983009808
  %v2228 = vunpack.c.0.s8 %v2227
  %v2229 = vlaneseq
  %v2230 = vshrl.u32 %v2229, 7
  %v2231 = vsub.s32 %v2228, %v2230
  %v2232 = vrot.slane %v2224, %v2231
  %v2234 = vunpack.c.l.s4 1983009808
  %v2235 = vunpack.c.0.s8 %v2234
  %v2236 = vlaneseq
  %v2237 = vshrl.u32 %v2236, 7
  %v2238 = vsub.s32 %v2235, %v2237
  %v2239 = vrot.slane %v2225, %v2238
  %v2240 = vcombine.low %v2232, %v2239
  %v2242 = vunpack.c.l.s4 1983009808
  %v2243 = vunpack.c.0.s8 %v2242
  %v2244 = vlaneseq
  %v2245 = vshrl.u32 %v2244, 7
  %v2246 = vsub.s32 %v2243, %v2245
  %v2247 = vrot.slane %v2105, %v2246
  %v2256 = vadd.f32 %v2148, %v2165
  %v2257 = vadd.f32 %v2256, %v2182
  %vm2258 = vcmask 1041408
  %v2259 = vsel %vm2258, %v2189, 0.0
  %v2260 = vadd.f32 %v2257, %v2259
  %v2261 = vadd.f32 %v2260, %v2206
  %v2262 = vadd.f32 %v2261, %v2223
  %v2263 = vadd.f32 %v2262, %v2240
  %v2264 = vsel %vm2258, %v2247, 0.0
  %v2265 = vadd.f32 %v2263, %v2264
  %v2266 = vrot.slane %v2265, 4
  %v2267 = vadd.f32 %v2265, %v2266
  %v2268 = vrot.slane %v2267, 2
  %v2269 = vadd.f32 %v2267, %v2268
  %v2270 = vrot.slane %v2269, 1
  %v2271 = vadd.f32 %v2269, %v2270
  %v2272 = vrcp.pop 52.0
  %v2273 = vmul.f32 %v2271, %v2272
  %v2275 = vcombine.high %v2273, %v2273
  %v2277 = vunpack.c.l.s4 1983009808
  %v2278 = vunpack.c.0.s8 %v2277
  %v2279 = vlaneseq
  %v2280 = vshrl.u32 %v2279, 7
  %v2281 = vsub.s32 %v2278, %v2280
  %v2282 = vrot.slane %v2273, %v2281
  %v2284 = vunpack.c.l.s4 1983009808
  %v2285 = vunpack.c.0.s8 %v2284
  %v2286 = vlaneseq
  %v2287 = vshrl.u32 %v2286, 7
  %v2288 = vsub.s32 %v2285, %v2287
  %v2289 = vrot.slane %v2275, %v2288
  %v2290 = vcombine.high %v2282, %v2282
  %v2291 = vcombine.high %v2289, %v2289
  %v2296 = vsub.f32 %v2080, %v2282
  %v2297 = vsub.f32 %v2081, %v2290
  %v2298 = vsub.f32 %v2082, %v2289
  %v2299 = vsub.f32 %v2083, %v2291
  %v2300 = vsub.f32 %v2084, %v2282
  %v2301 = vsub.f32 %v2085, %v2290
  %v2302 = vsub.f32 %v2086, %v2289
  %v2303 = vsub.f32 %v2087, %v2291
  %v2304 = vsub.f32 %v2088, %v2282
  %v2305 = vsub.f32 %v2089, %v2290
  %v2306 = vsub.f32 %v2090, %v2289
  %v2307 = vsub.f32 %v2091, %v2291
  %v2308 = vsub.f32 %v2092, %v2282
  %v2309 = vsub.f32 %v2093, %v2282
  %v2310 = vsub.f32 %v2094, %v2290
  %v2311 = vsub.f32 %v2095, %v2289
  %v2312 = vsub.f32 %v2096, %v2291
  %v2313 = vsub.f32 %v2097, %v2282
  %v2314 = vsub.f32 %v2098, %v2290
  %v2315 = vsub.f32 %v2099, %v2289
  %v2316 = vsub.f32 %v2100, %v2291
  %v2317 = vsub.f32 %v2101, %v2282
  %v2318 = vsub.f32 %v2102, %v2290
  %v2319 = vsub.f32 %v2103, %v2289
  %v2320 = vsub.f32 %v2104, %v2291
  %v2321 = vsub.f32 %v2105, %v2282
  %v2322 = vmul.f32 %v2296, %v2296
  %v2323 = vmul.f32 %v2297, %v2297
  %v2324 = vmul.f32 %v2298, %v2298
  %v2325 = vmul.f32 %v2299, %v2299
  %v2326 = vmul.f32 %v2300, %v2300
  %v2327 = vmul.f32 %v2301, %v2301
  %v2328 = vmul.f32 %v2302, %v2302
  %v2329 = vmul.f32 %v2303, %v2303
  %v2330 = vmul.f32 %v2304, %v2304
  %v2331 = vmul.f32 %v2305, %v2305
  %v2332 = vmul.f32 %v2306, %v2306
  %v2333 = vmul.f32 %v2307, %v2307
  %v2334 = vmul.f32 %v2308, %v2308
  %v2335 = vmul.f32 %v2309, %v2309
  %v2336 = vmul.f32 %v2310, %v2310
  %v2337 = vmul.f32 %v2311, %v2311
  %v2338 = vmul.f32 %v2312, %v2312
  %v2339 = vmul.f32 %v2313, %v2313
  %v2340 = vmul.f32 %v2314, %v2314
  %v2341 = vmul.f32 %v2315, %v2315
  %v2342 = vmul.f32 %v2316, %v2316
  %v2343 = vmul.f32 %v2317, %v2317
  %v2344 = vmul.f32 %v2318, %v2318
  %v2345 = vmul.f32 %v2319, %v2319
  %v2346 = vmul.f32 %v2320, %v2320
  %v2347 = vmul.f32 %v2321, %v2321
  %v2374 = vcombine.low %v2322, %v2323
  %v2375 = vcombine.low %v2324, %v2325
  %v2377 = vunpack.c.l.s4 1983009808
  %v2378 = vunpack.c.0.s8 %v2377
  %v2379 = vlaneseq
  %v2380 = vshrl.u32 %v2379, 7
  %v2381 = vsub.s32 %v2378, %v2380
  %v2382 = vrot.slane %v2374, %v2381
  %v2384 = vunpack.c.l.s4 1983009808
  %v2385 = vunpack.c.0.s8 %v2384
  %v2386 = vlaneseq
  %v2387 = vshrl.u32 %v2386, 7
  %v2388 = vsub.s32 %v2385, %v2387
  %v2389 = vrot.slane %v2375, %v2388
  %v2390 = vcombine.low %v2382, %v2389
  %v2391 = vcombine.low %v2326, %v2327
  %v2392 = vcombine.low %v2328, %v2329
  %v2394 = vunpack.c.l.s4 1983009808
  %v2395 = vunpack.c.0.s8 %v2394
  %v2396 = vlaneseq
  %v2397 = vshrl.u32 %v2396, 7
  %v2398 = vsub.s32 %v2395, %v2397
  %v2399 = vrot.slane %v2391, %v2398
  %v2401 = vunpack.c.l.s4 1983009808
  %v2402 = vunpack.c.0.s8 %v2401
  %v2403 = vlaneseq
  %v2404 = vshrl.u32 %v2403, 7
  %v2405 = vsub.s32 %v2402, %v2404
  %v2406 = vrot.slane %v2392, %v2405
  %v2407 = vcombine.low %v2399, %v2406
  %v2408 = vcombine.low %v2330, %v2331
  %v2409 = vcombine.low %v2332, %v2333
  %v2411 = vunpack.c.l.s4 1983009808
  %v2412 = vunpack.c.0.s8 %v2411
  %v2413 = vlaneseq
  %v2414 = vshrl.u32 %v2413, 7
  %v2415 = vsub.s32 %v2412, %v2414
  %v2416 = vrot.slane %v2408, %v2415
  %v2418 = vunpack.c.l.s4 1983009808
  %v2419 = vunpack.c.0.s8 %v2418
  %v2420 = vlaneseq
  %v2421 = vshrl.u32 %v2420, 7
  %v2422 = vsub.s32 %v2419, %v2421
  %v2423 = vrot.slane %v2409, %v2422
  %v2424 = vcombine.low %v2416, %v2423
  %v2426 = vunpack.c.l.s4 1983009808
  %v2427 = vunpack.c.0.s8 %v2426
  %v2428 = vlaneseq
  %v2429 = vshrl.u32 %v2428, 7
  %v2430 = vsub.s32 %v2427, %v2429
  %v2431 = vrot.slane %v2334, %v2430
  %v2432 = vcombine.low %v2335, %v2336
  %v2433 = vcombine.low %v2337, %v2338
  %v2435 = vunpack.c.l.s4 1983009808
  %v2436 = vunpack.c.0.s8 %v2435
  %v2437 = vlaneseq
  %v2438 = vshrl.u32 %v2437, 7
  %v2439 = vsub.s32 %v2436, %v2438
  %v2440 = vrot.slane %v2432, %v2439
  %v2442 = vunpack.c.l.s4 1983009808
  %v2443 = vunpack.c.0.s8 %v2442
  %v2444 = vlaneseq
  %v2445 = vshrl.u32 %v2444, 7
  %v2446 = vsub.s32 %v2443, %v2445
  %v2447 = vrot.slane %v2433, %v2446
  %v2448 = vcombine.low %v2440, %v2447
  %v2449 = vcombine.low %v2339, %v2340
  %v2450 = vcombine.low %v2341, %v2342
  %v2452 = vunpack.c.l.s4 1983009808
  %v2453 = vunpack.c.0.s8 %v2452
  %v2454 = vlaneseq
  %v2455 = vshrl.u32 %v2454, 7
  %v2456 = vsub.s32 %v2453, %v2455
  %v2457 = vrot.slane %v2449, %v2456
  %v2459 = vunpack.c.l.s4 1983009808
  %v2460 = vunpack.c.0.s8 %v2459
  %v2461 = vlaneseq
  %v2462 = vshrl.u32 %v2461, 7
  %v2463 = vsub.s32 %v2460, %v2462
  %v2464 = vrot.slane %v2450, %v2463
  %v2465 = vcombine.low %v2457, %v2464
  %v2466 = vcombine.low %v2343, %v2344
  %v2467 = vcombine.low %v2345, %v2346
  %v2469 = vunpack.c.l.s4 1983009808
  %v2470 = vunpack.c.0.s8 %v2469
  %v2471 = vlaneseq
  %v2472 = vshrl.u32 %v2471, 7
  %v2473 = vsub.s32 %v2470, %v2472
  %v2474 = vrot.slane %v2466, %v2473
  %v2476 = vunpack.c.l.s4 1983009808
  %v2477 = vunpack.c.0.s8 %v2476
  %v2478 = vlaneseq
  %v2479 = vshrl.u32 %v2478, 7
  %v2480 = vsub.s32 %v2477, %v2479
  %v2481 = vrot.slane %v2467, %v2480
  %v2482 = vcombine.low %v2474, %v2481
  %v2484 = vunpack.c.l.s4 1983009808
  %v2485 = vunpack.c.0.s8 %v2484
  %v2486 = vlaneseq
  %v2487 = vshrl.u32 %v2486, 7
  %v2488 = vsub.s32 %v2485, %v2487
  %v2489 = vrot.slane %v2347, %v2488
  %v2498 = vadd.f32 %v2390, %v2407
  %v2499 = vadd.f32 %v2498, %v2424
  %v2500 = vsel %vm2258, %v2431, 0.0
  %v2501 = vadd.f32 %v2499, %v2500
  %v2502 = vadd.f32 %v2501, %v2448
  %v2503 = vadd.f32 %v2502, %v2465
  %v2504 = vadd.f32 %v2503, %v2482
  %v2505 = vsel %vm2258, %v2489, 0.0
  %v2506 = vadd.f32 %v2504, %v2505
  %v2507 = vrot.slane %v2506, 4
  %v2508 = vadd.f32 %v2506, %v2507
  %v2509 = vrot.slane %v2508, 2
  %v2510 = vadd.f32 %v2508, %v2509
  %v2511 = vrot.slane %v2510, 1
  %v2512 = vadd.f32 %v2510, %v2511
  %v2513 = vmul.f32 %v2512, %v2272
  %v2514 = vadd.f32 %v2513, 1e-05
  %v2515 = vrsqrt.pop %v2514
  %v2517 = vcombine.high %v2515, %v2515
  %v2519 = vunpack.c.l.s4 1983009808
  %v2520 = vunpack.c.0.s8 %v2519
  %v2521 = vlaneseq
  %v2522 = vshrl.u32 %v2521, 7
  %v2523 = vsub.s32 %v2520, %v2522
  %v2524 = vrot.slane %v2515, %v2523
  %v2526 = vunpack.c.l.s4 1983009808
  %v2527 = vunpack.c.0.s8 %v2526
  %v2528 = vlaneseq
  %v2529 = vshrl.u32 %v2528, 7
  %v2530 = vsub.s32 %v2527, %v2529
  %v2531 = vrot.slane %v2517, %v2530
  %v2532 = vcombine.high %v2524, %v2524
  %v2533 = vcombine.high %v2531, %v2531
  %v2538 = vmul.f32 %v2296, %v2524
  %v2539 = vmul.f32 %v2297, %v2532
  %v2540 = vmul.f32 %v2298, %v2531
  %v2541 = vmul.f32 %v2299, %v2533
  %v2542 = vmul.f32 %v2300, %v2524
  %v2543 = vmul.f32 %v2301, %v2532
  %v2544 = vmul.f32 %v2302, %v2531
  %v2545 = vmul.f32 %v2303, %v2533
  %v2546 = vmul.f32 %v2304, %v2524
  %v2547 = vmul.f32 %v2305, %v2532
  %v2548 = vmul.f32 %v2306, %v2531
  %v2549 = vmul.f32 %v2307, %v2533
  %v2550 = vmul.f32 %v2308, %v2524
  %v2551 = vmul.f32 %v2309, %v2524
  %v2552 = vmul.f32 %v2310, %v2532
  %v2553 = vmul.f32 %v2311, %v2531
  %v2554 = vmul.f32 %v2312, %v2533
  %v2555 = vmul.f32 %v2313, %v2524
  %v2556 = vmul.f32 %v2314, %v2532
  %v2557 = vmul.f32 %v2315, %v2531
  %v2558 = vmul.f32 %v2316, %v2533
  %v2559 = vmul.f32 %v2317, %v2524
  %v2560 = vmul.f32 %v2318, %v2532
  %v2561 = vmul.f32 %v2319, %v2531
  %v2562 = vmul.f32 %v2320, %v2533
  %v2563 = vmul.f32 %v2321, %v2524
  %v2564 = vld [vmem:[%s7] sm:$0x1]
  %v2566 = vlaneseq
  %v2567 = vshrl.u32 %v2566, 7
  %v2568 = vsub.s32 0, %v2567
  %v2569 = vrot.slane %v2564, %v2568
  %v2570 = vcombine.high %v2569, %v2569
  %v2572 = vunpack.c.l.s4 1983009808
  %v2573 = vunpack.c.0.s8 %v2572
  %v2574 = vlaneseq
  %v2575 = vshrl.u32 %v2574, 7
  %v2576 = vsub.s32 %v2573, %v2575
  %v2577 = vrot.slane %v2569, %v2576
  %v2579 = vunpack.c.l.s4 1983009808
  %v2580 = vunpack.c.0.s8 %v2579
  %v2581 = vlaneseq
  %v2582 = vshrl.u32 %v2581, 7
  %v2583 = vsub.s32 %v2580, %v2582
  %v2584 = vrot.slane %v2570, %v2583
  %v2585 = vcombine.high %v2577, %v2577
  %v2586 = vcombine.high %v2584, %v2584
  %v2591 = vmul.f32 %v2538, %v2577
  %v2592 = vmul.f32 %v2539, %v2585
  %v2593 = vmul.f32 %v2540, %v2584
  %v2594 = vmul.f32 %v2541, %v2586
  %v2595 = vmul.f32 %v2542, %v2577
  %v2596 = vmul.f32 %v2543, %v2585
  %v2597 = vmul.f32 %v2544, %v2584
  %v2598 = vmul.f32 %v2545, %v2586
  %v2599 = vmul.f32 %v2546, %v2577
  %v2600 = vmul.f32 %v2547, %v2585
  %v2601 = vmul.f32 %v2548, %v2584
  %v2602 = vmul.f32 %v2549, %v2586
  %v2603 = vmul.f32 %v2550, %v2577
  %v2604 = vmul.f32 %v2551, %v2577
  %v2605 = vmul.f32 %v2552, %v2585
  %v2606 = vmul.f32 %v2553, %v2584
  %v2607 = vmul.f32 %v2554, %v2586
  %v2608 = vmul.f32 %v2555, %v2577
  %v2609 = vmul.f32 %v2556, %v2585
  %v2610 = vmul.f32 %v2557, %v2584
  %v2611 = vmul.f32 %v2558, %v2586
  %v2612 = vmul.f32 %v2559, %v2577
  %v2613 = vmul.f32 %v2560, %v2585
  %v2614 = vmul.f32 %v2561, %v2584
  %v2615 = vmul.f32 %v2562, %v2586
  %v2616 = vmul.f32 %v2563, %v2577
  %v2617 = vld [vmem:[%s8] sm:$0x1]
  %v2619 = vlaneseq
  %v2620 = vshrl.u32 %v2619, 7
  %v2621 = vsub.s32 0, %v2620
  %v2622 = vrot.slane %v2617, %v2621
  %v2623 = vcombine.high %v2622, %v2622
  %v2625 = vunpack.c.l.s4 1983009808
  %v2626 = vunpack.c.0.s8 %v2625
  %v2627 = vlaneseq
  %v2628 = vshrl.u32 %v2627, 7
  %v2629 = vsub.s32 %v2626, %v2628
  %v2630 = vrot.slane %v2622, %v2629
  %v2632 = vunpack.c.l.s4 1983009808
  %v2633 = vunpack.c.0.s8 %v2632
  %v2634 = vlaneseq
  %v2635 = vshrl.u32 %v2634, 7
  %v2636 = vsub.s32 %v2633, %v2635
  %v2637 = vrot.slane %v2623, %v2636
  %v2638 = vcombine.high %v2630, %v2630
  %v2639 = vcombine.high %v2637, %v2637
  %v2644 = vadd.f32 %v2591, %v2630
  %v2645 = vadd.f32 %v2592, %v2638
  %v2646 = vadd.f32 %v2593, %v2637
  %v2647 = vadd.f32 %v2594, %v2639
  %v2648 = vadd.f32 %v2595, %v2630
  %v2649 = vadd.f32 %v2596, %v2638
  %v2650 = vadd.f32 %v2597, %v2637
  %v2651 = vadd.f32 %v2598, %v2639
  %v2652 = vadd.f32 %v2599, %v2630
  %v2653 = vadd.f32 %v2600, %v2638
  %v2654 = vadd.f32 %v2601, %v2637
  %v2655 = vadd.f32 %v2602, %v2639
  %v2656 = vadd.f32 %v2603, %v2630
  %v2657 = vadd.f32 %v2604, %v2630
  %v2658 = vadd.f32 %v2605, %v2638
  %v2659 = vadd.f32 %v2606, %v2637
  %v2660 = vadd.f32 %v2607, %v2639
  %v2661 = vadd.f32 %v2608, %v2630
  %v2662 = vadd.f32 %v2609, %v2638
  %v2663 = vadd.f32 %v2610, %v2637
  %v2664 = vadd.f32 %v2611, %v2639
  %v2665 = vadd.f32 %v2612, %v2630
  %v2666 = vadd.f32 %v2613, %v2638
  %v2667 = vadd.f32 %v2614, %v2637
  %v2668 = vadd.f32 %v2615, %v2639
  %v2669 = vadd.f32 %v2616, %v2630
  %v2670 = vmax.f32 %v2644, 0.0
  %v2671 = vmax.f32 %v2645, 0.0
  %v2672 = vmax.f32 %v2646, 0.0
  %v2673 = vmax.f32 %v2647, 0.0
  %v2674 = vmax.f32 %v2648, 0.0
  %v2675 = vmax.f32 %v2649, 0.0
  %v2676 = vmax.f32 %v2650, 0.0
  %v2677 = vmax.f32 %v2651, 0.0
  %v2678 = vmax.f32 %v2652, 0.0
  %v2679 = vmax.f32 %v2653, 0.0
  %v2680 = vmax.f32 %v2654, 0.0
  %v2681 = vmax.f32 %v2655, 0.0
  %v2682 = vmax.f32 %v2656, 0.0
  %v2683 = vmax.f32 %v2657, 0.0
  %v2684 = vmax.f32 %v2658, 0.0
  %v2685 = vmax.f32 %v2659, 0.0
  %v2686 = vmax.f32 %v2660, 0.0
  %v2687 = vmax.f32 %v2661, 0.0
  %v2688 = vmax.f32 %v2662, 0.0
  %v2689 = vmax.f32 %v2663, 0.0
  %v2690 = vmax.f32 %v2664, 0.0
  %v2691 = vmax.f32 %v2665, 0.0
  %v2692 = vmax.f32 %v2666, 0.0
  %v2693 = vmax.f32 %v2667, 0.0
  %v2694 = vmax.f32 %v2668, 0.0
  %v2695 = vmax.f32 %v2669, 0.0
  %v2696 = vld [vmem:[%s9] sm:$0xff]
  %v2697 = vld [vmem:[%s9 + $0x8] sm:$0xff]
  %v2698 = vld [vmem:[%s9 + $0x10] sm:$0xff]
  %v2699 = vld [vmem:[%s9 + $0x18] sm:$0xff]
  %v2700 = vld [vmem:[%s9 + $0x20] sm:$0xff]
  %v2701 = vld [vmem:[%s9 + $0x28] sm:$0xff]
  %v2702 = vld [vmem:[%s9 + $0x30] sm:$0xff]
  %v2703 = vld [vmem:[%s9 + $0x38] sm:$0xff]
  %v2704 = vld [vmem:[%s9 + $0x40] sm:$0xff]
  %v2705 = vld [vmem:[%s9 + $0x48] sm:$0xff]
  %v2706 = vld [vmem:[%s9 + $0x50] sm:$0xff]
  %v2707 = vld [vmem:[%s9 + $0x58] sm:$0xff]
  %v2708 = vld [vmem:[%s9 + $0x60] sm:$0xff]
  %v2709 = vld [vmem:[%s9 + $0x68] sm:$0xff]
  %v2710 = vld [vmem:[%s9 + $0x70] sm:$0xff]
  %v2711 = vld [vmem:[%s9 + $0x78] sm:$0xff]
  %s2712 = scalar_lea.vmem %s9, 128
  %v2713 = vld [vmem:[%s2712] sm:$0xff]
  %v2714 = vld [vmem:[%s2712 + $0x8] sm:$0xff]
  %v2715 = vld [vmem:[%s2712 + $0x10] sm:$0xff]
  %v2716 = vld [vmem:[%s2712 + $0x18] sm:$0xff]
  %v2717 = vld [vmem:[%s2712 + $0x20] sm:$0xff]
  %v2718 = vld [vmem:[%s2712 + $0x28] sm:$0xff]
  %v2719 = vld [vmem:[%s2712 + $0x30] sm:$0xff]
  %v2720 = vld [vmem:[%s2712 + $0x38] sm:$0xff]
  %v2721 = vld [vmem:[%s2712 + $0x40] sm:$0xff]
  %v2722 = vld [vmem:[%s2712 + $0x48] sm:$0xff]
  %v2723 = vld [vmem:[%s2712 + $0x50] sm:$0xff]
  %v2724 = vld [vmem:[%s2712 + $0x58] sm:$0xff]
  %v2725 = vld [vmem:[%s2712 + $0x60] sm:$0xff]
  %v2726 = vld [vmem:[%s2712 + $0x68] sm:$0xff]
  %v2727 = vld [vmem:[%s2712 + $0x70] sm:$0xff]
  %v2728 = vld [vmem:[%s2712 + $0x78] sm:$0xff]
  %v2756 = vunpack.c.l.s4 1966171168
  %v2757 = vunpack.c.0.s8 %v2756
  %v2758 = vlaneseq
  %v2759 = vshrl.u32 %v2758, 7
  %v2760 = vsub.s32 %v2757, %v2759
  %v2761 = vrot.slane %v2670, %v2760
  %v2762 = vcombine.high %v2761, %v2761
  %v2764 = vunpack.c.l.s4 1966171168
  %v2765 = vunpack.c.0.s8 %v2764
  %v2766 = vlaneseq
  %v2767 = vshrl.u32 %v2766, 7
  %v2768 = vsub.s32 %v2765, %v2767
  %v2769 = vrot.slane %v2671, %v2768
  %v2770 = vcombine.high %v2769, %v2769
  %v2772 = vunpack.c.l.s4 1966171168
  %v2773 = vunpack.c.0.s8 %v2772
  %v2774 = vlaneseq
  %v2775 = vshrl.u32 %v2774, 7
  %v2776 = vsub.s32 %v2773, %v2775
  %v2777 = vrot.slane %v2672, %v2776
  %v2778 = vcombine.high %v2777, %v2777
  %v2780 = vunpack.c.l.s4 1966171168
  %v2781 = vunpack.c.0.s8 %v2780
  %v2782 = vlaneseq
  %v2783 = vshrl.u32 %v2782, 7
  %v2784 = vsub.s32 %v2781, %v2783
  %v2785 = vrot.slane %v2673, %v2784
  %v2786 = vcombine.high %v2785, %v2785
  %v2788 = vunpack.c.l.s4 1966171168
  %v2789 = vunpack.c.0.s8 %v2788
  %v2790 = vlaneseq
  %v2791 = vshrl.u32 %v2790, 7
  %v2792 = vsub.s32 %v2789, %v2791
  %v2793 = vrot.slane %v2674, %v2792
  %v2794 = vcombine.high %v2793, %v2793
  %v2796 = vunpack.c.l.s4 1966171168
  %v2797 = vunpack.c.0.s8 %v2796
  %v2798 = vlaneseq
  %v2799 = vshrl.u32 %v2798, 7
  %v2800 = vsub.s32 %v2797, %v2799
  %v2801 = vrot.slane %v2675, %v2800
  %v2802 = vcombine.high %v2801, %v2801
  %v2804 = vunpack.c.l.s4 1966171168
  %v2805 = vunpack.c.0.s8 %v2804
  %v2806 = vlaneseq
  %v2807 = vshrl.u32 %v2806, 7
  %v2808 = vsub.s32 %v2805, %v2807
  %v2809 = vrot.slane %v2676, %v2808
  %v2810 = vcombine.high %v2809, %v2809
  %v2812 = vunpack.c.l.s4 1966171168
  %v2813 = vunpack.c.0.s8 %v2812
  %v2814 = vlaneseq
  %v2815 = vshrl.u32 %v2814, 7
  %v2816 = vsub.s32 %v2813, %v2815
  %v2817 = vrot.slane %v2677, %v2816
  %v2818 = vcombine.high %v2817, %v2817
  %v2820 = vunpack.c.l.s4 1966171168
  %v2821 = vunpack.c.0.s8 %v2820
  %v2822 = vlaneseq
  %v2823 = vshrl.u32 %v2822, 7
  %v2824 = vsub.s32 %v2821, %v2823
  %v2825 = vrot.slane %v2678, %v2824
  %v2826 = vcombine.high %v2825, %v2825
  %v2828 = vunpack.c.l.s4 1966171168
  %v2829 = vunpack.c.0.s8 %v2828
  %v2830 = vlaneseq
  %v2831 = vshrl.u32 %v2830, 7
  %v2832 = vsub.s32 %v2829, %v2831
  %v2833 = vrot.slane %v2679, %v2832
  %v2834 = vcombine.high %v2833, %v2833
  %v2836 = vunpack.c.l.s4 1966171168
  %v2837 = vunpack.c.0.s8 %v2836
  %v2838 = vlaneseq
  %v2839 = vshrl.u32 %v2838, 7
  %v2840 = vsub.s32 %v2837, %v2839
  %v2841 = vrot.slane %v2680, %v2840
  %v2842 = vcombine.high %v2841, %v2841
  %v2844 = vunpack.c.l.s4 1966171168
  %v2845 = vunpack.c.0.s8 %v2844
  %v2846 = vlaneseq
  %v2847 = vshrl.u32 %v2846, 7
  %v2848 = vsub.s32 %v2845, %v2847
  %v2849 = vrot.slane %v2681, %v2848
  %v2850 = vcombine.high %v2849, %v2849
  %v2852 = vunpack.c.l.s4 1966171168
  %v2853 = vunpack.c.0.s8 %v2852
  %v2854 = vlaneseq
  %v2855 = vshrl.u32 %v2854, 7
  %v2856 = vsub.s32 %v2853, %v2855
  %v2857 = vrot.slane %v2682, %v2856
  %v2858 = vcombine.high %v2857, %v2857
  %v2860 = vunpack.c.l.s4 1966171168
  %v2861 = vunpack.c.0.s8 %v2860
  %v2862 = vlaneseq
  %v2863 = vshrl.u32 %v2862, 7
  %v2864 = vsub.s32 %v2861, %v2863
  %v2865 = vrot.slane %v2683, %v2864
  %v2866 = vcombine.high %v2865, %v2865
  %v2868 = vunpack.c.l.s4 1966171168
  %v2869 = vunpack.c.0.s8 %v2868
  %v2870 = vlaneseq
  %v2871 = vshrl.u32 %v2870, 7
  %v2872 = vsub.s32 %v2869, %v2871
  %v2873 = vrot.slane %v2684, %v2872
  %v2874 = vcombine.high %v2873, %v2873
  %v2876 = vunpack.c.l.s4 1966171168
  %v2877 = vunpack.c.0.s8 %v2876
  %v2878 = vlaneseq
  %v2879 = vshrl.u32 %v2878, 7
  %v2880 = vsub.s32 %v2877, %v2879
  %v2881 = vrot.slane %v2685, %v2880
  %v2882 = vcombine.high %v2881, %v2881
  %v2884 = vunpack.c.l.s4 1966171168
  %v2885 = vunpack.c.0.s8 %v2884
  %v2886 = vlaneseq
  %v2887 = vshrl.u32 %v2886, 7
  %v2888 = vsub.s32 %v2885, %v2887
  %v2889 = vrot.slane %v2686, %v2888
  %v2890 = vcombine.high %v2889, %v2889
  %v2892 = vunpack.c.l.s4 1966171168
  %v2893 = vunpack.c.0.s8 %v2892
  %v2894 = vlaneseq
  %v2895 = vshrl.u32 %v2894, 7
  %v2896 = vsub.s32 %v2893, %v2895
  %v2897 = vrot.slane %v2687, %v2896
  %v2898 = vcombine.high %v2897, %v2897
  %v2900 = vunpack.c.l.s4 1966171168
  %v2901 = vunpack.c.0.s8 %v2900
  %v2902 = vlaneseq
  %v2903 = vshrl.u32 %v2902, 7
  %v2904 = vsub.s32 %v2901, %v2903
  %v2905 = vrot.slane %v2688, %v2904
  %v2906 = vcombine.high %v2905, %v2905
  %v2908 = vunpack.c.l.s4 1966171168
  %v2909 = vunpack.c.0.s8 %v2908
  %v2910 = vlaneseq
  %v2911 = vshrl.u32 %v2910, 7
  %v2912 = vsub.s32 %v2909, %v2911
  %v2913 = vrot.slane %v2689, %v2912
  %v2914 = vcombine.high %v2913, %v2913
  %v2916 = vunpack.c.l.s4 1966171168
  %v2917 = vunpack.c.0.s8 %v2916
  %v2918 = vlaneseq
  %v2919 = vshrl.u32 %v2918, 7
  %v2920 = vsub.s32 %v2917, %v2919
  %v2921 = vrot.slane %v2690, %v2920
  %v2922 = vcombine.high %v2921, %v2921
  %v2924 = vunpack.c.l.s4 1966171168
  %v2925 = vunpack.c.0.s8 %v2924
  %v2926 = vlaneseq
  %v2927 = vshrl.u32 %v2926, 7
  %v2928 = vsub.s32 %v2925, %v2927
  %v2929 = vrot.slane %v2691, %v2928
  %v2930 = vcombine.high %v2929, %v2929
  %v2932 = vunpack.c.l.s4 1966171168
  %v2933 = vunpack.c.0.s8 %v2932
  %v2934 = vlaneseq
  %v2935 = vshrl.u32 %v2934, 7
  %v2936 = vsub.s32 %v2933, %v2935
  %v2937 = vrot.slane %v2692, %v2936
  %v2938 = vcombine.high %v2937, %v2937
  %v2940 = vunpack.c.l.s4 1966171168
  %v2941 = vunpack.c.0.s8 %v2940
  %v2942 = vlaneseq
  %v2943 = vshrl.u32 %v2942, 7
  %v2944 = vsub.s32 %v2941, %v2943
  %v2945 = vrot.slane %v2693, %v2944
  %v2946 = vcombine.high %v2945, %v2945
  %v2948 = vunpack.c.l.s4 1966171168
  %v2949 = vunpack.c.0.s8 %v2948
  %v2950 = vlaneseq
  %v2951 = vshrl.u32 %v2950, 7
  %v2952 = vsub.s32 %v2949, %v2951
  %v2953 = vrot.slane %v2694, %v2952
  %v2954 = vcombine.high %v2953, %v2953
  %v2956 = vunpack.c.l.s4 1966171168
  %v2957 = vunpack.c.0.s8 %v2956
  %v2958 = vlaneseq
  %v2959 = vshrl.u32 %v2958, 7
  %v2960 = vsub.s32 %v2957, %v2959
  %v2961 = vrot.slane %v2695, %v2960
  %v2962 = vcombine.high %v2961, %v2961
  %v2963 = vcombine.low %v2762, %v2769
  %v2964 = vcombine.low %v2770, %v2777
  %v2965 = vcombine.low %v2778, %v2785
  %v2966 = vcombine.low %v2786, %v2793
  %v2968 = vunpack.c.l.s4 1966171168
  %v2969 = vunpack.c.0.s8 %v2968
  %v2970 = vlaneseq
  %v2971 = vshrl.u32 %v2970, 7
  %v2972 = vsub.s32 %v2969, %v2971
  %v2973 = vrot.slane %v2963, %v2972
  %v2975 = vunpack.c.l.s4 1966171168
  %v2976 = vunpack.c.0.s8 %v2975
  %v2977 = vlaneseq
  %v2978 = vshrl.u32 %v2977, 7
  %v2979 = vsub.s32 %v2976, %v2978
  %v2980 = vrot.slane %v2964, %v2979
  %v2982 = vunpack.c.l.s4 1966171168
  %v2983 = vunpack.c.0.s8 %v2982
  %v2984 = vlaneseq
  %v2985 = vshrl.u32 %v2984, 7
  %v2986 = vsub.s32 %v2983, %v2985
  %v2987 = vrot.slane %v2965, %v2986
  %v2989 = vunpack.c.l.s4 1966171168
  %v2990 = vunpack.c.0.s8 %v2989
  %v2991 = vlaneseq
  %v2992 = vshrl.u32 %v2991, 7
  %v2993 = vsub.s32 %v2990, %v2992
  %v2994 = vrot.slane %v2966, %v2993
  %v2995 = vcombine.low %v2973, %v2980
  %v2996 = vcombine.low %v2987, %v2994
  %v2998 = vunpack.c.l.s4 1966171168
  %v2999 = vunpack.c.0.s8 %v2998
  %v3000 = vlaneseq
  %v3001 = vshrl.u32 %v3000, 7
  %v3002 = vsub.s32 %v2999, %v3001
  %v3003 = vrot.slane %v2995, %v3002
  %v3005 = vunpack.c.l.s4 1966171168
  %v3006 = vunpack.c.0.s8 %v3005
  %v3007 = vlaneseq
  %v3008 = vshrl.u32 %v3007, 7
  %v3009 = vsub.s32 %v3006, %v3008
  %v3010 = vrot.slane %v2996, %v3009
  %v3011 = vcombine.low %v3003, %v3010
  %v3012 = vcombine.low %v2794, %v2801
  %v3013 = vcombine.low %v2802, %v2809
  %v3014 = vcombine.low %v2810, %v2817
  %v3015 = vcombine.low %v2818, %v2825
  %v3017 = vunpack.c.l.s4 1966171168
  %v3018 = vunpack.c.0.s8 %v3017
  %v3019 = vlaneseq
  %v3020 = vshrl.u32 %v3019, 7
  %v3021 = vsub.s32 %v3018, %v3020
  %v3022 = vrot.slane %v3012, %v3021
  %v3024 = vunpack.c.l.s4 1966171168
  %v3025 = vunpack.c.0.s8 %v3024
  %v3026 = vlaneseq
  %v3027 = vshrl.u32 %v3026, 7
  %v3028 = vsub.s32 %v3025, %v3027
  %v3029 = vrot.slane %v3013, %v3028
  %v3031 = vunpack.c.l.s4 1966171168
  %v3032 = vunpack.c.0.s8 %v3031
  %v3033 = vlaneseq
  %v3034 = vshrl.u32 %v3033, 7
  %v3035 = vsub.s32 %v3032, %v3034
  %v3036 = vrot.slane %v3014, %v3035
  %v3038 = vunpack.c.l.s4 1966171168
  %v3039 = vunpack.c.0.s8 %v3038
  %v3040 = vlaneseq
  %v3041 = vshrl.u32 %v3040, 7
  %v3042 = vsub.s32 %v3039, %v3041
  %v3043 = vrot.slane %v3015, %v3042
  %v3044 = vcombine.low %v3022, %v3029
  %v3045 = vcombine.low %v3036, %v3043
  %v3047 = vunpack.c.l.s4 1966171168
  %v3048 = vunpack.c.0.s8 %v3047
  %v3049 = vlaneseq
  %v3050 = vshrl.u32 %v3049, 7
  %v3051 = vsub.s32 %v3048, %v3050
  %v3052 = vrot.slane %v3044, %v3051
  %v3054 = vunpack.c.l.s4 1966171168
  %v3055 = vunpack.c.0.s8 %v3054
  %v3056 = vlaneseq
  %v3057 = vshrl.u32 %v3056, 7
  %v3058 = vsub.s32 %v3055, %v3057
  %v3059 = vrot.slane %v3045, %v3058
  %v3060 = vcombine.low %v3052, %v3059
  %v3061 = vcombine.low %v2826, %v2833
  %v3062 = vcombine.low %v2834, %v2841
  %v3063 = vcombine.low %v2842, %v2849
  %v3064 = vcombine.low %v2850, %v2857
  %v3066 = vunpack.c.l.s4 1966171168
  %v3067 = vunpack.c.0.s8 %v3066
  %v3068 = vlaneseq
  %v3069 = vshrl.u32 %v3068, 7
  %v3070 = vsub.s32 %v3067, %v3069
  %v3071 = vrot.slane %v3061, %v3070
  %v3073 = vunpack.c.l.s4 1966171168
  %v3074 = vunpack.c.0.s8 %v3073
  %v3075 = vlaneseq
  %v3076 = vshrl.u32 %v3075, 7
  %v3077 = vsub.s32 %v3074, %v3076
  %v3078 = vrot.slane %v3062, %v3077
  %v3080 = vunpack.c.l.s4 1966171168
  %v3081 = vunpack.c.0.s8 %v3080
  %v3082 = vlaneseq
  %v3083 = vshrl.u32 %v3082, 7
  %v3084 = vsub.s32 %v3081, %v3083
  %v3085 = vrot.slane %v3063, %v3084
  %v3087 = vunpack.c.l.s4 1966171168
  %v3088 = vunpack.c.0.s8 %v3087
  %v3089 = vlaneseq
  %v3090 = vshrl.u32 %v3089, 7
  %v3091 = vsub.s32 %v3088, %v3090
  %v3092 = vrot.slane %v3064, %v3091
  %v3093 = vcombine.low %v3071, %v3078
  %v3094 = vcombine.low %v3085, %v3092
  %v3096 = vunpack.c.l.s4 1966171168
  %v3097 = vunpack.c.0.s8 %v3096
  %v3098 = vlaneseq
  %v3099 = vshrl.u32 %v3098, 7
  %v3100 = vsub.s32 %v3097, %v3099
  %v3101 = vrot.slane %v3093, %v3100
  %v3103 = vunpack.c.l.s4 1966171168
  %v3104 = vunpack.c.0.s8 %v3103
  %v3105 = vlaneseq
  %v3106 = vshrl.u32 %v3105, 7
  %v3107 = vsub.s32 %v3104, %v3106
  %v3108 = vrot.slane %v3094, %v3107
  %v3109 = vcombine.low %v3101, %v3108
  %v3110 = vcombine.low %v2858, %v2866
  %v3111 = vcombine.low %v2873, %v2874
  %v3112 = vcombine.low %v2881, %v2882
  %v3113 = vcombine.low %v2889, %v2890
  %v3115 = vunpack.c.l.s4 1966171168
  %v3116 = vunpack.c.0.s8 %v3115
  %v3117 = vlaneseq
  %v3118 = vshrl.u32 %v3117, 7
  %v3119 = vsub.s32 %v3116, %v3118
  %v3120 = vrot.slane %v3110, %v3119
  %v3122 = vunpack.c.l.s4 1966171168
  %v3123 = vunpack.c.0.s8 %v3122
  %v3124 = vlaneseq
  %v3125 = vshrl.u32 %v3124, 7
  %v3126 = vsub.s32 %v3123, %v3125
  %v3127 = vrot.slane %v3111, %v3126
  %v3129 = vunpack.c.l.s4 1966171168
  %v3130 = vunpack.c.0.s8 %v3129
  %v3131 = vlaneseq
  %v3132 = vshrl.u32 %v3131, 7
  %v3133 = vsub.s32 %v3130, %v3132
  %v3134 = vrot.slane %v3112, %v3133
  %v3136 = vunpack.c.l.s4 1966171168
  %v3137 = vunpack.c.0.s8 %v3136
  %v3138 = vlaneseq
  %v3139 = vshrl.u32 %v3138, 7
  %v3140 = vsub.s32 %v3137, %v3139
  %v3141 = vrot.slane %v3113, %v3140
  %v3142 = vcombine.low %v3120, %v3127
  %v3143 = vcombine.low %v3134, %v3141
  %v3145 = vunpack.c.l.s4 1966171168
  %v3146 = vunpack.c.0.s8 %v3145
  %v3147 = vlaneseq
  %v3148 = vshrl.u32 %v3147, 7
  %v3149 = vsub.s32 %v3146, %v3148
  %v3150 = vrot.slane %v3142, %v3149
  %v3152 = vunpack.c.l.s4 1966171168
  %v3153 = vunpack.c.0.s8 %v3152
  %v3154 = vlaneseq
  %v3155 = vshrl.u32 %v3154, 7
  %v3156 = vsub.s32 %v3153, %v3155
  %v3157 = vrot.slane %v3143, %v3156
  %v3158 = vcombine.low %v3150, %v3157
  %v3159 = vcombine.low %v2897, %v2898
  %v3160 = vcombine.low %v2905, %v2906
  %v3161 = vcombine.low %v2913, %v2914
  %v3162 = vcombine.low %v2921, %v2922
  %v3164 = vunpack.c.l.s4 1966171168
  %v3165 = vunpack.c.0.s8 %v3164
  %v3166 = vlaneseq
  %v3167 = vshrl.u32 %v3166, 7
  %v3168 = vsub.s32 %v3165, %v3167
  %v3169 = vrot.slane %v3159, %v3168
  %v3171 = vunpack.c.l.s4 1966171168
  %v3172 = vunpack.c.0.s8 %v3171
  %v3173 = vlaneseq
  %v3174 = vshrl.u32 %v3173, 7
  %v3175 = vsub.s32 %v3172, %v3174
  %v3176 = vrot.slane %v3160, %v3175
  %v3178 = vunpack.c.l.s4 1966171168
  %v3179 = vunpack.c.0.s8 %v3178
  %v3180 = vlaneseq
  %v3181 = vshrl.u32 %v3180, 7
  %v3182 = vsub.s32 %v3179, %v3181
  %v3183 = vrot.slane %v3161, %v3182
  %v3185 = vunpack.c.l.s4 1966171168
  %v3186 = vunpack.c.0.s8 %v3185
  %v3187 = vlaneseq
  %v3188 = vshrl.u32 %v3187, 7
  %v3189 = vsub.s32 %v3186, %v3188
  %v3190 = vrot.slane %v3162, %v3189
  %v3191 = vcombine.low %v3169, %v3176
  %v3192 = vcombine.low %v3183, %v3190
  %v3194 = vunpack.c.l.s4 1966171168
  %v3195 = vunpack.c.0.s8 %v3194
  %v3196 = vlaneseq
  %v3197 = vshrl.u32 %v3196, 7
  %v3198 = vsub.s32 %v3195, %v3197
  %v3199 = vrot.slane %v3191, %v3198
  %v3201 = vunpack.c.l.s4 1966171168
  %v3202 = vunpack.c.0.s8 %v3201
  %v3203 = vlaneseq
  %v3204 = vshrl.u32 %v3203, 7
  %v3205 = vsub.s32 %v3202, %v3204
  %v3206 = vrot.slane %v3192, %v3205
  %v3207 = vcombine.low %v3199, %v3206
  %v3208 = vcombine.low %v2929, %v2930
  %v3209 = vcombine.low %v2937, %v2938
  %v3210 = vcombine.low %v2945, %v2946
  %v3211 = vcombine.low %v2953, %v2954
  %v3213 = vunpack.c.l.s4 1966171168
  %v3214 = vunpack.c.0.s8 %v3213
  %v3215 = vlaneseq
  %v3216 = vshrl.u32 %v3215, 7
  %v3217 = vsub.s32 %v3214, %v3216
  %v3218 = vrot.slane %v3208, %v3217
  %v3220 = vunpack.c.l.s4 1966171168
  %v3221 = vunpack.c.0.s8 %v3220
  %v3222 = vlaneseq
  %v3223 = vshrl.u32 %v3222, 7
  %v3224 = vsub.s32 %v3221, %v3223
  %v3225 = vrot.slane %v3209, %v3224
  %v3227 = vunpack.c.l.s4 1966171168
  %v3228 = vunpack.c.0.s8 %v3227
  %v3229 = vlaneseq
  %v3230 = vshrl.u32 %v3229, 7
  %v3231 = vsub.s32 %v3228, %v3230
  %v3232 = vrot.slane %v3210, %v3231
  %v3234 = vunpack.c.l.s4 1966171168
  %v3235 = vunpack.c.0.s8 %v3234
  %v3236 = vlaneseq
  %v3237 = vshrl.u32 %v3236, 7
  %v3238 = vsub.s32 %v3235, %v3237
  %v3239 = vrot.slane %v3211, %v3238
  %v3240 = vcombine.low %v3218, %v3225
  %v3241 = vcombine.low %v3232, %v3239
  %v3243 = vunpack.c.l.s4 1966171168
  %v3244 = vunpack.c.0.s8 %v3243
  %v3245 = vlaneseq
  %v3246 = vshrl.u32 %v3245, 7
  %v3247 = vsub.s32 %v3244, %v3246
  %v3248 = vrot.slane %v3240, %v3247
  %v3250 = vunpack.c.l.s4 1966171168
  %v3251 = vunpack.c.0.s8 %v3250
  %v3252 = vlaneseq
  %v3253 = vshrl.u32 %v3252, 7
  %v3254 = vsub.s32 %v3251, %v3253
  %v3255 = vrot.slane %v3241, %v3254
  %v3256 = vcombine.low %v3248, %v3255
  %v3257 = vcombine.low %v2961, %v2962
  %v3259 = vunpack.c.l.s4 1966171168
  %v3260 = vunpack.c.0.s8 %v3259
  %v3261 = vlaneseq
  %v3262 = vshrl.u32 %v3261, 7
  %v3263 = vsub.s32 %v3260, %v3262
  %v3264 = vrot.slane %v3257, %v3263
  %v3266 = vunpack.c.l.s4 1966171168
  %v3267 = vunpack.c.0.s8 %v3266
  %v3268 = vlaneseq
  %v3269 = vshrl.u32 %v3268, 7
  %v3270 = vsub.s32 %v3267, %v3269
  %v3271 = vrot.slane %v3264, %v3270
  %3279 = vmatprep.subr.mxu0 0.0
  %3280 = vmatpush1.msra.mxu0 %v2713
  %3281 = vmatprep.subr.mxu0 0.0
  %3282 = vmatpush1.msra.mxu0 %v2714
  %3283 = vmatprep.subr.mxu0 0.0
  %3284 = vmatpush1.msra.mxu0 %v2715
  %3285 = vmatprep.subr.mxu0 0.0
  %3286 = vmatpush1.msra.mxu0 %v2716
  %3287 = vmatprep.subr.mxu0 0.0
  %3288 = vmatpush1.msra.mxu0 %v2717
  %3289 = vmatprep.subr.mxu0 0.0
  %3290 = vmatpush1.msra.mxu0 %v2718
  %3291 = vmatprep.subr.mxu0 0.0
  %3292 = vmatpush1.msra.mxu0 %v2719
  %3293 = vmatprep.subr.mxu0 0.0
  %3294 = vmatpush1.msra.mxu0 %v2720
  %3295 = vmatprep.subr.mxu0 0.0
  %3296 = vmatpush1.msra.mxu0 %v2721
  %3297 = vmatprep.subr.mxu0 0.0
  %3298 = vmatpush1.msra.mxu0 %v2722
  %3299 = vmatprep.subr.mxu0 0.0
  %3300 = vmatpush1.msra.mxu0 %v2723
  %3301 = vmatprep.subr.mxu0 0.0
  %3302 = vmatpush1.msra.mxu0 %v2724
  %3303 = vmatprep.subr.mxu0 0.0
  %3304 = vmatpush1.msra.mxu0 %v2725
  %3305 = vmatprep.subr.mxu0 0.0
  %3306 = vmatpush1.msra.mxu0 %v2726
  %3307 = vmatprep.subr.mxu0 0.0
  %3308 = vmatpush1.msra.mxu0 %v2727
  %3309 = vmatprep.subr.mxu0 0.0
  %3310 = vmatpush1.msra.mxu0 %v2728
  %3311 = vmatprep.subr.mxu0 0.0
  %3312 = vmatpush1.msra.mxu0 0.0
  %3313 = vmatprep.subr.mxu0 0.0
  %3314 = vmatpush1.msra.mxu0 0.0
  %3315 = vmatprep.subr.mxu0 0.0
  %3316 = vmatpush1.msra.mxu0 0.0
  %3317 = vmatprep.subr.mxu0 0.0
  %3318 = vmatpush1.msra.mxu0 0.0
  %3319 = vmatprep.subr.mxu0 0.0
  %3320 = vmatpush1.msra.mxu0 0.0
  %3321 = vmatprep.subr.mxu0 0.0
  %3322 = vmatpush1.msra.mxu0 0.0
  %3323 = vmatprep.subr.mxu0 0.0
  %3324 = vmatpush1.msra.mxu0 0.0
  %3325 = vmatprep.subr.mxu0 0.0
  %3326 = vmatpush1.msra.mxu0 0.0
  %3327 = vmatprep.subr.mxu0 0.0
  %3328 = vmatpush1.msra.mxu0 0.0
  %3329 = vmatprep.subr.mxu0 0.0
  %3330 = vmatpush1.msra.mxu0 0.0
  %3331 = vmatprep.subr.mxu0 0.0
  %3332 = vmatpush1.msra.mxu0 0.0
  %3333 = vmatprep.subr.mxu0 0.0
  %3334 = vmatpush1.msra.mxu0 0.0
  %3335 = vmatprep.subr.mxu0 0.0
  %3336 = vmatpush1.msra.mxu0 0.0
  %3337 = vmatprep.subr.mxu0 0.0
  %3338 = vmatpush1.msra.mxu0 0.0
  %3339 = vmatprep.subr.mxu0 0.0
  %3340 = vmatpush1.msra.mxu0 0.0
  %3341 = vmatprep.subr.mxu0 0.0
  %3342 = vmatpush1.msra.mxu0 0.0
  %3343 = vmatprep.mubr.f32.mxu0 0.0
  %3344 = vmatmul.mubr.f32.gmra.mrb[0].mxu0 %v3011
  %v3345 = vpop.f32.mrb[0].mxu0
  %v3346 = vadd.f32 0.0, %v3345
  %v3347 = vpop.f32.mrb[0].mxu0
  %3348 = vmatprep.mubr.f32.mxu0 0.0
  %3349 = vmatmul.mubr.f32.gmra.mrb[0].mxu0 %v3060
  %v3350 = vpop.f32.mrb[0].mxu0
  %v3351 = vadd.f32 0.0, %v3350
  %v3352 = vpop.f32.mrb[0].mxu0
  %3353 = vmatprep.mubr.f32.mxu0 0.0
  %3354 = vmatmul.mubr.f32.gmra.mrb[0].mxu0 %v3109
  %v3355 = vpop.f32.mrb[0].mxu0
  %v3356 = vadd.f32 0.0, %v3355
  %v3357 = vpop.f32.mrb[0].mxu0
  %3358 = vmatprep.mubr.f32.mxu0 0.0
  %3359 = vmatmul.mubr.f32.gmra.mrb[0].mxu0 %v3158
  %v3360 = vpop.f32.mrb[0].mxu0
  %v3361 = vadd.f32 0.0, %v3360
  %v3362 = vpop.f32.mrb[0].mxu0
  %3363 = vmatprep.mubr.f32.mxu0 0.0
  %3364 = vmatmul.mubr.f32.gmra.mrb[0].mxu0 %v3207
  %v3365 = vpop.f32.mrb[0].mxu0
  %v3366 = vadd.f32 0.0, %v3365
  %v3367 = vpop.f32.mrb[0].mxu0
  %3368 = vmatprep.mubr.f32.mxu0 0.0
  %3369 = vmatmul.mubr.f32.gmra.mrb[0].mxu0 %v3256
  %v3370 = vpop.f32.mrb[0].mxu0
  %v3371 = vadd.f32 0.0, %v3370
  %v3372 = vpop.f32.mrb[0].mxu0
  %3373 = vmatprep.mubr.f32.mxu0 0.0
  %3374 = vmatmul.mubr.f32.gmra.mrb[0].mxu0 %v3271
  %v3375 = vpop.f32.mrb[0].mxu0
  %v3376 = vadd.f32 0.0, %v3375
  %v3377 = vpop.f32.mrb[0].mxu0
  %3378 = vdwg.mxu0
  %v3379 = vcombine.low %v2761, %v2762
  %v3380 = vcombine.low %v2769, %v2770
  %v3381 = vcombine.low %v2777, %v2778
  %v3382 = vcombine.low %v2785, %v2786
  %v3384 = vunpack.c.l.s4 1966171168
  %v3385 = vunpack.c.0.s8 %v3384
  %v3386 = vlaneseq
  %v3387 = vshrl.u32 %v3386, 7
  %v3388 = vsub.s32 %v3385, %v3387
  %v3389 = vrot.slane %v3379, %v3388
  %v3391 = vunpack.c.l.s4 1966171168
  %v3392 = vunpack.c.0.s8 %v3391
  %v3393 = vlaneseq
  %v3394 = vshrl.u32 %v3393, 7
  %v3395 = vsub.s32 %v3392, %v3394
  %v3396 = vrot.slane %v3380, %v3395
  %v3398 = vunpack.c.l.s4 1966171168
  %v3399 = vunpack.c.0.s8 %v3398
  %v3400 = vlaneseq
  %v3401 = vshrl.u32 %v3400, 7
  %v3402 = vsub.s32 %v3399, %v3401
  %v3403 = vrot.slane %v3381, %v3402
  %v3405 = vunpack.c.l.s4 1966171168
  %v3406 = vunpack.c.0.s8 %v3405
  %v3407 = vlaneseq
  %v3408 = vshrl.u32 %v3407, 7
  %v3409 = vsub.s32 %v3406, %v3408
  %v3410 = vrot.slane %v3382, %v3409
  %v3411 = vcombine.low %v3389, %v3396
  %v3412 = vcombine.low %v3403, %v3410
  %v3414 = vunpack.c.l.s4 1966171168
  %v3415 = vunpack.c.0.s8 %v3414
  %v3416 = vlaneseq
  %v3417 = vshrl.u32 %v3416, 7
  %v3418 = vsub.s32 %v3415, %v3417
  %v3419 = vrot.slane %v3411, %v3418
  %v3421 = vunpack.c.l.s4 1966171168
  %v3422 = vunpack.c.0.s8 %v3421
  %v3423 = vlaneseq
  %v3424 = vshrl.u32 %v3423, 7
  %v3425 = vsub.s32 %v3422, %v3424
  %v3426 = vrot.slane %v3412, %v3425
  %v3427 = vcombine.low %v3419, %v3426
  %v3428 = vcombine.low %v2793, %v2794
  %v3429 = vcombine.low %v2801, %v2802
  %v3430 = vcombine.low %v2809, %v2810
  %v3431 = vcombine.low %v2817, %v2818
  %v3433 = vunpack.c.l.s4 1966171168
  %v3434 = vunpack.c.0.s8 %v3433
  %v3435 = vlaneseq
  %v3436 = vshrl.u32 %v3435, 7
  %v3437 = vsub.s32 %v3434, %v3436
  %v3438 = vrot.slane %v3428, %v3437
  %v3440 = vunpack.c.l.s4 1966171168
  %v3441 = vunpack.c.0.s8 %v3440
  %v3442 = vlaneseq
  %v3443 = vshrl.u32 %v3442, 7
  %v3444 = vsub.s32 %v3441, %v3443
  %v3445 = vrot.slane %v3429, %v3444
  %v3447 = vunpack.c.l.s4 1966171168
  %v3448 = vunpack.c.0.s8 %v3447
  %v3449 = vlaneseq
  %v3450 = vshrl.u32 %v3449, 7
  %v3451 = vsub.s32 %v3448, %v3450
  %v3452 = vrot.slane %v3430, %v3451
  %v3454 = vunpack.c.l.s4 1966171168
  %v3455 = vunpack.c.0.s8 %v3454
  %v3456 = vlaneseq
  %v3457 = vshrl.u32 %v3456, 7
  %v3458 = vsub.s32 %v3455, %v3457
  %v3459 = vrot.slane %v3431, %v3458
  %v3460 = vcombine.low %v3438, %v3445
  %v3461 = vcombine.low %v3452, %v3459
  %v3463 = vunpack.c.l.s4 1966171168
  %v3464 = vunpack.c.0.s8 %v3463
  %v3465 = vlaneseq
  %v3466 = vshrl.u32 %v3465, 7
  %v3467 = vsub.s32 %v3464, %v3466
  %v3468 = vrot.slane %v3460, %v3467
  %v3470 = vunpack.c.l.s4 1966171168
  %v3471 = vunpack.c.0.s8 %v3470
  %v3472 = vlaneseq
  %v3473 = vshrl.u32 %v3472, 7
  %v3474 = vsub.s32 %v3471, %v3473
  %v3475 = vrot.slane %v3461, %v3474
  %v3476 = vcombine.low %v3468, %v3475
  %v3477 = vcombine.low %v2825, %v2826
  %v3478 = vcombine.low %v2833, %v2834
  %v3479 = vcombine.low %v2841, %v2842
  %v3480 = vcombine.low %v2849, %v2850
  %v3482 = vunpack.c.l.s4 1966171168
  %v3483 = vunpack.c.0.s8 %v3482
  %v3484 = vlaneseq
  %v3485 = vshrl.u32 %v3484, 7
  %v3486 = vsub.s32 %v3483, %v3485
  %v3487 = vrot.slane %v3477, %v3486
  %v3489 = vunpack.c.l.s4 1966171168
  %v3490 = vunpack.c.0.s8 %v3489
  %v3491 = vlaneseq
  %v3492 = vshrl.u32 %v3491, 7
  %v3493 = vsub.s32 %v3490, %v3492
  %v3494 = vrot.slane %v3478, %v3493
  %v3496 = vunpack.c.l.s4 1966171168
  %v3497 = vunpack.c.0.s8 %v3496
  %v3498 = vlaneseq
  %v3499 = vshrl.u32 %v3498, 7
  %v3500 = vsub.s32 %v3497, %v3499
  %v3501 = vrot.slane %v3479, %v3500
  %v3503 = vunpack.c.l.s4 1966171168
  %v3504 = vunpack.c.0.s8 %v3503
  %v3505 = vlaneseq
  %v3506 = vshrl.u32 %v3505, 7
  %v3507 = vsub.s32 %v3504, %v3506
  %v3508 = vrot.slane %v3480, %v3507
  %v3509 = vcombine.low %v3487, %v3494
  %v3510 = vcombine.low %v3501, %v3508
  %v3512 = vunpack.c.l.s4 1966171168
  %v3513 = vunpack.c.0.s8 %v3512
  %v3514 = vlaneseq
  %v3515 = vshrl.u32 %v3514, 7
  %v3516 = vsub.s32 %v3513, %v3515
  %v3517 = vrot.slane %v3509, %v3516
  %v3519 = vunpack.c.l.s4 1966171168
  %v3520 = vunpack.c.0.s8 %v3519
  %v3521 = vlaneseq
  %v3522 = vshrl.u32 %v3521, 7
  %v3523 = vsub.s32 %v3520, %v3522
  %v3524 = vrot.slane %v3510, %v3523
  %v3525 = vcombine.low %v3517, %v3524
  %v3526 = vcombine.low %v2857, %v2865
  %v3527 = vcombine.low %v2866, %v2873
  %v3528 = vcombine.low %v2874, %v2881
  %v3529 = vcombine.low %v2882, %v2889
  %v3531 = vunpack.c.l.s4 1966171168
  %v3532 = vunpack.c.0.s8 %v3531
  %v3533 = vlaneseq
  %v3534 = vshrl.u32 %v3533, 7
  %v3535 = vsub.s32 %v3532, %v3534
  %v3536 = vrot.slane %v3526, %v3535
  %v3538 = vunpack.c.l.s4 1966171168
  %v3539 = vunpack.c.0.s8 %v3538
  %v3540 = vlaneseq
  %v3541 = vshrl.u32 %v3540, 7
  %v3542 = vsub.s32 %v3539, %v3541
  %v3543 = vrot.slane %v3527, %v3542
  %v3545 = vunpack.c.l.s4 1966171168
  %v3546 = vunpack.c.0.s8 %v3545
  %v3547 = vlaneseq
  %v3548 = vshrl.u32 %v3547, 7
  %v3549 = vsub.s32 %v3546, %v3548
  %v3550 = vrot.slane %v3528, %v3549
  %v3552 = vunpack.c.l.s4 1966171168
  %v3553 = vunpack.c.0.s8 %v3552
  %v3554 = vlaneseq
  %v3555 = vshrl.u32 %v3554, 7
  %v3556 = vsub.s32 %v3553, %v3555
  %v3557 = vrot.slane %v3529, %v3556
  %v3558 = vcombine.low %v3536, %v3543
  %v3559 = vcombine.low %v3550, %v3557
  %v3561 = vunpack.c.l.s4 1966171168
  %v3562 = vunpack.c.0.s8 %v3561
  %v3563 = vlaneseq
  %v3564 = vshrl.u32 %v3563, 7
  %v3565 = vsub.s32 %v3562, %v3564
  %v3566 = vrot.slane %v3558, %v3565
  %v3568 = vunpack.c.l.s4 1966171168
  %v3569 = vunpack.c.0.s8 %v3568
  %v3570 = vlaneseq
  %v3571 = vshrl.u32 %v3570, 7
  %v3572 = vsub.s32 %v3569, %v3571
  %v3573 = vrot.slane %v3559, %v3572
  %v3574 = vcombine.low %v3566, %v3573
  %v3575 = vcombine.low %v2890, %v2897
  %v3576 = vcombine.low %v2898, %v2905
  %v3577 = vcombine.low %v2906, %v2913
  %v3578 = vcombine.low %v2914, %v2921
  %v3580 = vunpack.c.l.s4 1966171168
  %v3581 = vunpack.c.0.s8 %v3580
  %v3582 = vlaneseq
  %v3583 = vshrl.u32 %v3582, 7
  %v3584 = vsub.s32 %v3581, %v3583
  %v3585 = vrot.slane %v3575, %v3584
  %v3587 = vunpack.c.l.s4 1966171168
  %v3588 = vunpack.c.0.s8 %v3587
  %v3589 = vlaneseq
  %v3590 = vshrl.u32 %v3589, 7
  %v3591 = vsub.s32 %v3588, %v3590
  %v3592 = vrot.slane %v3576, %v3591
  %v3594 = vunpack.c.l.s4 1966171168
  %v3595 = vunpack.c.0.s8 %v3594
  %v3596 = vlaneseq
  %v3597 = vshrl.u32 %v3596, 7
  %v3598 = vsub.s32 %v3595, %v3597
  %v3599 = vrot.slane %v3577, %v3598
  %v3601 = vunpack.c.l.s4 1966171168
  %v3602 = vunpack.c.0.s8 %v3601
  %v3603 = vlaneseq
  %v3604 = vshrl.u32 %v3603, 7
  %v3605 = vsub.s32 %v3602, %v3604
  %v3606 = vrot.slane %v3578, %v3605
  %v3607 = vcombine.low %v3585, %v3592
  %v3608 = vcombine.low %v3599, %v3606
  %v3610 = vunpack.c.l.s4 1966171168
  %v3611 = vunpack.c.0.s8 %v3610
  %v3612 = vlaneseq
  %v3613 = vshrl.u32 %v3612, 7
  %v3614 = vsub.s32 %v3611, %v3613
  %v3615 = vrot.slane %v3607, %v3614
  %v3617 = vunpack.c.l.s4 1966171168
  %v3618 = vunpack.c.0.s8 %v3617
  %v3619 = vlaneseq
  %v3620 = vshrl.u32 %v3619, 7
  %v3621 = vsub.s32 %v3618, %v3620
  %v3622 = vrot.slane %v3608, %v3621
  %v3623 = vcombine.low %v3615, %v3622
  %v3624 = vcombine.low %v2922, %v2929
  %v3625 = vcombine.low %v2930, %v2937
  %v3626 = vcombine.low %v2938, %v2945
  %v3627 = vcombine.low %v2946, %v2953
  %v3629 = vunpack.c.l.s4 1966171168
  %v3630 = vunpack.c.0.s8 %v3629
  %v3631 = vlaneseq
  %v3632 = vshrl.u32 %v3631, 7
  %v3633 = vsub.s32 %v3630, %v3632
  %v3634 = vrot.slane %v3624, %v3633
  %v3636 = vunpack.c.l.s4 1966171168
  %v3637 = vunpack.c.0.s8 %v3636
  %v3638 = vlaneseq
  %v3639 = vshrl.u32 %v3638, 7
  %v3640 = vsub.s32 %v3637, %v3639
  %v3641 = vrot.slane %v3625, %v3640
  %v3643 = vunpack.c.l.s4 1966171168
  %v3644 = vunpack.c.0.s8 %v3643
  %v3645 = vlaneseq
  %v3646 = vshrl.u32 %v3645, 7
  %v3647 = vsub.s32 %v3644, %v3646
  %v3648 = vrot.slane %v3626, %v3647
  %v3650 = vunpack.c.l.s4 1966171168
  %v3651 = vunpack.c.0.s8 %v3650
  %v3652 = vlaneseq
  %v3653 = vshrl.u32 %v3652, 7
  %v3654 = vsub.s32 %v3651, %v3653
  %v3655 = vrot.slane %v3627, %v3654
  %v3656 = vcombine.low %v3634, %v3641
  %v3657 = vcombine.low %v3648, %v3655
  %v3659 = vunpack.c.l.s4 1966171168
  %v3660 = vunpack.c.0.s8 %v3659
  %v3661 = vlaneseq
  %v3662 = vshrl.u32 %v3661, 7
  %v3663 = vsub.s32 %v3660, %v3662
  %v3664 = vrot.slane %v3656, %v3663
  %v3666 = vunpack.c.l.s4 1966171168
  %v3667 = vunpack.c.0.s8 %v3666
  %v3668 = vlaneseq
  %v3669 = vshrl.u32 %v3668, 7
  %v3670 = vsub.s32 %v3667, %v3669
  %v3671 = vrot.slane %v3657, %v3670
  %v3672 = vcombine.low %v3664, %v3671
  %v3673 = vcombine.low %v2954, %v2961
  %v3675 = vunpack.c.l.s4 1966171168
  %v3676 = vunpack.c.0.s8 %v3675
  %v3677 = vlaneseq
  %v3678 = vshrl.u32 %v3677, 7
  %v3679 = vsub.s32 %v3676, %v3678
  %v3680 = vrot.slane %v3673, %v3679
  %v3682 = vunpack.c.l.s4 1966171168
  %v3683 = vunpack.c.0.s8 %v3682
  %v3684 = vlaneseq
  %v3685 = vshrl.u32 %v3684, 7
  %v3686 = vsub.s32 %v3683, %v3685
  %v3687 = vrot.slane %v3680, %v3686
  %3695 = vmatprep.subr.mxu0 0.0
  %3696 = vmatpush1.msra.mxu0 %v2696
  %3697 = vmatprep.subr.mxu0 0.0
  %3698 = vmatpush1.msra.mxu0 %v2697
  %3699 = vmatprep.subr.mxu0 0.0
  %3700 = vmatpush1.msra.mxu0 %v2698
  %3701 = vmatprep.subr.mxu0 0.0
  %3702 = vmatpush1.msra.mxu0 %v2699
  %3703 = vmatprep.subr.mxu0 0.0
  %3704 = vmatpush1.msra.mxu0 %v2700
  %3705 = vmatprep.subr.mxu0 0.0
  %3706 = vmatpush1.msra.mxu0 %v2701
  %3707 = vmatprep.subr.mxu0 0.0
  %3708 = vmatpush1.msra.mxu0 %v2702
  %3709 = vmatprep.subr.mxu0 0.0
  %3710 = vmatpush1.msra.mxu0 %v2703
  %3711 = vmatprep.subr.mxu0 0.0
  %3712 = vmatpush1.msra.mxu0 %v2704
  %3713 = vmatprep.subr.mxu0 0.0
  %3714 = vmatpush1.msra.mxu0 %v2705
  %3715 = vmatprep.subr.mxu0 0.0
  %3716 = vmatpush1.msra.mxu0 %v2706
  %3717 = vmatprep.subr.mxu0 0.0
  %3718 = vmatpush1.msra.mxu0 %v2707
  %3719 = vmatprep.subr.mxu0 0.0
  %3720 = vmatpush1.msra.mxu0 %v2708
  %3721 = vmatprep.subr.mxu0 0.0
  %3722 = vmatpush1.msra.mxu0 %v2709
  %3723 = vmatprep.subr.mxu0 0.0
  %3724 = vmatpush1.msra.mxu0 %v2710
  %3725 = vmatprep.subr.mxu0 0.0
  %3726 = vmatpush1.msra.mxu0 %v2711
  %3727 = vmatprep.subr.mxu0 0.0
  %3728 = vmatpush1.msra.mxu0 0.0
  %3729 = vmatprep.subr.mxu0 0.0
  %3730 = vmatpush1.msra.mxu0 0.0
  %3731 = vmatprep.subr.mxu0 0.0
  %3732 = vmatpush1.msra.mxu0 0.0
  %3733 = vmatprep.subr.mxu0 0.0
  %3734 = vmatpush1.msra.mxu0 0.0
  %3735 = vmatprep.subr.mxu0 0.0
  %3736 = vmatpush1.msra.mxu0 0.0
  %3737 = vmatprep.subr.mxu0 0.0
  %3738 = vmatpush1.msra.mxu0 0.0
  %3739 = vmatprep.subr.mxu0 0.0
  %3740 = vmatpush1.msra.mxu0 0.0
  %3741 = vmatprep.subr.mxu0 0.0
  %3742 = vmatpush1.msra.mxu0 0.0
  %3743 = vmatprep.subr.mxu0 0.0
  %3744 = vmatpush1.msra.mxu0 0.0
  %3745 = vmatprep.subr.mxu0 0.0
  %3746 = vmatpush1.msra.mxu0 0.0
  %3747 = vmatprep.subr.mxu0 0.0
  %3748 = vmatpush1.msra.mxu0 0.0
  %3749 = vmatprep.subr.mxu0 0.0
  %3750 = vmatpush1.msra.mxu0 0.0
  %3751 = vmatprep.subr.mxu0 0.0
  %3752 = vmatpush1.msra.mxu0 0.0
  %3753 = vmatprep.subr.mxu0 0.0
  %3754 = vmatpush1.msra.mxu0 0.0
  %3755 = vmatprep.subr.mxu0 0.0
  %3756 = vmatpush1.msra.mxu0 0.0
  %3757 = vmatprep.subr.mxu0 0.0
  %3758 = vmatpush1.msra.mxu0 0.0
  %3759 = vmatprep.mubr.f32.mxu0 0.0
  %3760 = vmatmul.mubr.f32.gmra.mrb[0].mxu0 %v3427
  %v3761 = vpop.f32.mrb[0].mxu0
  %v3762 = vadd.f32 %v3346, %v3761
  %v3763 = vpop.f32.mrb[0].mxu0
  %3764 = vmatprep.mubr.f32.mxu0 0.0
  %3765 = vmatmul.mubr.f32.gmra.mrb[0].mxu0 %v3476
  %v3766 = vpop.f32.mrb[0].mxu0
  %v3767 = vadd.f32 %v3351, %v3766
  %v3768 = vpop.f32.mrb[0].mxu0
  %3769 = vmatprep.mubr.f32.mxu0 0.0
  %3770 = vmatmul.mubr.f32.gmra.mrb[0].mxu0 %v3525
  %v3771 = vpop.f32.mrb[0].mxu0
  %v3772 = vadd.f32 %v3356, %v3771
  %v3773 = vpop.f32.mrb[0].mxu0
  %3774 = vmatprep.mubr.f32.mxu0 0.0
  %3775 = vmatmul.mubr.f32.gmra.mrb[0].mxu0 %v3574
  %v3776 = vpop.f32.mrb[0].mxu0
  %v3777 = vadd.f32 %v3361, %v3776
  %v3778 = vpop.f32.mrb[0].mxu0
  %3779 = vmatprep.mubr.f32.mxu0 0.0
  %3780 = vmatmul.mubr.f32.gmra.mrb[0].mxu0 %v3623
  %v3781 = vpop.f32.mrb[0].mxu0
  %v3782 = vadd.f32 %v3366, %v3781
  %v3783 = vpop.f32.mrb[0].mxu0
  %3784 = vmatprep.mubr.f32.mxu0 0.0
  %3785 = vmatmul.mubr.f32.gmra.mrb[0].mxu0 %v3672
  %v3786 = vpop.f32.mrb[0].mxu0
  %v3787 = vadd.f32 %v3371, %v3786
  %v3788 = vpop.f32.mrb[0].mxu0
  %3789 = vmatprep.mubr.f32.mxu0 0.0
  %3790 = vmatmul.mubr.f32.gmra.mrb[0].mxu0 %v3687
  %v3791 = vpop.f32.mrb[0].mxu0
  %v3792 = vadd.f32 %v3376, %v3791
  %v3793 = vpop.f32.mrb[0].mxu0
  %3794 = vdwg.mxu0
  %v3802 = vcombine.high %v3762, %v3762
  %v3804 = vunpack.c.l.s4 1966171168
  %v3805 = vunpack.c.0.s8 %v3804
  %v3806 = vlaneseq
  %v3807 = vshrl.u32 %v3806, 7
  %v3808 = vsub.s32 %v3805, %v3807
  %v3809 = vrot.slane %v3762, %v3808
  %v3811 = vunpack.c.l.s4 1966171168
  %v3812 = vunpack.c.0.s8 %v3811
  %v3813 = vlaneseq
  %v3814 = vshrl.u32 %v3813, 7
  %v3815 = vsub.s32 %v3812, %v3814
  %v3816 = vrot.slane %v3802, %v3815
  %v3817 = vcombine.high %v3809, %v3809
  %v3818 = vcombine.high %v3816, %v3816
  %v3820 = vunpack.c.l.s4 1966171168
  %v3821 = vunpack.c.0.s8 %v3820
  %v3822 = vlaneseq
  %v3823 = vshrl.u32 %v3822, 7
  %v3824 = vsub.s32 %v3821, %v3823
  %v3825 = vrot.slane %v3809, %v3824
  %v3827 = vunpack.c.l.s4 1966171168
  %v3828 = vunpack.c.0.s8 %v3827
  %v3829 = vlaneseq
  %v3830 = vshrl.u32 %v3829, 7
  %v3831 = vsub.s32 %v3828, %v3830
  %v3832 = vrot.slane %v3816, %v3831
  %v3834 = vunpack.c.l.s4 1966171168
  %v3835 = vunpack.c.0.s8 %v3834
  %v3836 = vlaneseq
  %v3837 = vshrl.u32 %v3836, 7
  %v3838 = vsub.s32 %v3835, %v3837
  %v3839 = vrot.slane %v3817, %v3838
  %v3841 = vunpack.c.l.s4 1966171168
  %v3842 = vunpack.c.0.s8 %v3841
  %v3843 = vlaneseq
  %v3844 = vshrl.u32 %v3843, 7
  %v3845 = vsub.s32 %v3842, %v3844
  %v3846 = vrot.slane %v3818, %v3845
  %v3847 = vcombine.high %v3825, %v3825
  %v3848 = vcombine.high %v3832, %v3832
  %v3849 = vcombine.high %v3839, %v3839
  %v3850 = vcombine.high %v3846, %v3846
  %v3851 = vcombine.high %v3767, %v3767
  %v3853 = vunpack.c.l.s4 1966171168
  %v3854 = vunpack.c.0.s8 %v3853
  %v3855 = vlaneseq
  %v3856 = vshrl.u32 %v3855, 7
  %v3857 = vsub.s32 %v3854, %v3856
  %v3858 = vrot.slane %v3767, %v3857
  %v3860 = vunpack.c.l.s4 1966171168
  %v3861 = vunpack.c.0.s8 %v3860
  %v3862 = vlaneseq
  %v3863 = vshrl.u32 %v3862, 7
  %v3864 = vsub.s32 %v3861, %v3863
  %v3865 = vrot.slane %v3851, %v3864
  %v3866 = vcombine.high %v3858, %v3858
  %v3867 = vcombine.high %v3865, %v3865
  %v3869 = vunpack.c.l.s4 1966171168
  %v3870 = vunpack.c.0.s8 %v3869
  %v3871 = vlaneseq
  %v3872 = vshrl.u32 %v3871, 7
  %v3873 = vsub.s32 %v3870, %v3872
  %v3874 = vrot.slane %v3858, %v3873
  %v3876 = vunpack.c.l.s4 1966171168
  %v3877 = vunpack.c.0.s8 %v3876
  %v3878 = vlaneseq
  %v3879 = vshrl.u32 %v3878, 7
  %v3880 = vsub.s32 %v3877, %v3879
  %v3881 = vrot.slane %v3865, %v3880
  %v3883 = vunpack.c.l.s4 1966171168
  %v3884 = vunpack.c.0.s8 %v3883
  %v3885 = vlaneseq
  %v3886 = vshrl.u32 %v3885, 7
  %v3887 = vsub.s32 %v3884, %v3886
  %v3888 = vrot.slane %v3866, %v3887
  %v3890 = vunpack.c.l.s4 1966171168
  %v3891 = vunpack.c.0.s8 %v3890
  %v3892 = vlaneseq
  %v3893 = vshrl.u32 %v3892, 7
  %v3894 = vsub.s32 %v3891, %v3893
  %v3895 = vrot.slane %v3867, %v3894
  %v3896 = vcombine.high %v3874, %v3874
  %v3897 = vcombine.high %v3881, %v3881
  %v3898 = vcombine.high %v3888, %v3888
  %v3899 = vcombine.high %v3895, %v3895
  %v3900 = vcombine.high %v3772, %v3772
  %v3902 = vunpack.c.l.s4 1966171168
  %v3903 = vunpack.c.0.s8 %v3902
  %v3904 = vlaneseq
  %v3905 = vshrl.u32 %v3904, 7
  %v3906 = vsub.s32 %v3903, %v3905
  %v3907 = vrot.slane %v3772, %v3906
  %v3909 = vunpack.c.l.s4 1966171168
  %v3910 = vunpack.c.0.s8 %v3909
  %v3911 = vlaneseq
  %v3912 = vshrl.u32 %v3911, 7
  %v3913 = vsub.s32 %v3910, %v3912
  %v3914 = vrot.slane %v3900, %v3913
  %v3915 = vcombine.high %v3907, %v3907
  %v3916 = vcombine.high %v3914, %v3914
  %v3918 = vunpack.c.l.s4 1966171168
  %v3919 = vunpack.c.0.s8 %v3918
  %v3920 = vlaneseq
  %v3921 = vshrl.u32 %v3920, 7
  %v3922 = vsub.s32 %v3919, %v3921
  %v3923 = vrot.slane %v3907, %v3922
  %v3925 = vunpack.c.l.s4 1966171168
  %v3926 = vunpack.c.0.s8 %v3925
  %v3927 = vlaneseq
  %v3928 = vshrl.u32 %v3927, 7
  %v3929 = vsub.s32 %v3926, %v3928
  %v3930 = vrot.slane %v3914, %v3929
  %v3932 = vunpack.c.l.s4 1966171168
  %v3933 = vunpack.c.0.s8 %v3932
  %v3934 = vlaneseq
  %v3935 = vshrl.u32 %v3934, 7
  %v3936 = vsub.s32 %v3933, %v3935
  %v3937 = vrot.slane %v3915, %v3936
  %v3939 = vunpack.c.l.s4 1966171168
  %v3940 = vunpack.c.0.s8 %v3939
  %v3941 = vlaneseq
  %v3942 = vshrl.u32 %v3941, 7
  %v3943 = vsub.s32 %v3940, %v3942
  %v3944 = vrot.slane %v3916, %v3943
  %v3945 = vcombine.high %v3923, %v3923
  %v3946 = vcombine.high %v3930, %v3930
  %v3947 = vcombine.high %v3937, %v3937
  %v3948 = vcombine.high %v3944, %v3944
  %v3949 = vcombine.high %v3777, %v3777
  %v3951 = vunpack.c.l.s4 1966171168
  %v3952 = vunpack.c.0.s8 %v3951
  %v3953 = vlaneseq
  %v3954 = vshrl.u32 %v3953, 7
  %v3955 = vsub.s32 %v3952, %v3954
  %v3956 = vrot.slane %v3777, %v3955
  %v3958 = vunpack.c.l.s4 1966171168
  %v3959 = vunpack.c.0.s8 %v3958
  %v3960 = vlaneseq
  %v3961 = vshrl.u32 %v3960, 7
  %v3962 = vsub.s32 %v3959, %v3961
  %v3963 = vrot.slane %v3949, %v3962
  %v3964 = vcombine.high %v3956, %v3956
  %v3965 = vcombine.high %v3963, %v3963
  %v3967 = vunpack.c.l.s4 1966171168
  %v3968 = vunpack.c.0.s8 %v3967
  %v3969 = vlaneseq
  %v3970 = vshrl.u32 %v3969, 7
  %v3971 = vsub.s32 %v3968, %v3970
  %v3972 = vrot.slane %v3956, %v3971
  %v3974 = vunpack.c.l.s4 1966171168
  %v3975 = vunpack.c.0.s8 %v3974
  %v3976 = vlaneseq
  %v3977 = vshrl.u32 %v3976, 7
  %v3978 = vsub.s32 %v3975, %v3977
  %v3979 = vrot.slane %v3963, %v3978
  %v3981 = vunpack.c.l.s4 1966171168
  %v3982 = vunpack.c.0.s8 %v3981
  %v3983 = vlaneseq
  %v3984 = vshrl.u32 %v3983, 7
  %v3985 = vsub.s32 %v3982, %v3984
  %v3986 = vrot.slane %v3964, %v3985
  %v3988 = vunpack.c.l.s4 1966171168
  %v3989 = vunpack.c.0.s8 %v3988
  %v3990 = vlaneseq
  %v3991 = vshrl.u32 %v3990, 7
  %v3992 = vsub.s32 %v3989, %v3991
  %v3993 = vrot.slane %v3965, %v3992
  %v3994 = vcombine.high %v3972, %v3972
  %v3995 = vcombine.high %v3979, %v3979
  %v3996 = vcombine.high %v3986, %v3986
  %v3997 = vcombine.high %v3993, %v3993
  %v3998 = vcombine.high %v3782, %v3782
  %v4000 = vunpack.c.l.s4 1966171168
  %v4001 = vunpack.c.0.s8 %v4000
  %v4002 = vlaneseq
  %v4003 = vshrl.u32 %v4002, 7
  %v4004 = vsub.s32 %v4001, %v4003
  %v4005 = vrot.slane %v3782, %v4004
  %v4007 = vunpack.c.l.s4 1966171168
  %v4008 = vunpack.c.0.s8 %v4007
  %v4009 = vlaneseq
  %v4010 = vshrl.u32 %v4009, 7
  %v4011 = vsub.s32 %v4008, %v4010
  %v4012 = vrot.slane %v3998, %v4011
  %v4013 = vcombine.high %v4005, %v4005
  %v4014 = vcombine.high %v4012, %v4012
  %v4016 = vunpack.c.l.s4 1966171168
  %v4017 = vunpack.c.0.s8 %v4016
  %v4018 = vlaneseq
  %v4019 = vshrl.u32 %v4018, 7
  %v4020 = vsub.s32 %v4017, %v4019
  %v4021 = vrot.slane %v4005, %v4020
  %v4023 = vunpack.c.l.s4 1966171168
  %v4024 = vunpack.c.0.s8 %v4023
  %v4025 = vlaneseq
  %v4026 = vshrl.u32 %v4025, 7
  %v4027 = vsub.s32 %v4024, %v4026
  %v4028 = vrot.slane %v4012, %v4027
  %v4030 = vunpack.c.l.s4 1966171168
  %v4031 = vunpack.c.0.s8 %v4030
  %v4032 = vlaneseq
  %v4033 = vshrl.u32 %v4032, 7
  %v4034 = vsub.s32 %v4031, %v4033
  %v4035 = vrot.slane %v4013, %v4034
  %v4037 = vunpack.c.l.s4 1966171168
  %v4038 = vunpack.c.0.s8 %v4037
  %v4039 = vlaneseq
  %v4040 = vshrl.u32 %v4039, 7
  %v4041 = vsub.s32 %v4038, %v4040
  %v4042 = vrot.slane %v4014, %v4041
  %v4043 = vcombine.high %v4021, %v4021
  %v4044 = vcombine.high %v4028, %v4028
  %v4045 = vcombine.high %v4035, %v4035
  %v4046 = vcombine.high %v4042, %v4042
  %v4047 = vcombine.high %v3787, %v3787
  %v4049 = vunpack.c.l.s4 1966171168
  %v4050 = vunpack.c.0.s8 %v4049
  %v4051 = vlaneseq
  %v4052 = vshrl.u32 %v4051, 7
  %v4053 = vsub.s32 %v4050, %v4052
  %v4054 = vrot.slane %v3787, %v4053
  %v4056 = vunpack.c.l.s4 1966171168
  %v4057 = vunpack.c.0.s8 %v4056
  %v4058 = vlaneseq
  %v4059 = vshrl.u32 %v4058, 7
  %v4060 = vsub.s32 %v4057, %v4059
  %v4061 = vrot.slane %v4047, %v4060
  %v4062 = vcombine.high %v4054, %v4054
  %v4063 = vcombine.high %v4061, %v4061
  %v4065 = vunpack.c.l.s4 1966171168
  %v4066 = vunpack.c.0.s8 %v4065
  %v4067 = vlaneseq
  %v4068 = vshrl.u32 %v4067, 7
  %v4069 = vsub.s32 %v4066, %v4068
  %v4070 = vrot.slane %v4054, %v4069
  %v4072 = vunpack.c.l.s4 1966171168
  %v4073 = vunpack.c.0.s8 %v4072
  %v4074 = vlaneseq
  %v4075 = vshrl.u32 %v4074, 7
  %v4076 = vsub.s32 %v4073, %v4075
  %v4077 = vrot.slane %v4061, %v4076
  %v4079 = vunpack.c.l.s4 1966171168
  %v4080 = vunpack.c.0.s8 %v4079
  %v4081 = vlaneseq
  %v4082 = vshrl.u32 %v4081, 7
  %v4083 = vsub.s32 %v4080, %v4082
  %v4084 = vrot.slane %v4062, %v4083
  %v4086 = vunpack.c.l.s4 1966171168
  %v4087 = vunpack.c.0.s8 %v4086
  %v4088 = vlaneseq
  %v4089 = vshrl.u32 %v4088, 7
  %v4090 = vsub.s32 %v4087, %v4089
  %v4091 = vrot.slane %v4063, %v4090
  %v4092 = vcombine.high %v4070, %v4070
  %v4093 = vcombine.high %v4077, %v4077
  %v4094 = vcombine.high %v4084, %v4084
  %v4095 = vcombine.high %v4091, %v4091
  %v4097 = vunpack.c.l.s4 1966171168
  %v4098 = vunpack.c.0.s8 %v4097
  %v4099 = vlaneseq
  %v4100 = vshrl.u32 %v4099, 7
  %v4101 = vsub.s32 %v4098, %v4100
  %v4102 = vrot.slane %v3792, %v4101
  %v4103 = vcombine.high %v4102, %v4102
  %v4105 = vunpack.c.l.s4 1966171168
  %v4106 = vunpack.c.0.s8 %v4105
  %v4107 = vlaneseq
  %v4108 = vshrl.u32 %v4107, 7
  %v4109 = vsub.s32 %v4106, %v4108
  %v4110 = vrot.slane %v4102, %v4109
  %v4112 = vunpack.c.l.s4 1966171168
  %v4113 = vunpack.c.0.s8 %v4112
  %v4114 = vlaneseq
  %v4115 = vshrl.u32 %v4114, 7
  %v4116 = vsub.s32 %v4113, %v4115
  %v4117 = vrot.slane %v4103, %v4116
  %v4168 = vld [vmem:[%s10] sm:$0x1]
  %v4170 = vlaneseq
  %v4171 = vshrl.u32 %v4170, 7
  %v4172 = vsub.s32 0, %v4171
  %v4173 = vrot.slane %v4168, %v4172
  %v4174 = vcombine.high %v4173, %v4173
  %v4176 = vunpack.c.l.s4 1966171168
  %v4177 = vunpack.c.0.s8 %v4176
  %v4178 = vlaneseq
  %v4179 = vshrl.u32 %v4178, 7
  %v4180 = vsub.s32 %v4177, %v4179
  %v4181 = vrot.slane %v4173, %v4180
  %v4183 = vunpack.c.l.s4 1966171168
  %v4184 = vunpack.c.0.s8 %v4183
  %v4185 = vlaneseq
  %v4186 = vshrl.u32 %v4185, 7
  %v4187 = vsub.s32 %v4184, %v4186
  %v4188 = vrot.slane %v4174, %v4187
  %v4189 = vcombine.high %v4181, %v4181
  %v4190 = vcombine.high %v4188, %v4188
  %v4192 = vunpack.c.l.s4 1966171168
  %v4193 = vunpack.c.0.s8 %v4192
  %v4194 = vlaneseq
  %v4195 = vshrl.u32 %v4194, 7
  %v4196 = vsub.s32 %v4193, %v4195
  %v4197 = vrot.slane %v4181, %v4196
  %v4199 = vunpack.c.l.s4 1966171168
  %v4200 = vunpack.c.0.s8 %v4199
  %v4201 = vlaneseq
  %v4202 = vshrl.u32 %v4201, 7
  %v4203 = vsub.s32 %v4200, %v4202
  %v4204 = vrot.slane %v4188, %v4203
  %v4206 = vunpack.c.l.s4 1966171168
  %v4207 = vunpack.c.0.s8 %v4206
  %v4208 = vlaneseq
  %v4209 = vshrl.u32 %v4208, 7
  %v4210 = vsub.s32 %v4207, %v4209
  %v4211 = vrot.slane %v4189, %v4210
  %v4213 = vunpack.c.l.s4 1966171168
  %v4214 = vunpack.c.0.s8 %v4213
  %v4215 = vlaneseq
  %v4216 = vshrl.u32 %v4215, 7
  %v4217 = vsub.s32 %v4214, %v4216
  %v4218 = vrot.slane %v4190, %v4217
  %v4219 = vcombine.high %v4197, %v4197
  %v4220 = vcombine.high %v4204, %v4204
  %v4221 = vcombine.high %v4211, %v4211
  %v4222 = vcombine.high %v4218, %v4218
  %v4231 = vadd.f32 %v3825, %v4197
  %v4232 = vadd.f32 %v3839, %v4211
  %v4233 = vadd.f32 %v3847, %v4219
  %v4234 = vadd.f32 %v3849, %v4221
  %v4235 = vadd.f32 %v3832, %v4204
  %v4236 = vadd.f32 %v3846, %v4218
  %v4237 = vadd.f32 %v3848, %v4220
  %v4238 = vadd.f32 %v3850, %v4222
  %v4239 = vadd.f32 %v3874, %v4197
  %v4240 = vadd.f32 %v3888, %v4211
  %v4241 = vadd.f32 %v3896, %v4219
  %v4242 = vadd.f32 %v3898, %v4221
  %v4243 = vadd.f32 %v3881, %v4204
  %v4244 = vadd.f32 %v3895, %v4218
  %v4245 = vadd.f32 %v3897, %v4220
  %v4246 = vadd.f32 %v3899, %v4222
  %v4247 = vadd.f32 %v3923, %v4197
  %v4248 = vadd.f32 %v3937, %v4211
  %v4249 = vadd.f32 %v3945, %v4219
  %v4250 = vadd.f32 %v3947, %v4221
  %v4251 = vadd.f32 %v3930, %v4204
  %v4252 = vadd.f32 %v3944, %v4218
  %v4253 = vadd.f32 %v3946, %v4220
  %v4254 = vadd.f32 %v3948, %v4222
  %v4255 = vadd.f32 %v3972, %v4197
  %v4256 = vadd.f32 %v3986, %v4197
  %v4257 = vadd.f32 %v3994, %v4211
  %v4258 = vadd.f32 %v3996, %v4219
  %v4259 = vadd.f32 %v3979, %v4221
  %v4260 = vadd.f32 %v3993, %v4204
  %v4261 = vadd.f32 %v3995, %v4218
  %v4262 = vadd.f32 %v3997, %v4220
  %v4263 = vadd.f32 %v4021, %v4222
  %v4264 = vadd.f32 %v4035, %v4197
  %v4265 = vadd.f32 %v4043, %v4211
  %v4266 = vadd.f32 %v4045, %v4219
  %v4267 = vadd.f32 %v4028, %v4221
  %v4268 = vadd.f32 %v4042, %v4204
  %v4269 = vadd.f32 %v4044, %v4218
  %v4270 = vadd.f32 %v4046, %v4220
  %v4271 = vadd.f32 %v4070, %v4222
  %v4272 = vadd.f32 %v4084, %v4197
  %v4273 = vadd.f32 %v4092, %v4211
  %v4274 = vadd.f32 %v4094, %v4219
  %v4275 = vadd.f32 %v4077, %v4221
  %v4276 = vadd.f32 %v4091, %v4204
  %v4277 = vadd.f32 %v4093, %v4218
  %v4278 = vadd.f32 %v4095, %v4220
  %v4279 = vadd.f32 %v4110, %v4222
  %v4280 = vadd.f32 %v4117, %v4197
  %v4331 = vcombine.low %v4231, %v4232
  %v4332 = vcombine.low %v4233, %v4234
  %v4333 = vcombine.low %v4235, %v4236
  %v4334 = vcombine.low %v4237, %v4238
  %v4336 = vunpack.c.l.s4 1966171168
  %v4337 = vunpack.c.0.s8 %v4336
  %v4338 = vlaneseq
  %v4339 = vshrl.u32 %v4338, 7
  %v4340 = vsub.s32 %v4337, %v4339
  %v4341 = vrot.slane %v4331, %v4340
  %v4343 = vunpack.c.l.s4 1966171168
  %v4344 = vunpack.c.0.s8 %v4343
  %v4345 = vlaneseq
  %v4346 = vshrl.u32 %v4345, 7
  %v4347 = vsub.s32 %v4344, %v4346
  %v4348 = vrot.slane %v4332, %v4347
  %v4350 = vunpack.c.l.s4 1966171168
  %v4351 = vunpack.c.0.s8 %v4350
  %v4352 = vlaneseq
  %v4353 = vshrl.u32 %v4352, 7
  %v4354 = vsub.s32 %v4351, %v4353
  %v4355 = vrot.slane %v4333, %v4354
  %v4357 = vunpack.c.l.s4 1966171168
  %v4358 = vunpack.c.0.s8 %v4357
  %v4359 = vlaneseq
  %v4360 = vshrl.u32 %v4359, 7
  %v4361 = vsub.s32 %v4358, %v4360
  %v4362 = vrot.slane %v4334, %v4361
  %v4363 = vcombine.low %v4341, %v4348
  %v4364 = vcombine.low %v4355, %v4362
  %v4366 = vunpack.c.l.s4 1966171168
  %v4367 = vunpack.c.0.s8 %v4366
  %v4368 = vlaneseq
  %v4369 = vshrl.u32 %v4368, 7
  %v4370 = vsub.s32 %v4367, %v4369
  %v4371 = vrot.slane %v4363, %v4370
  %v4373 = vunpack.c.l.s4 1966171168
  %v4374 = vunpack.c.0.s8 %v4373
  %v4375 = vlaneseq
  %v4376 = vshrl.u32 %v4375, 7
  %v4377 = vsub.s32 %v4374, %v4376
  %v4378 = vrot.slane %v4364, %v4377
  %v4379 = vcombine.low %v4371, %v4378
  %v4380 = vcombine.low %v4239, %v4240
  %v4381 = vcombine.low %v4241, %v4242
  %v4382 = vcombine.low %v4243, %v4244
  %v4383 = vcombine.low %v4245, %v4246
  %v4385 = vunpack.c.l.s4 1966171168
  %v4386 = vunpack.c.0.s8 %v4385
  %v4387 = vlaneseq
  %v4388 = vshrl.u32 %v4387, 7
  %v4389 = vsub.s32 %v4386, %v4388
  %v4390 = vrot.slane %v4380, %v4389
  %v4392 = vunpack.c.l.s4 1966171168
  %v4393 = vunpack.c.0.s8 %v4392
  %v4394 = vlaneseq
  %v4395 = vshrl.u32 %v4394, 7
  %v4396 = vsub.s32 %v4393, %v4395
  %v4397 = vrot.slane %v4381, %v4396
  %v4399 = vunpack.c.l.s4 1966171168
  %v4400 = vunpack.c.0.s8 %v4399
  %v4401 = vlaneseq
  %v4402 = vshrl.u32 %v4401, 7
  %v4403 = vsub.s32 %v4400, %v4402
  %v4404 = vrot.slane %v4382, %v4403
  %v4406 = vunpack.c.l.s4 1966171168
  %v4407 = vunpack.c.0.s8 %v4406
  %v4408 = vlaneseq
  %v4409 = vshrl.u32 %v4408, 7
  %v4410 = vsub.s32 %v4407, %v4409
  %v4411 = vrot.slane %v4383, %v4410
  %v4412 = vcombine.low %v4390, %v4397
  %v4413 = vcombine.low %v4404, %v4411
  %v4415 = vunpack.c.l.s4 1966171168
  %v4416 = vunpack.c.0.s8 %v4415
  %v4417 = vlaneseq
  %v4418 = vshrl.u32 %v4417, 7
  %v4419 = vsub.s32 %v4416, %v4418
  %v4420 = vrot.slane %v4412, %v4419
  %v4422 = vunpack.c.l.s4 1966171168
  %v4423 = vunpack.c.0.s8 %v4422
  %v4424 = vlaneseq
  %v4425 = vshrl.u32 %v4424, 7
  %v4426 = vsub.s32 %v4423, %v4425
  %v4427 = vrot.slane %v4413, %v4426
  %v4428 = vcombine.low %v4420, %v4427
  %v4429 = vcombine.low %v4247, %v4248
  %v4430 = vcombine.low %v4249, %v4250
  %v4431 = vcombine.low %v4251, %v4252
  %v4432 = vcombine.low %v4253, %v4254
  %v4434 = vunpack.c.l.s4 1966171168
  %v4435 = vunpack.c.0.s8 %v4434
  %v4436 = vlaneseq
  %v4437 = vshrl.u32 %v4436, 7
  %v4438 = vsub.s32 %v4435, %v4437
  %v4439 = vrot.slane %v4429, %v4438
  %v4441 = vunpack.c.l.s4 1966171168
  %v4442 = vunpack.c.0.s8 %v4441
  %v4443 = vlaneseq
  %v4444 = vshrl.u32 %v4443, 7
  %v4445 = vsub.s32 %v4442, %v4444
  %v4446 = vrot.slane %v4430, %v4445
  %v4448 = vunpack.c.l.s4 1966171168
  %v4449 = vunpack.c.0.s8 %v4448
  %v4450 = vlaneseq
  %v4451 = vshrl.u32 %v4450, 7
  %v4452 = vsub.s32 %v4449, %v4451
  %v4453 = vrot.slane %v4431, %v4452
  %v4455 = vunpack.c.l.s4 1966171168
  %v4456 = vunpack.c.0.s8 %v4455
  %v4457 = vlaneseq
  %v4458 = vshrl.u32 %v4457, 7
  %v4459 = vsub.s32 %v4456, %v4458
  %v4460 = vrot.slane %v4432, %v4459
  %v4461 = vcombine.low %v4439, %v4446
  %v4462 = vcombine.low %v4453, %v4460
  %v4464 = vunpack.c.l.s4 1966171168
  %v4465 = vunpack.c.0.s8 %v4464
  %v4466 = vlaneseq
  %v4467 = vshrl.u32 %v4466, 7
  %v4468 = vsub.s32 %v4465, %v4467
  %v4469 = vrot.slane %v4461, %v4468
  %v4471 = vunpack.c.l.s4 1966171168
  %v4472 = vunpack.c.0.s8 %v4471
  %v4473 = vlaneseq
  %v4474 = vshrl.u32 %v4473, 7
  %v4475 = vsub.s32 %v4472, %v4474
  %v4476 = vrot.slane %v4462, %v4475
  %v4477 = vcombine.low %v4469, %v4476
  %v4479 = vunpack.c.l.s4 1966171168
  %v4480 = vunpack.c.0.s8 %v4479
  %v4481 = vlaneseq
  %v4482 = vshrl.u32 %v4481, 7
  %v4483 = vsub.s32 %v4480, %v4482
  %v4484 = vrot.slane %v4255, %v4483
  %v4486 = vunpack.c.l.s4 1966171168
  %v4487 = vunpack.c.0.s8 %v4486
  %v4488 = vlaneseq
  %v4489 = vshrl.u32 %v4488, 7
  %v4490 = vsub.s32 %v4487, %v4489
  %v4491 = vrot.slane %v4484, %v4490
  %v4492 = vcombine.low %v4256, %v4257
  %v4493 = vcombine.low %v4258, %v4259
  %v4494 = vcombine.low %v4260, %v4261
  %v4495 = vcombine.low %v4262, %v4263
  %v4497 = vunpack.c.l.s4 1966171168
  %v4498 = vunpack.c.0.s8 %v4497
  %v4499 = vlaneseq
  %v4500 = vshrl.u32 %v4499, 7
  %v4501 = vsub.s32 %v4498, %v4500
  %v4502 = vrot.slane %v4492, %v4501
  %v4504 = vunpack.c.l.s4 1966171168
  %v4505 = vunpack.c.0.s8 %v4504
  %v4506 = vlaneseq
  %v4507 = vshrl.u32 %v4506, 7
  %v4508 = vsub.s32 %v4505, %v4507
  %v4509 = vrot.slane %v4493, %v4508
  %v4511 = vunpack.c.l.s4 1966171168
  %v4512 = vunpack.c.0.s8 %v4511
  %v4513 = vlaneseq
  %v4514 = vshrl.u32 %v4513, 7
  %v4515 = vsub.s32 %v4512, %v4514
  %v4516 = vrot.slane %v4494, %v4515
  %v4518 = vunpack.c.l.s4 1966171168
  %v4519 = vunpack.c.0.s8 %v4518
  %v4520 = vlaneseq
  %v4521 = vshrl.u32 %v4520, 7
  %v4522 = vsub.s32 %v4519, %v4521
  %v4523 = vrot.slane %v4495, %v4522
  %v4524 = vcombine.low %v4502, %v4509
  %v4525 = vcombine.low %v4516, %v4523
  %v4527 = vunpack.c.l.s4 1966171168
  %v4528 = vunpack.c.0.s8 %v4527
  %v4529 = vlaneseq
  %v4530 = vshrl.u32 %v4529, 7
  %v4531 = vsub.s32 %v4528, %v4530
  %v4532 = vrot.slane %v4524, %v4531
  %v4534 = vunpack.c.l.s4 1966171168
  %v4535 = vunpack.c.0.s8 %v4534
  %v4536 = vlaneseq
  %v4537 = vshrl.u32 %v4536, 7
  %v4538 = vsub.s32 %v4535, %v4537
  %v4539 = vrot.slane %v4525, %v4538
  %v4540 = vcombine.low %v4532, %v4539
  %v4541 = vcombine.low %v4264, %v4265
  %v4542 = vcombine.low %v4266, %v4267
  %v4543 = vcombine.low %v4268, %v4269
  %v4544 = vcombine.low %v4270, %v4271
  %v4546 = vunpack.c.l.s4 1966171168
  %v4547 = vunpack.c.0.s8 %v4546
  %v4548 = vlaneseq
  %v4549 = vshrl.u32 %v4548, 7
  %v4550 = vsub.s32 %v4547, %v4549
  %v4551 = vrot.slane %v4541, %v4550
  %v4553 = vunpack.c.l.s4 1966171168
  %v4554 = vunpack.c.0.s8 %v4553
  %v4555 = vlaneseq
  %v4556 = vshrl.u32 %v4555, 7
  %v4557 = vsub.s32 %v4554, %v4556
  %v4558 = vrot.slane %v4542, %v4557
  %v4560 = vunpack.c.l.s4 1966171168
  %v4561 = vunpack.c.0.s8 %v4560
  %v4562 = vlaneseq
  %v4563 = vshrl.u32 %v4562, 7
  %v4564 = vsub.s32 %v4561, %v4563
  %v4565 = vrot.slane %v4543, %v4564
  %v4567 = vunpack.c.l.s4 1966171168
  %v4568 = vunpack.c.0.s8 %v4567
  %v4569 = vlaneseq
  %v4570 = vshrl.u32 %v4569, 7
  %v4571 = vsub.s32 %v4568, %v4570
  %v4572 = vrot.slane %v4544, %v4571
  %v4573 = vcombine.low %v4551, %v4558
  %v4574 = vcombine.low %v4565, %v4572
  %v4576 = vunpack.c.l.s4 1966171168
  %v4577 = vunpack.c.0.s8 %v4576
  %v4578 = vlaneseq
  %v4579 = vshrl.u32 %v4578, 7
  %v4580 = vsub.s32 %v4577, %v4579
  %v4581 = vrot.slane %v4573, %v4580
  %v4583 = vunpack.c.l.s4 1966171168
  %v4584 = vunpack.c.0.s8 %v4583
  %v4585 = vlaneseq
  %v4586 = vshrl.u32 %v4585, 7
  %v4587 = vsub.s32 %v4584, %v4586
  %v4588 = vrot.slane %v4574, %v4587
  %v4589 = vcombine.low %v4581, %v4588
  %v4590 = vcombine.low %v4272, %v4273
  %v4591 = vcombine.low %v4274, %v4275
  %v4592 = vcombine.low %v4276, %v4277
  %v4593 = vcombine.low %v4278, %v4279
  %v4595 = vunpack.c.l.s4 1966171168
  %v4596 = vunpack.c.0.s8 %v4595
  %v4597 = vlaneseq
  %v4598 = vshrl.u32 %v4597, 7
  %v4599 = vsub.s32 %v4596, %v4598
  %v4600 = vrot.slane %v4590, %v4599
  %v4602 = vunpack.c.l.s4 1966171168
  %v4603 = vunpack.c.0.s8 %v4602
  %v4604 = vlaneseq
  %v4605 = vshrl.u32 %v4604, 7
  %v4606 = vsub.s32 %v4603, %v4605
  %v4607 = vrot.slane %v4591, %v4606
  %v4609 = vunpack.c.l.s4 1966171168
  %v4610 = vunpack.c.0.s8 %v4609
  %v4611 = vlaneseq
  %v4612 = vshrl.u32 %v4611, 7
  %v4613 = vsub.s32 %v4610, %v4612
  %v4614 = vrot.slane %v4592, %v4613
  %v4616 = vunpack.c.l.s4 1966171168
  %v4617 = vunpack.c.0.s8 %v4616
  %v4618 = vlaneseq
  %v4619 = vshrl.u32 %v4618, 7
  %v4620 = vsub.s32 %v4617, %v4619
  %v4621 = vrot.slane %v4593, %v4620
  %v4622 = vcombine.low %v4600, %v4607
  %v4623 = vcombine.low %v4614, %v4621
  %v4625 = vunpack.c.l.s4 1966171168
  %v4626 = vunpack.c.0.s8 %v4625
  %v4627 = vlaneseq
  %v4628 = vshrl.u32 %v4627, 7
  %v4629 = vsub.s32 %v4626, %v4628
  %v4630 = vrot.slane %v4622, %v4629
  %v4632 = vunpack.c.l.s4 1966171168
  %v4633 = vunpack.c.0.s8 %v4632
  %v4634 = vlaneseq
  %v4635 = vshrl.u32 %v4634, 7
  %v4636 = vsub.s32 %v4633, %v4635
  %v4637 = vrot.slane %v4623, %v4636
  %v4638 = vcombine.low %v4630, %v4637
  %v4640 = vunpack.c.l.s4 1966171168
  %v4641 = vunpack.c.0.s8 %v4640
  %v4642 = vlaneseq
  %v4643 = vshrl.u32 %v4642, 7
  %v4644 = vsub.s32 %v4641, %v4643
  %v4645 = vrot.slane %v4280, %v4644
  %v4647 = vunpack.c.l.s4 1966171168
  %v4648 = vunpack.c.0.s8 %v4647
  %v4649 = vlaneseq
  %v4650 = vshrl.u32 %v4649, 7
  %v4651 = vsub.s32 %v4648, %v4650
  %v4652 = vrot.slane %v4645, %v4651
  %v4661 = vsel %vm295, %v4379, 0.0
  %v4662 = vsel %vm295, %v4428, 0.0
  %v4663 = vadd.f32 %v4661, %v4662
  %v4664 = vsel %vm295, %v4477, 0.0
  %v4665 = vadd.f32 %v4663, %v4664
  %vm4666 = vcmask 516096
  %v4667 = vsel %vm4666, %v4491, 0.0
  %v4668 = vadd.f32 %v4665, %v4667
  %v4669 = vsel %vm295, %v4540, 0.0
  %v4670 = vadd.f32 %v4668, %v4669
  %v4671 = vsel %vm295, %v4589, 0.0
  %v4672 = vadd.f32 %v4670, %v4671
  %v4673 = vsel %vm295, %v4638, 0.0
  %v4674 = vadd.f32 %v4672, %v4673
  %v4675 = vsel %vm4666, %v4652, 0.0
  %v4676 = vadd.f32 %v4674, %v4675
  %v4677 = vrot.slane %v4676, 4
  %v4678 = vadd.f32 %v4676, %v4677
  %v4679 = vrot.slane %v4678, 2
  %v4680 = vadd.f32 %v4678, %v4679
  %v4681 = vrot.slane %v4680, 1
  %v4682 = vadd.f32 %v4680, %v4681
  %v4683 = vrcp.pop 50.0
  %v4684 = vmul.f32 %v4682, %v4683
  %v4686 = vcombine.high %v4684, %v4684
  %v4688 = vunpack.c.l.s4 1966171168
  %v4689 = vunpack.c.0.s8 %v4688
  %v4690 = vlaneseq
  %v4691 = vshrl.u32 %v4690, 7
  %v4692 = vsub.s32 %v4689, %v4691
  %v4693 = vrot.slane %v4684, %v4692
  %v4695 = vunpack.c.l.s4 1966171168
  %v4696 = vunpack.c.0.s8 %v4695
  %v4697 = vlaneseq
  %v4698 = vshrl.u32 %v4697, 7
  %v4699 = vsub.s32 %v4696, %v4698
  %v4700 = vrot.slane %v4686, %v4699
  %v4701 = vcombine.high %v4693, %v4693
  %v4702 = vcombine.high %v4700, %v4700
  %v4704 = vunpack.c.l.s4 1966171168
  %v4705 = vunpack.c.0.s8 %v4704
  %v4706 = vlaneseq
  %v4707 = vshrl.u32 %v4706, 7
  %v4708 = vsub.s32 %v4705, %v4707
  %v4709 = vrot.slane %v4693, %v4708
  %v4711 = vunpack.c.l.s4 1966171168
  %v4712 = vunpack.c.0.s8 %v4711
  %v4713 = vlaneseq
  %v4714 = vshrl.u32 %v4713, 7
  %v4715 = vsub.s32 %v4712, %v4714
  %v4716 = vrot.slane %v4700, %v4715
  %v4718 = vunpack.c.l.s4 1966171168
  %v4719 = vunpack.c.0.s8 %v4718
  %v4720 = vlaneseq
  %v4721 = vshrl.u32 %v4720, 7
  %v4722 = vsub.s32 %v4719, %v4721
  %v4723 = vrot.slane %v4701, %v4722
  %v4725 = vunpack.c.l.s4 1966171168
  %v4726 = vunpack.c.0.s8 %v4725
  %v4727 = vlaneseq
  %v4728 = vshrl.u32 %v4727, 7
  %v4729 = vsub.s32 %v4726, %v4728
  %v4730 = vrot.slane %v4702, %v4729
  %v4731 = vcombine.high %v4709, %v4709
  %v4732 = vcombine.high %v4716, %v4716
  %v4733 = vcombine.high %v4723, %v4723
  %v4734 = vcombine.high %v4730, %v4730
  %v4743 = vsub.f32 %v4231, %v4709
  %v4744 = vsub.f32 %v4232, %v4723
  %v4745 = vsub.f32 %v4233, %v4731
  %v4746 = vsub.f32 %v4234, %v4733
  %v4747 = vsub.f32 %v4235, %v4716
  %v4748 = vsub.f32 %v4236, %v4730
  %v4749 = vsub.f32 %v4237, %v4732
  %v4750 = vsub.f32 %v4238, %v4734
  %v4751 = vsub.f32 %v4239, %v4709
  %v4752 = vsub.f32 %v4240, %v4723
  %v4753 = vsub.f32 %v4241, %v4731
  %v4754 = vsub.f32 %v4242, %v4733
  %v4755 = vsub.f32 %v4243, %v4716
  %v4756 = vsub.f32 %v4244, %v4730
  %v4757 = vsub.f32 %v4245, %v4732
  %v4758 = vsub.f32 %v4246, %v4734
  %v4759 = vsub.f32 %v4247, %v4709
  %v4760 = vsub.f32 %v4248, %v4723
  %v4761 = vsub.f32 %v4249, %v4731
  %v4762 = vsub.f32 %v4250, %v4733
  %v4763 = vsub.f32 %v4251, %v4716
  %v4764 = vsub.f32 %v4252, %v4730
  %v4765 = vsub.f32 %v4253, %v4732
  %v4766 = vsub.f32 %v4254, %v4734
  %v4767 = vsub.f32 %v4255, %v4709
  %v4768 = vsub.f32 %v4256, %v4709
  %v4769 = vsub.f32 %v4257, %v4723
  %v4770 = vsub.f32 %v4258, %v4731
  %v4771 = vsub.f32 %v4259, %v4733
  %v4772 = vsub.f32 %v4260, %v4716
  %v4773 = vsub.f32 %v4261, %v4730
  %v4774 = vsub.f32 %v4262, %v4732
  %v4775 = vsub.f32 %v4263, %v4734
  %v4776 = vsub.f32 %v4264, %v4709
  %v4777 = vsub.f32 %v4265, %v4723
  %v4778 = vsub.f32 %v4266, %v4731
  %v4779 = vsub.f32 %v4267, %v4733
  %v4780 = vsub.f32 %v4268, %v4716
  %v4781 = vsub.f32 %v4269, %v4730
  %v4782 = vsub.f32 %v4270, %v4732
  %v4783 = vsub.f32 %v4271, %v4734
  %v4784 = vsub.f32 %v4272, %v4709
  %v4785 = vsub.f32 %v4273, %v4723
  %v4786 = vsub.f32 %v4274, %v4731
  %v4787 = vsub.f32 %v4275, %v4733
  %v4788 = vsub.f32 %v4276, %v4716
  %v4789 = vsub.f32 %v4277, %v4730
  %v4790 = vsub.f32 %v4278, %v4732
  %v4791 = vsub.f32 %v4279, %v4734
  %v4792 = vsub.f32 %v4280, %v4709
  %v4793 = vmul.f32 %v4743, %v4743
  %v4794 = vmul.f32 %v4744, %v4744
  %v4795 = vmul.f32 %v4745, %v4745
  %v4796 = vmul.f32 %v4746, %v4746
  %v4797 = vmul.f32 %v4747, %v4747
  %v4798 = vmul.f32 %v4748, %v4748
  %v4799 = vmul.f32 %v4749, %v4749
  %v4800 = vmul.f32 %v4750, %v4750
  %v4801 = vmul.f32 %v4751, %v4751
  %v4802 = vmul.f32 %v4752, %v4752
  %v4803 = vmul.f32 %v4753, %v4753
  %v4804 = vmul.f32 %v4754, %v4754
  %v4805 = vmul.f32 %v4755, %v4755
  %v4806 = vmul.f32 %v4756, %v4756
  %v4807 = vmul.f32 %v4757, %v4757
  %v4808 = vmul.f32 %v4758, %v4758
  %v4809 = vmul.f32 %v4759, %v4759
  %v4810 = vmul.f32 %v4760, %v4760
  %v4811 = vmul.f32 %v4761, %v4761
  %v4812 = vmul.f32 %v4762, %v4762
  %v4813 = vmul.f32 %v4763, %v4763
  %v4814 = vmul.f32 %v4764, %v4764
  %v4815 = vmul.f32 %v4765, %v4765
  %v4816 = vmul.f32 %v4766, %v4766
  %v4817 = vmul.f32 %v4767, %v4767
  %v4818 = vmul.f32 %v4768, %v4768
  %v4819 = vmul.f32 %v4769, %v4769
  %v4820 = vmul.f32 %v4770, %v4770
  %v4821 = vmul.f32 %v4771, %v4771
  %v4822 = vmul.f32 %v4772, %v4772
  %v4823 = vmul.f32 %v4773, %v4773
  %v4824 = vmul.f32 %v4774, %v4774
  %v4825 = vmul.f32 %v4775, %v4775
  %v4826 = vmul.f32 %v4776, %v4776
  %v4827 = vmul.f32 %v4777, %v4777
  %v4828 = vmul.f32 %v4778, %v4778
  %v4829 = vmul.f32 %v4779, %v4779
  %v4830 = vmul.f32 %v4780, %v4780
  %v4831 = vmul.f32 %v4781, %v4781
  %v4832 = vmul.f32 %v4782, %v4782
  %v4833 = vmul.f32 %v4783, %v4783
  %v4834 = vmul.f32 %v4784, %v4784
  %v4835 = vmul.f32 %v4785, %v4785
  %v4836 = vmul.f32 %v4786, %v4786
  %v4837 = vmul.f32 %v4787, %v4787
  %v4838 = vmul.f32 %v4788, %v4788
  %v4839 = vmul.f32 %v4789, %v4789
  %v4840 = vmul.f32 %v4790, %v4790
  %v4841 = vmul.f32 %v4791, %v4791
  %v4842 = vmul.f32 %v4792, %v4792
  %v4893 = vcombine.low %v4793, %v4794
  %v4894 = vcombine.low %v4795, %v4796
  %v4895 = vcombine.low %v4797, %v4798
  %v4896 = vcombine.low %v4799, %v4800
  %v4898 = vunpack.c.l.s4 1966171168
  %v4899 = vunpack.c.0.s8 %v4898
  %v4900 = vlaneseq
  %v4901 = vshrl.u32 %v4900, 7
  %v4902 = vsub.s32 %v4899, %v4901
  %v4903 = vrot.slane %v4893, %v4902
  %v4905 = vunpack.c.l.s4 1966171168
  %v4906 = vunpack.c.0.s8 %v4905
  %v4907 = vlaneseq
  %v4908 = vshrl.u32 %v4907, 7
  %v4909 = vsub.s32 %v4906, %v4908
  %v4910 = vrot.slane %v4894, %v4909
  %v4912 = vunpack.c.l.s4 1966171168
  %v4913 = vunpack.c.0.s8 %v4912
  %v4914 = vlaneseq
  %v4915 = vshrl.u32 %v4914, 7
  %v4916 = vsub.s32 %v4913, %v4915
  %v4917 = vrot.slane %v4895, %v4916
  %v4919 = vunpack.c.l.s4 1966171168
  %v4920 = vunpack.c.0.s8 %v4919
  %v4921 = vlaneseq
  %v4922 = vshrl.u32 %v4921, 7
  %v4923 = vsub.s32 %v4920, %v4922
  %v4924 = vrot.slane %v4896, %v4923
  %v4925 = vcombine.low %v4903, %v4910
  %v4926 = vcombine.low %v4917, %v4924
  %v4928 = vunpack.c.l.s4 1966171168
  %v4929 = vunpack.c.0.s8 %v4928
  %v4930 = vlaneseq
  %v4931 = vshrl.u32 %v4930, 7
  %v4932 = vsub.s32 %v4929, %v4931
  %v4933 = vrot.slane %v4925, %v4932
  %v4935 = vunpack.c.l.s4 1966171168
  %v4936 = vunpack.c.0.s8 %v4935
  %v4937 = vlaneseq
  %v4938 = vshrl.u32 %v4937, 7
  %v4939 = vsub.s32 %v4936, %v4938
  %v4940 = vrot.slane %v4926, %v4939
  %v4941 = vcombine.low %v4933, %v4940
  %v4942 = vcombine.low %v4801, %v4802
  %v4943 = vcombine.low %v4803, %v4804
  %v4944 = vcombine.low %v4805, %v4806
  %v4945 = vcombine.low %v4807, %v4808
  %v4947 = vunpack.c.l.s4 1966171168
  %v4948 = vunpack.c.0.s8 %v4947
  %v4949 = vlaneseq
  %v4950 = vshrl.u32 %v4949, 7
  %v4951 = vsub.s32 %v4948, %v4950
  %v4952 = vrot.slane %v4942, %v4951
  %v4954 = vunpack.c.l.s4 1966171168
  %v4955 = vunpack.c.0.s8 %v4954
  %v4956 = vlaneseq
  %v4957 = vshrl.u32 %v4956, 7
  %v4958 = vsub.s32 %v4955, %v4957
  %v4959 = vrot.slane %v4943, %v4958
  %v4961 = vunpack.c.l.s4 1966171168
  %v4962 = vunpack.c.0.s8 %v4961
  %v4963 = vlaneseq
  %v4964 = vshrl.u32 %v4963, 7
  %v4965 = vsub.s32 %v4962, %v4964
  %v4966 = vrot.slane %v4944, %v4965
  %v4968 = vunpack.c.l.s4 1966171168
  %v4969 = vunpack.c.0.s8 %v4968
  %v4970 = vlaneseq
  %v4971 = vshrl.u32 %v4970, 7
  %v4972 = vsub.s32 %v4969, %v4971
  %v4973 = vrot.slane %v4945, %v4972
  %v4974 = vcombine.low %v4952, %v4959
  %v4975 = vcombine.low %v4966, %v4973
  %v4977 = vunpack.c.l.s4 1966171168
  %v4978 = vunpack.c.0.s8 %v4977
  %v4979 = vlaneseq
  %v4980 = vshrl.u32 %v4979, 7
  %v4981 = vsub.s32 %v4978, %v4980
  %v4982 = vrot.slane %v4974, %v4981
  %v4984 = vunpack.c.l.s4 1966171168
  %v4985 = vunpack.c.0.s8 %v4984
  %v4986 = vlaneseq
  %v4987 = vshrl.u32 %v4986, 7
  %v4988 = vsub.s32 %v4985, %v4987
  %v4989 = vrot.slane %v4975, %v4988
  %v4990 = vcombine.low %v4982, %v4989
  %v4991 = vcombine.low %v4809, %v4810
  %v4992 = vcombine.low %v4811, %v4812
  %v4993 = vcombine.low %v4813, %v4814
  %v4994 = vcombine.low %v4815, %v4816
  %v4996 = vunpack.c.l.s4 1966171168
  %v4997 = vunpack.c.0.s8 %v4996
  %v4998 = vlaneseq
  %v4999 = vshrl.u32 %v4998, 7
  %v5000 = vsub.s32 %v4997, %v4999
  %v5001 = vrot.slane %v4991, %v5000
  %v5003 = vunpack.c.l.s4 1966171168
  %v5004 = vunpack.c.0.s8 %v5003
  %v5005 = vlaneseq
  %v5006 = vshrl.u32 %v5005, 7
  %v5007 = vsub.s32 %v5004, %v5006
  %v5008 = vrot.slane %v4992, %v5007
  %v5010 = vunpack.c.l.s4 1966171168
  %v5011 = vunpack.c.0.s8 %v5010
  %v5012 = vlaneseq
  %v5013 = vshrl.u32 %v5012, 7
  %v5014 = vsub.s32 %v5011, %v5013
  %v5015 = vrot.slane %v4993, %v5014
  %v5017 = vunpack.c.l.s4 1966171168
  %v5018 = vunpack.c.0.s8 %v5017
  %v5019 = vlaneseq
  %v5020 = vshrl.u32 %v5019, 7
  %v5021 = vsub.s32 %v5018, %v5020
  %v5022 = vrot.slane %v4994, %v5021
  %v5023 = vcombine.low %v5001, %v5008
  %v5024 = vcombine.low %v5015, %v5022
  %v5026 = vunpack.c.l.s4 1966171168
  %v5027 = vunpack.c.0.s8 %v5026
  %v5028 = vlaneseq
  %v5029 = vshrl.u32 %v5028, 7
  %v5030 = vsub.s32 %v5027, %v5029
  %v5031 = vrot.slane %v5023, %v5030
  %v5033 = vunpack.c.l.s4 1966171168
  %v5034 = vunpack.c.0.s8 %v5033
  %v5035 = vlaneseq
  %v5036 = vshrl.u32 %v5035, 7
  %v5037 = vsub.s32 %v5034, %v5036
  %v5038 = vrot.slane %v5024, %v5037
  %v5039 = vcombine.low %v5031, %v5038
  %v5041 = vunpack.c.l.s4 1966171168
  %v5042 = vunpack.c.0.s8 %v5041
  %v5043 = vlaneseq
  %v5044 = vshrl.u32 %v5043, 7
  %v5045 = vsub.s32 %v5042, %v5044
  %v5046 = vrot.slane %v4817, %v5045
  %v5048 = vunpack.c.l.s4 1966171168
  %v5049 = vunpack.c.0.s8 %v5048
  %v5050 = vlaneseq
  %v5051 = vshrl.u32 %v5050, 7
  %v5052 = vsub.s32 %v5049, %v5051
  %v5053 = vrot.slane %v5046, %v5052
  %v5054 = vcombine.low %v4818, %v4819
  %v5055 = vcombine.low %v4820, %v4821
  %v5056 = vcombine.low %v4822, %v4823
  %v5057 = vcombine.low %v4824, %v4825
  %v5059 = vunpack.c.l.s4 1966171168
  %v5060 = vunpack.c.0.s8 %v5059
  %v5061 = vlaneseq
  %v5062 = vshrl.u32 %v5061, 7
  %v5063 = vsub.s32 %v5060, %v5062
  %v5064 = vrot.slane %v5054, %v5063
  %v5066 = vunpack.c.l.s4 1966171168
  %v5067 = vunpack.c.0.s8 %v5066
  %v5068 = vlaneseq
  %v5069 = vshrl.u32 %v5068, 7
  %v5070 = vsub.s32 %v5067, %v5069
  %v5071 = vrot.slane %v5055, %v5070
  %v5073 = vunpack.c.l.s4 1966171168
  %v5074 = vunpack.c.0.s8 %v5073
  %v5075 = vlaneseq
  %v5076 = vshrl.u32 %v5075, 7
  %v5077 = vsub.s32 %v5074, %v5076
  %v5078 = vrot.slane %v5056, %v5077
  %v5080 = vunpack.c.l.s4 1966171168
  %v5081 = vunpack.c.0.s8 %v5080
  %v5082 = vlaneseq
  %v5083 = vshrl.u32 %v5082, 7
  %v5084 = vsub.s32 %v5081, %v5083
  %v5085 = vrot.slane %v5057, %v5084
  %v5086 = vcombine.low %v5064, %v5071
  %v5087 = vcombine.low %v5078, %v5085
  %v5089 = vunpack.c.l.s4 1966171168
  %v5090 = vunpack.c.0.s8 %v5089
  %v5091 = vlaneseq
  %v5092 = vshrl.u32 %v5091, 7
  %v5093 = vsub.s32 %v5090, %v5092
  %v5094 = vrot.slane %v5086, %v5093
  %v5096 = vunpack.c.l.s4 1966171168
  %v5097 = vunpack.c.0.s8 %v5096
  %v5098 = vlaneseq
  %v5099 = vshrl.u32 %v5098, 7
  %v5100 = vsub.s32 %v5097, %v5099
  %v5101 = vrot.slane %v5087, %v5100
  %v5102 = vcombine.low %v5094, %v5101
  %v5103 = vcombine.low %v4826, %v4827
  %v5104 = vcombine.low %v4828, %v4829
  %v5105 = vcombine.low %v4830, %v4831
  %v5106 = vcombine.low %v4832, %v4833
  %v5108 = vunpack.c.l.s4 1966171168
  %v5109 = vunpack.c.0.s8 %v5108
  %v5110 = vlaneseq
  %v5111 = vshrl.u32 %v5110, 7
  %v5112 = vsub.s32 %v5109, %v5111
  %v5113 = vrot.slane %v5103, %v5112
  %v5115 = vunpack.c.l.s4 1966171168
  %v5116 = vunpack.c.0.s8 %v5115
  %v5117 = vlaneseq
  %v5118 = vshrl.u32 %v5117, 7
  %v5119 = vsub.s32 %v5116, %v5118
  %v5120 = vrot.slane %v5104, %v5119
  %v5122 = vunpack.c.l.s4 1966171168
  %v5123 = vunpack.c.0.s8 %v5122
  %v5124 = vlaneseq
  %v5125 = vshrl.u32 %v5124, 7
  %v5126 = vsub.s32 %v5123, %v5125
  %v5127 = vrot.slane %v5105, %v5126
  %v5129 = vunpack.c.l.s4 1966171168
  %v5130 = vunpack.c.0.s8 %v5129
  %v5131 = vlaneseq
  %v5132 = vshrl.u32 %v5131, 7
  %v5133 = vsub.s32 %v5130, %v5132
  %v5134 = vrot.slane %v5106, %v5133
  %v5135 = vcombine.low %v5113, %v5120
  %v5136 = vcombine.low %v5127, %v5134
  %v5138 = vunpack.c.l.s4 1966171168
  %v5139 = vunpack.c.0.s8 %v5138
  %v5140 = vlaneseq
  %v5141 = vshrl.u32 %v5140, 7
  %v5142 = vsub.s32 %v5139, %v5141
  %v5143 = vrot.slane %v5135, %v5142
  %v5145 = vunpack.c.l.s4 1966171168
  %v5146 = vunpack.c.0.s8 %v5145
  %v5147 = vlaneseq
  %v5148 = vshrl.u32 %v5147, 7
  %v5149 = vsub.s32 %v5146, %v5148
  %v5150 = vrot.slane %v5136, %v5149
  %v5151 = vcombine.low %v5143, %v5150
  %v5152 = vcombine.low %v4834, %v4835
  %v5153 = vcombine.low %v4836, %v4837
  %v5154 = vcombine.low %v4838, %v4839
  %v5155 = vcombine.low %v4840, %v4841
  %v5157 = vunpack.c.l.s4 1966171168
  %v5158 = vunpack.c.0.s8 %v5157
  %v5159 = vlaneseq
  %v5160 = vshrl.u32 %v5159, 7
  %v5161 = vsub.s32 %v5158, %v5160
  %v5162 = vrot.slane %v5152, %v5161
  %v5164 = vunpack.c.l.s4 1966171168
  %v5165 = vunpack.c.0.s8 %v5164
  %v5166 = vlaneseq
  %v5167 = vshrl.u32 %v5166, 7
  %v5168 = vsub.s32 %v5165, %v5167
  %v5169 = vrot.slane %v5153, %v5168
  %v5171 = vunpack.c.l.s4 1966171168
  %v5172 = vunpack.c.0.s8 %v5171
  %v5173 = vlaneseq
  %v5174 = vshrl.u32 %v5173, 7
  %v5175 = vsub.s32 %v5172, %v5174
  %v5176 = vrot.slane %v5154, %v5175
  %v5178 = vunpack.c.l.s4 1966171168
  %v5179 = vunpack.c.0.s8 %v5178
  %v5180 = vlaneseq
  %v5181 = vshrl.u32 %v5180, 7
  %v5182 = vsub.s32 %v5179, %v5181
  %v5183 = vrot.slane %v5155, %v5182
  %v5184 = vcombine.low %v5162, %v5169
  %v5185 = vcombine.low %v5176, %v5183
  %v5187 = vunpack.c.l.s4 1966171168
  %v5188 = vunpack.c.0.s8 %v5187
  %v5189 = vlaneseq
  %v5190 = vshrl.u32 %v5189, 7
  %v5191 = vsub.s32 %v5188, %v5190
  %v5192 = vrot.slane %v5184, %v5191
  %v5194 = vunpack.c.l.s4 1966171168
  %v5195 = vunpack.c.0.s8 %v5194
  %v5196 = vlaneseq
  %v5197 = vshrl.u32 %v5196, 7
  %v5198 = vsub.s32 %v5195, %v5197
  %v5199 = vrot.slane %v5185, %v5198
  %v5200 = vcombine.low %v5192, %v5199
  %v5202 = vunpack.c.l.s4 1966171168
  %v5203 = vunpack.c.0.s8 %v5202
  %v5204 = vlaneseq
  %v5205 = vshrl.u32 %v5204, 7
  %v5206 = vsub.s32 %v5203, %v5205
  %v5207 = vrot.slane %v4842, %v5206
  %v5209 = vunpack.c.l.s4 1966171168
  %v5210 = vunpack.c.0.s8 %v5209
  %v5211 = vlaneseq
  %v5212 = vshrl.u32 %v5211, 7
  %v5213 = vsub.s32 %v5210, %v5212
  %v5214 = vrot.slane %v5207, %v5213
  %v5223 = vsel %vm295, %v4941, 0.0
  %v5224 = vsel %vm295, %v4990, 0.0
  %v5225 = vadd.f32 %v5223, %v5224
  %v5226 = vsel %vm295, %v5039, 0.0
  %v5227 = vadd.f32 %v5225, %v5226
  %v5228 = vsel %vm4666, %v5053, 0.0
  %v5229 = vadd.f32 %v5227, %v5228
  %v5230 = vsel %vm295, %v5102, 0.0
  %v5231 = vadd.f32 %v5229, %v5230
  %v5232 = vsel %vm295, %v5151, 0.0
  %v5233 = vadd.f32 %v5231, %v5232
  %v5234 = vsel %vm295, %v5200, 0.0
  %v5235 = vadd.f32 %v5233, %v5234
  %v5236 = vsel %vm4666, %v5214, 0.0
  %v5237 = vadd.f32 %v5235, %v5236
  %v5238 = vrot.slane %v5237, 4
  %v5239 = vadd.f32 %v5237, %v5238
  %v5240 = vrot.slane %v5239, 2
  %v5241 = vadd.f32 %v5239, %v5240
  %v5242 = vrot.slane %v5241, 1
  %v5243 = vadd.f32 %v5241, %v5242
  %v5244 = vmul.f32 %v5243, %v4683
  %v5245 = vadd.f32 %v5244, 1e-05
  %v5246 = vrsqrt.pop %v5245
  %v5248 = vcombine.high %v5246, %v5246
  %v5250 = vunpack.c.l.s4 1966171168
  %v5251 = vunpack.c.0.s8 %v5250
  %v5252 = vlaneseq
  %v5253 = vshrl.u32 %v5252, 7
  %v5254 = vsub.s32 %v5251, %v5253
  %v5255 = vrot.slane %v5246, %v5254
  %v5257 = vunpack.c.l.s4 1966171168
  %v5258 = vunpack.c.0.s8 %v5257
  %v5259 = vlaneseq
  %v5260 = vshrl.u32 %v5259, 7
  %v5261 = vsub.s32 %v5258, %v5260
  %v5262 = vrot.slane %v5248, %v5261
  %v5263 = vcombine.high %v5255, %v5255
  %v5264 = vcombine.high %v5262, %v5262
  %v5266 = vunpack.c.l.s4 1966171168
  %v5267 = vunpack.c.0.s8 %v5266
  %v5268 = vlaneseq
  %v5269 = vshrl.u32 %v5268, 7
  %v5270 = vsub.s32 %v5267, %v5269
  %v5271 = vrot.slane %v5255, %v5270
  %v5273 = vunpack.c.l.s4 1966171168
  %v5274 = vunpack.c.0.s8 %v5273
  %v5275 = vlaneseq
  %v5276 = vshrl.u32 %v5275, 7
  %v5277 = vsub.s32 %v5274, %v5276
  %v5278 = vrot.slane %v5262, %v5277
  %v5280 = vunpack.c.l.s4 1966171168
  %v5281 = vunpack.c.0.s8 %v5280
  %v5282 = vlaneseq
  %v5283 = vshrl.u32 %v5282, 7
  %v5284 = vsub.s32 %v5281, %v5283
  %v5285 = vrot.slane %v5263, %v5284
  %v5287 = vunpack.c.l.s4 1966171168
  %v5288 = vunpack.c.0.s8 %v5287
  %v5289 = vlaneseq
  %v5290 = vshrl.u32 %v5289, 7
  %v5291 = vsub.s32 %v5288, %v5290
  %v5292 = vrot.slane %v5264, %v5291
  %v5293 = vcombine.high %v5271, %v5271
  %v5294 = vcombine.high %v5278, %v5278
  %v5295 = vcombine.high %v5285, %v5285
  %v5296 = vcombine.high %v5292, %v5292
  %v5305 = vmul.f32 %v4743, %v5271
  %v5306 = vmul.f32 %v4744, %v5285
  %v5307 = vmul.f32 %v4745, %v5293
  %v5308 = vmul.f32 %v4746, %v5295
  %v5309 = vmul.f32 %v4747, %v5278
  %v5310 = vmul.f32 %v4748, %v5292
  %v5311 = vmul.f32 %v4749, %v5294
  %v5312 = vmul.f32 %v4750, %v5296
  %v5313 = vmul.f32 %v4751, %v5271
  %v5314 = vmul.f32 %v4752, %v5285
  %v5315 = vmul.f32 %v4753, %v5293
  %v5316 = vmul.f32 %v4754, %v5295
  %v5317 = vmul.f32 %v4755, %v5278
  %v5318 = vmul.f32 %v4756, %v5292
  %v5319 = vmul.f32 %v4757, %v5294
  %v5320 = vmul.f32 %v4758, %v5296
  %v5321 = vmul.f32 %v4759, %v5271
  %v5322 = vmul.f32 %v4760, %v5285
  %v5323 = vmul.f32 %v4761, %v5293
  %v5324 = vmul.f32 %v4762, %v5295
  %v5325 = vmul.f32 %v4763, %v5278
  %v5326 = vmul.f32 %v4764, %v5292
  %v5327 = vmul.f32 %v4765, %v5294
  %v5328 = vmul.f32 %v4766, %v5296
  %v5329 = vmul.f32 %v4767, %v5271
  %v5330 = vmul.f32 %v4768, %v5271
  %v5331 = vmul.f32 %v4769, %v5285
  %v5332 = vmul.f32 %v4770, %v5293
  %v5333 = vmul.f32 %v4771, %v5295
  %v5334 = vmul.f32 %v4772, %v5278
  %v5335 = vmul.f32 %v4773, %v5292
  %v5336 = vmul.f32 %v4774, %v5294
  %v5337 = vmul.f32 %v4775, %v5296
  %v5338 = vmul.f32 %v4776, %v5271
  %v5339 = vmul.f32 %v4777, %v5285
  %v5340 = vmul.f32 %v4778, %v5293
  %v5341 = vmul.f32 %v4779, %v5295
  %v5342 = vmul.f32 %v4780, %v5278
  %v5343 = vmul.f32 %v4781, %v5292
  %v5344 = vmul.f32 %v4782, %v5294
  %v5345 = vmul.f32 %v4783, %v5296
  %v5346 = vmul.f32 %v4784, %v5271
  %v5347 = vmul.f32 %v4785, %v5285
  %v5348 = vmul.f32 %v4786, %v5293
  %v5349 = vmul.f32 %v4787, %v5295
  %v5350 = vmul.f32 %v4788, %v5278
  %v5351 = vmul.f32 %v4789, %v5292
  %v5352 = vmul.f32 %v4790, %v5294
  %v5353 = vmul.f32 %v4791, %v5296
  %v5354 = vmul.f32 %v4792, %v5271
  %v5355 = vld [vmem:[%s11] sm:$0x1]
  %v5357 = vlaneseq
  %v5358 = vshrl.u32 %v5357, 7
  %v5359 = vsub.s32 0, %v5358
  %v5360 = vrot.slane %v5355, %v5359
  %v5361 = vcombine.high %v5360, %v5360
  %v5363 = vunpack.c.l.s4 1966171168
  %v5364 = vunpack.c.0.s8 %v5363
  %v5365 = vlaneseq
  %v5366 = vshrl.u32 %v5365, 7
  %v5367 = vsub.s32 %v5364, %v5366
  %v5368 = vrot.slane %v5360, %v5367
  %v5370 = vunpack.c.l.s4 1966171168
  %v5371 = vunpack.c.0.s8 %v5370
  %v5372 = vlaneseq
  %v5373 = vshrl.u32 %v5372, 7
  %v5374 = vsub.s32 %v5371, %v5373
  %v5375 = vrot.slane %v5361, %v5374
  %v5376 = vcombine.high %v5368, %v5368
  %v5377 = vcombine.high %v5375, %v5375
  %v5379 = vunpack.c.l.s4 1966171168
  %v5380 = vunpack.c.0.s8 %v5379
  %v5381 = vlaneseq
  %v5382 = vshrl.u32 %v5381, 7
  %v5383 = vsub.s32 %v5380, %v5382
  %v5384 = vrot.slane %v5368, %v5383
  %v5386 = vunpack.c.l.s4 1966171168
  %v5387 = vunpack.c.0.s8 %v5386
  %v5388 = vlaneseq
  %v5389 = vshrl.u32 %v5388, 7
  %v5390 = vsub.s32 %v5387, %v5389
  %v5391 = vrot.slane %v5375, %v5390
  %v5393 = vunpack.c.l.s4 1966171168
  %v5394 = vunpack.c.0.s8 %v5393
  %v5395 = vlaneseq
  %v5396 = vshrl.u32 %v5395, 7
  %v5397 = vsub.s32 %v5394, %v5396
  %v5398 = vrot.slane %v5376, %v5397
  %v5400 = vunpack.c.l.s4 1966171168
  %v5401 = vunpack.c.0.s8 %v5400
  %v5402 = vlaneseq
  %v5403 = vshrl.u32 %v5402, 7
  %v5404 = vsub.s32 %v5401, %v5403
  %v5405 = vrot.slane %v5377, %v5404
  %v5406 = vcombine.high %v5384, %v5384
  %v5407 = vcombine.high %v5391, %v5391
  %v5408 = vcombine.high %v5398, %v5398
  %v5409 = vcombine.high %v5405, %v5405
  %v5418 = vmul.f32 %v5305, %v5384
  %v5419 = vmul.f32 %v5306, %v5398
  %v5420 = vmul.f32 %v5307, %v5406
  %v5421 = vmul.f32 %v5308, %v5408
  %v5422 = vmul.f32 %v5309, %v5391
  %v5423 = vmul.f32 %v5310, %v5405
  %v5424 = vmul.f32 %v5311, %v5407
  %v5425 = vmul.f32 %v5312, %v5409
  %v5426 = vmul.f32 %v5313, %v5384
  %v5427 = vmul.f32 %v5314, %v5398
  %v5428 = vmul.f32 %v5315, %v5406
  %v5429 = vmul.f32 %v5316, %v5408
  %v5430 = vmul.f32 %v5317, %v5391
  %v5431 = vmul.f32 %v5318, %v5405
  %v5432 = vmul.f32 %v5319, %v5407
  %v5433 = vmul.f32 %v5320, %v5409
  %v5434 = vmul.f32 %v5321, %v5384
  %v5435 = vmul.f32 %v5322, %v5398
  %v5436 = vmul.f32 %v5323, %v5406
  %v5437 = vmul.f32 %v5324, %v5408
  %v5438 = vmul.f32 %v5325, %v5391
  %v5439 = vmul.f32 %v5326, %v5405
  %v5440 = vmul.f32 %v5327, %v5407
  %v5441 = vmul.f32 %v5328, %v5409
  %v5442 = vmul.f32 %v5329, %v5384
  %v5443 = vmul.f32 %v5330, %v5384
  %v5444 = vmul.f32 %v5331, %v5398
  %v5445 = vmul.f32 %v5332, %v5406
  %v5446 = vmul.f32 %v5333, %v5408
  %v5447 = vmul.f32 %v5334, %v5391
  %v5448 = vmul.f32 %v5335, %v5405
  %v5449 = vmul.f32 %v5336, %v5407
  %v5450 = vmul.f32 %v5337, %v5409
  %v5451 = vmul.f32 %v5338, %v5384
  %v5452 = vmul.f32 %v5339, %v5398
  %v5453 = vmul.f32 %v5340, %v5406
  %v5454 = vmul.f32 %v5341, %v5408
  %v5455 = vmul.f32 %v5342, %v5391
  %v5456 = vmul.f32 %v5343, %v5405
  %v5457 = vmul.f32 %v5344, %v5407
  %v5458 = vmul.f32 %v5345, %v5409
  %v5459 = vmul.f32 %v5346, %v5384
  %v5460 = vmul.f32 %v5347, %v5398
  %v5461 = vmul.f32 %v5348, %v5406
  %v5462 = vmul.f32 %v5349, %v5408
  %v5463 = vmul.f32 %v5350, %v5391
  %v5464 = vmul.f32 %v5351, %v5405
  %v5465 = vmul.f32 %v5352, %v5407
  %v5466 = vmul.f32 %v5353, %v5409
  %v5467 = vmul.f32 %v5354, %v5384
  %v5468 = vld [vmem:[%s12] sm:$0x1]
  %v5470 = vlaneseq
  %v5471 = vshrl.u32 %v5470, 7
  %v5472 = vsub.s32 0, %v5471
  %v5473 = vrot.slane %v5468, %v5472
  %v5474 = vcombine.high %v5473, %v5473
  %v5476 = vunpack.c.l.s4 1966171168
  %v5477 = vunpack.c.0.s8 %v5476
  %v5478 = vlaneseq
  %v5479 = vshrl.u32 %v5478, 7
  %v5480 = vsub.s32 %v5477, %v5479
  %v5481 = vrot.slane %v5473, %v5480
  %v5483 = vunpack.c.l.s4 1966171168
  %v5484 = vunpack.c.0.s8 %v5483
  %v5485 = vlaneseq
  %v5486 = vshrl.u32 %v5485, 7
  %v5487 = vsub.s32 %v5484, %v5486
  %v5488 = vrot.slane %v5474, %v5487
  %v5489 = vcombine.high %v5481, %v5481
  %v5490 = vcombine.high %v5488, %v5488
  %v5492 = vunpack.c.l.s4 1966171168
  %v5493 = vunpack.c.0.s8 %v5492
  %v5494 = vlaneseq
  %v5495 = vshrl.u32 %v5494, 7
  %v5496 = vsub.s32 %v5493, %v5495
  %v5497 = vrot.slane %v5481, %v5496
  %v5499 = vunpack.c.l.s4 1966171168
  %v5500 = vunpack.c.0.s8 %v5499
  %v5501 = vlaneseq
  %v5502 = vshrl.u32 %v5501, 7
  %v5503 = vsub.s32 %v5500, %v5502
  %v5504 = vrot.slane %v5488, %v5503
  %v5506 = vunpack.c.l.s4 1966171168
  %v5507 = vunpack.c.0.s8 %v5506
  %v5508 = vlaneseq
  %v5509 = vshrl.u32 %v5508, 7
  %v5510 = vsub.s32 %v5507, %v5509
  %v5511 = vrot.slane %v5489, %v5510
  %v5513 = vunpack.c.l.s4 1966171168
  %v5514 = vunpack.c.0.s8 %v5513
  %v5515 = vlaneseq
  %v5516 = vshrl.u32 %v5515, 7
  %v5517 = vsub.s32 %v5514, %v5516
  %v5518 = vrot.slane %v5490, %v5517
  %v5519 = vcombine.high %v5497, %v5497
  %v5520 = vcombine.high %v5504, %v5504
  %v5521 = vcombine.high %v5511, %v5511
  %v5522 = vcombine.high %v5518, %v5518
  %v5531 = vadd.f32 %v5418, %v5497
  %v5532 = vadd.f32 %v5419, %v5511
  %v5533 = vadd.f32 %v5420, %v5519
  %v5534 = vadd.f32 %v5421, %v5521
  %v5535 = vadd.f32 %v5422, %v5504
  %v5536 = vadd.f32 %v5423, %v5518
  %v5537 = vadd.f32 %v5424, %v5520
  %v5538 = vadd.f32 %v5425, %v5522
  %v5539 = vadd.f32 %v5426, %v5497
  %v5540 = vadd.f32 %v5427, %v5511
  %v5541 = vadd.f32 %v5428, %v5519
  %v5542 = vadd.f32 %v5429, %v5521
  %v5543 = vadd.f32 %v5430, %v5504
  %v5544 = vadd.f32 %v5431, %v5518
  %v5545 = vadd.f32 %v5432, %v5520
  %v5546 = vadd.f32 %v5433, %v5522
  %v5547 = vadd.f32 %v5434, %v5497
  %v5548 = vadd.f32 %v5435, %v5511
  %v5549 = vadd.f32 %v5436, %v5519
  %v5550 = vadd.f32 %v5437, %v5521
  %v5551 = vadd.f32 %v5438, %v5504
  %v5552 = vadd.f32 %v5439, %v5518
  %v5553 = vadd.f32 %v5440, %v5520
  %v5554 = vadd.f32 %v5441, %v5522
  %v5555 = vadd.f32 %v5442, %v5497
  %v5556 = vadd.f32 %v5443, %v5497
  %v5557 = vadd.f32 %v5444, %v5511
  %v5558 = vadd.f32 %v5445, %v5519
  %v5559 = vadd.f32 %v5446, %v5521
  %v5560 = vadd.f32 %v5447, %v5504
  %v5561 = vadd.f32 %v5448, %v5518
  %v5562 = vadd.f32 %v5449, %v5520
  %v5563 = vadd.f32 %v5450, %v5522
  %v5564 = vadd.f32 %v5451, %v5497
  %v5565 = vadd.f32 %v5452, %v5511
  %v5566 = vadd.f32 %v5453, %v5519
  %v5567 = vadd.f32 %v5454, %v5521
  %v5568 = vadd.f32 %v5455, %v5504
  %v5569 = vadd.f32 %v5456, %v5518
  %v5570 = vadd.f32 %v5457, %v5520
  %v5571 = vadd.f32 %v5458, %v5522
  %v5572 = vadd.f32 %v5459, %v5497
  %v5573 = vadd.f32 %v5460, %v5511
  %v5574 = vadd.f32 %v5461, %v5519
  %v5575 = vadd.f32 %v5462, %v5521
  %v5576 = vadd.f32 %v5463, %v5504
  %v5577 = vadd.f32 %v5464, %v5518
  %v5578 = vadd.f32 %v5465, %v5520
  %v5579 = vadd.f32 %v5466, %v5522
  %v5580 = vadd.f32 %v5467, %v5497
  %v5581 = vmax.f32 %v5531, 0.0
  %v5582 = vmax.f32 %v5532, 0.0
  %v5583 = vmax.f32 %v5533, 0.0
  %v5584 = vmax.f32 %v5534, 0.0
  %v5585 = vmax.f32 %v5535, 0.0
  %v5586 = vmax.f32 %v5536, 0.0
  %v5587 = vmax.f32 %v5537, 0.0
  %v5588 = vmax.f32 %v5538, 0.0
  %v5589 = vmax.f32 %v5539, 0.0
  %v5590 = vmax.f32 %v5540, 0.0
  %v5591 = vmax.f32 %v5541, 0.0
  %v5592 = vmax.f32 %v5542, 0.0
  %v5593 = vmax.f32 %v5543, 0.0
  %v5594 = vmax.f32 %v5544, 0.0
  %v5595 = vmax.f32 %v5545, 0.0
  %v5596 = vmax.f32 %v5546, 0.0
  %v5597 = vmax.f32 %v5547, 0.0
  %v5598 = vmax.f32 %v5548, 0.0
  %v5599 = vmax.f32 %v5549, 0.0
  %v5600 = vmax.f32 %v5550, 0.0
  %v5601 = vmax.f32 %v5551, 0.0
  %v5602 = vmax.f32 %v5552, 0.0
  %v5603 = vmax.f32 %v5553, 0.0
  %v5604 = vmax.f32 %v5554, 0.0
  %v5605 = vmax.f32 %v5555, 0.0
  %v5606 = vmax.f32 %v5556, 0.0
  %v5607 = vmax.f32 %v5557, 0.0
  %v5608 = vmax.f32 %v5558, 0.0
  %v5609 = vmax.f32 %v5559, 0.0
  %v5610 = vmax.f32 %v5560, 0.0
  %v5611 = vmax.f32 %v5561, 0.0
  %v5612 = vmax.f32 %v5562, 0.0
  %v5613 = vmax.f32 %v5563, 0.0
  %v5614 = vmax.f32 %v5564, 0.0
  %v5615 = vmax.f32 %v5565, 0.0
  %v5616 = vmax.f32 %v5566, 0.0
  %v5617 = vmax.f32 %v5567, 0.0
  %v5618 = vmax.f32 %v5568, 0.0
  %v5619 = vmax.f32 %v5569, 0.0
  %v5620 = vmax.f32 %v5570, 0.0
  %v5621 = vmax.f32 %v5571, 0.0
  %v5622 = vmax.f32 %v5572, 0.0
  %v5623 = vmax.f32 %v5573, 0.0
  %v5624 = vmax.f32 %v5574, 0.0
  %v5625 = vmax.f32 %v5575, 0.0
  %v5626 = vmax.f32 %v5576, 0.0
  %v5627 = vmax.f32 %v5577, 0.0
  %v5628 = vmax.f32 %v5578, 0.0
  %v5629 = vmax.f32 %v5579, 0.0
  %v5630 = vmax.f32 %v5580, 0.0
  %v5681 = vcombine.low %v5581, %v5582
  %v5682 = vcombine.low %v5583, %v5584
  %v5683 = vcombine.low %v5585, %v5586
  %v5684 = vcombine.low %v5587, %v5588
  %v5686 = vunpack.c.l.s4 1966171168
  %v5687 = vunpack.c.0.s8 %v5686
  %v5688 = vlaneseq
  %v5689 = vshrl.u32 %v5688, 7
  %v5690 = vsub.s32 %v5687, %v5689
  %v5691 = vrot.slane %v5681, %v5690
  %v5693 = vunpack.c.l.s4 1966171168
  %v5694 = vunpack.c.0.s8 %v5693
  %v5695 = vlaneseq
  %v5696 = vshrl.u32 %v5695, 7
  %v5697 = vsub.s32 %v5694, %v5696
  %v5698 = vrot.slane %v5682, %v5697
  %v5700 = vunpack.c.l.s4 1966171168
  %v5701 = vunpack.c.0.s8 %v5700
  %v5702 = vlaneseq
  %v5703 = vshrl.u32 %v5702, 7
  %v5704 = vsub.s32 %v5701, %v5703
  %v5705 = vrot.slane %v5683, %v5704
  %v5707 = vunpack.c.l.s4 1966171168
  %v5708 = vunpack.c.0.s8 %v5707
  %v5709 = vlaneseq
  %v5710 = vshrl.u32 %v5709, 7
  %v5711 = vsub.s32 %v5708, %v5710
  %v5712 = vrot.slane %v5684, %v5711
  %v5713 = vcombine.low %v5691, %v5698
  %v5714 = vcombine.low %v5705, %v5712
  %v5716 = vunpack.c.l.s4 1966171168
  %v5717 = vunpack.c.0.s8 %v5716
  %v5718 = vlaneseq
  %v5719 = vshrl.u32 %v5718, 7
  %v5720 = vsub.s32 %v5717, %v5719
  %v5721 = vrot.slane %v5713, %v5720
  %v5723 = vunpack.c.l.s4 1966171168
  %v5724 = vunpack.c.0.s8 %v5723
  %v5725 = vlaneseq
  %v5726 = vshrl.u32 %v5725, 7
  %v5727 = vsub.s32 %v5724, %v5726
  %v5728 = vrot.slane %v5714, %v5727
  %v5729 = vcombine.low %v5721, %v5728
  %v5730 = vcombine.low %v5589, %v5590
  %v5731 = vcombine.low %v5591, %v5592
  %v5732 = vcombine.low %v5593, %v5594
  %v5733 = vcombine.low %v5595, %v5596
  %v5735 = vunpack.c.l.s4 1966171168
  %v5736 = vunpack.c.0.s8 %v5735
  %v5737 = vlaneseq
  %v5738 = vshrl.u32 %v5737, 7
  %v5739 = vsub.s32 %v5736, %v5738
  %v5740 = vrot.slane %v5730, %v5739
  %v5742 = vunpack.c.l.s4 1966171168
  %v5743 = vunpack.c.0.s8 %v5742
  %v5744 = vlaneseq
  %v5745 = vshrl.u32 %v5744, 7
  %v5746 = vsub.s32 %v5743, %v5745
  %v5747 = vrot.slane %v5731, %v5746
  %v5749 = vunpack.c.l.s4 1966171168
  %v5750 = vunpack.c.0.s8 %v5749
  %v5751 = vlaneseq
  %v5752 = vshrl.u32 %v5751, 7
  %v5753 = vsub.s32 %v5750, %v5752
  %v5754 = vrot.slane %v5732, %v5753
  %v5756 = vunpack.c.l.s4 1966171168
  %v5757 = vunpack.c.0.s8 %v5756
  %v5758 = vlaneseq
  %v5759 = vshrl.u32 %v5758, 7
  %v5760 = vsub.s32 %v5757, %v5759
  %v5761 = vrot.slane %v5733, %v5760
  %v5762 = vcombine.low %v5740, %v5747
  %v5763 = vcombine.low %v5754, %v5761
  %v5765 = vunpack.c.l.s4 1966171168
  %v5766 = vunpack.c.0.s8 %v5765
  %v5767 = vlaneseq
  %v5768 = vshrl.u32 %v5767, 7
  %v5769 = vsub.s32 %v5766, %v5768
  %v5770 = vrot.slane %v5762, %v5769
  %v5772 = vunpack.c.l.s4 1966171168
  %v5773 = vunpack.c.0.s8 %v5772
  %v5774 = vlaneseq
  %v5775 = vshrl.u32 %v5774, 7
  %v5776 = vsub.s32 %v5773, %v5775
  %v5777 = vrot.slane %v5763, %v5776
  %v5778 = vcombine.low %v5770, %v5777
  %v5779 = vcombine.low %v5597, %v5598
  %v5780 = vcombine.low %v5599, %v5600
  %v5781 = vcombine.low %v5601, %v5602
  %v5782 = vcombine.low %v5603, %v5604
  %v5784 = vunpack.c.l.s4 1966171168
  %v5785 = vunpack.c.0.s8 %v5784
  %v5786 = vlaneseq
  %v5787 = vshrl.u32 %v5786, 7
  %v5788 = vsub.s32 %v5785, %v5787
  %v5789 = vrot.slane %v5779, %v5788
  %v5791 = vunpack.c.l.s4 1966171168
  %v5792 = vunpack.c.0.s8 %v5791
  %v5793 = vlaneseq
  %v5794 = vshrl.u32 %v5793, 7
  %v5795 = vsub.s32 %v5792, %v5794
  %v5796 = vrot.slane %v5780, %v5795
  %v5798 = vunpack.c.l.s4 1966171168
  %v5799 = vunpack.c.0.s8 %v5798
  %v5800 = vlaneseq
  %v5801 = vshrl.u32 %v5800, 7
  %v5802 = vsub.s32 %v5799, %v5801
  %v5803 = vrot.slane %v5781, %v5802
  %v5805 = vunpack.c.l.s4 1966171168
  %v5806 = vunpack.c.0.s8 %v5805
  %v5807 = vlaneseq
  %v5808 = vshrl.u32 %v5807, 7
  %v5809 = vsub.s32 %v5806, %v5808
  %v5810 = vrot.slane %v5782, %v5809
  %v5811 = vcombine.low %v5789, %v5796
  %v5812 = vcombine.low %v5803, %v5810
  %v5814 = vunpack.c.l.s4 1966171168
  %v5815 = vunpack.c.0.s8 %v5814
  %v5816 = vlaneseq
  %v5817 = vshrl.u32 %v5816, 7
  %v5818 = vsub.s32 %v5815, %v5817
  %v5819 = vrot.slane %v5811, %v5818
  %v5821 = vunpack.c.l.s4 1966171168
  %v5822 = vunpack.c.0.s8 %v5821
  %v5823 = vlaneseq
  %v5824 = vshrl.u32 %v5823, 7
  %v5825 = vsub.s32 %v5822, %v5824
  %v5826 = vrot.slane %v5812, %v5825
  %v5827 = vcombine.low %v5819, %v5826
  %v5829 = vunpack.c.l.s4 1966171168
  %v5830 = vunpack.c.0.s8 %v5829
  %v5831 = vlaneseq
  %v5832 = vshrl.u32 %v5831, 7
  %v5833 = vsub.s32 %v5830, %v5832
  %v5834 = vrot.slane %v5605, %v5833
  %v5836 = vunpack.c.l.s4 1966171168
  %v5837 = vunpack.c.0.s8 %v5836
  %v5838 = vlaneseq
  %v5839 = vshrl.u32 %v5838, 7
  %v5840 = vsub.s32 %v5837, %v5839
  %v5841 = vrot.slane %v5834, %v5840
  %v5842 = vcombine.low %v5606, %v5607
  %v5843 = vcombine.low %v5608, %v5609
  %v5844 = vcombine.low %v5610, %v5611
  %v5845 = vcombine.low %v5612, %v5613
  %v5847 = vunpack.c.l.s4 1966171168
  %v5848 = vunpack.c.0.s8 %v5847
  %v5849 = vlaneseq
  %v5850 = vshrl.u32 %v5849, 7
  %v5851 = vsub.s32 %v5848, %v5850
  %v5852 = vrot.slane %v5842, %v5851
  %v5854 = vunpack.c.l.s4 1966171168
  %v5855 = vunpack.c.0.s8 %v5854
  %v5856 = vlaneseq
  %v5857 = vshrl.u32 %v5856, 7
  %v5858 = vsub.s32 %v5855, %v5857
  %v5859 = vrot.slane %v5843, %v5858
  %v5861 = vunpack.c.l.s4 1966171168
  %v5862 = vunpack.c.0.s8 %v5861
  %v5863 = vlaneseq
  %v5864 = vshrl.u32 %v5863, 7
  %v5865 = vsub.s32 %v5862, %v5864
  %v5866 = vrot.slane %v5844, %v5865
  %v5868 = vunpack.c.l.s4 1966171168
  %v5869 = vunpack.c.0.s8 %v5868
  %v5870 = vlaneseq
  %v5871 = vshrl.u32 %v5870, 7
  %v5872 = vsub.s32 %v5869, %v5871
  %v5873 = vrot.slane %v5845, %v5872
  %v5874 = vcombine.low %v5852, %v5859
  %v5875 = vcombine.low %v5866, %v5873
  %v5877 = vunpack.c.l.s4 1966171168
  %v5878 = vunpack.c.0.s8 %v5877
  %v5879 = vlaneseq
  %v5880 = vshrl.u32 %v5879, 7
  %v5881 = vsub.s32 %v5878, %v5880
  %v5882 = vrot.slane %v5874, %v5881
  %v5884 = vunpack.c.l.s4 1966171168
  %v5885 = vunpack.c.0.s8 %v5884
  %v5886 = vlaneseq
  %v5887 = vshrl.u32 %v5886, 7
  %v5888 = vsub.s32 %v5885, %v5887
  %v5889 = vrot.slane %v5875, %v5888
  %v5890 = vcombine.low %v5882, %v5889
  %v5891 = vcombine.low %v5614, %v5615
  %v5892 = vcombine.low %v5616, %v5617
  %v5893 = vcombine.low %v5618, %v5619
  %v5894 = vcombine.low %v5620, %v5621
  %v5896 = vunpack.c.l.s4 1966171168
  %v5897 = vunpack.c.0.s8 %v5896
  %v5898 = vlaneseq
  %v5899 = vshrl.u32 %v5898, 7
  %v5900 = vsub.s32 %v5897, %v5899
  %v5901 = vrot.slane %v5891, %v5900
  %v5903 = vunpack.c.l.s4 1966171168
  %v5904 = vunpack.c.0.s8 %v5903
  %v5905 = vlaneseq
  %v5906 = vshrl.u32 %v5905, 7
  %v5907 = vsub.s32 %v5904, %v5906
  %v5908 = vrot.slane %v5892, %v5907
  %v5910 = vunpack.c.l.s4 1966171168
  %v5911 = vunpack.c.0.s8 %v5910
  %v5912 = vlaneseq
  %v5913 = vshrl.u32 %v5912, 7
  %v5914 = vsub.s32 %v5911, %v5913
  %v5915 = vrot.slane %v5893, %v5914
  %v5917 = vunpack.c.l.s4 1966171168
  %v5918 = vunpack.c.0.s8 %v5917
  %v5919 = vlaneseq
  %v5920 = vshrl.u32 %v5919, 7
  %v5921 = vsub.s32 %v5918, %v5920
  %v5922 = vrot.slane %v5894, %v5921
  %v5923 = vcombine.low %v5901, %v5908
  %v5924 = vcombine.low %v5915, %v5922
  %v5926 = vunpack.c.l.s4 1966171168
  %v5927 = vunpack.c.0.s8 %v5926
  %v5928 = vlaneseq
  %v5929 = vshrl.u32 %v5928, 7
  %v5930 = vsub.s32 %v5927, %v5929
  %v5931 = vrot.slane %v5923, %v5930
  %v5933 = vunpack.c.l.s4 1966171168
  %v5934 = vunpack.c.0.s8 %v5933
  %v5935 = vlaneseq
  %v5936 = vshrl.u32 %v5935, 7
  %v5937 = vsub.s32 %v5934, %v5936
  %v5938 = vrot.slane %v5924, %v5937
  %v5939 = vcombine.low %v5931, %v5938
  %v5940 = vcombine.low %v5622, %v5623
  %v5941 = vcombine.low %v5624, %v5625
  %v5942 = vcombine.low %v5626, %v5627
  %v5943 = vcombine.low %v5628, %v5629
  %v5945 = vunpack.c.l.s4 1966171168
  %v5946 = vunpack.c.0.s8 %v5945
  %v5947 = vlaneseq
  %v5948 = vshrl.u32 %v5947, 7
  %v5949 = vsub.s32 %v5946, %v5948
  %v5950 = vrot.slane %v5940, %v5949
  %v5952 = vunpack.c.l.s4 1966171168
  %v5953 = vunpack.c.0.s8 %v5952
  %v5954 = vlaneseq
  %v5955 = vshrl.u32 %v5954, 7
  %v5956 = vsub.s32 %v5953, %v5955
  %v5957 = vrot.slane %v5941, %v5956
  %v5959 = vunpack.c.l.s4 1966171168
  %v5960 = vunpack.c.0.s8 %v5959
  %v5961 = vlaneseq
  %v5962 = vshrl.u32 %v5961, 7
  %v5963 = vsub.s32 %v5960, %v5962
  %v5964 = vrot.slane %v5942, %v5963
  %v5966 = vunpack.c.l.s4 1966171168
  %v5967 = vunpack.c.0.s8 %v5966
  %v5968 = vlaneseq
  %v5969 = vshrl.u32 %v5968, 7
  %v5970 = vsub.s32 %v5967, %v5969
  %v5971 = vrot.slane %v5943, %v5970
  %v5972 = vcombine.low %v5950, %v5957
  %v5973 = vcombine.low %v5964, %v5971
  %v5975 = vunpack.c.l.s4 1966171168
  %v5976 = vunpack.c.0.s8 %v5975
  %v5977 = vlaneseq
  %v5978 = vshrl.u32 %v5977, 7
  %v5979 = vsub.s32 %v5976, %v5978
  %v5980 = vrot.slane %v5972, %v5979
  %v5982 = vunpack.c.l.s4 1966171168
  %v5983 = vunpack.c.0.s8 %v5982
  %v5984 = vlaneseq
  %v5985 = vshrl.u32 %v5984, 7
  %v5986 = vsub.s32 %v5983, %v5985
  %v5987 = vrot.slane %v5973, %v5986
  %v5988 = vcombine.low %v5980, %v5987
  %v5990 = vunpack.c.l.s4 1966171168
  %v5991 = vunpack.c.0.s8 %v5990
  %v5992 = vlaneseq
  %v5993 = vshrl.u32 %v5992, 7
  %v5994 = vsub.s32 %v5991, %v5993
  %v5995 = vrot.slane %v5630, %v5994
  %v5997 = vunpack.c.l.s4 1966171168
  %v5998 = vunpack.c.0.s8 %v5997
  %v5999 = vlaneseq
  %v6000 = vshrl.u32 %v5999, 7
  %v6001 = vsub.s32 %v5998, %v6000
  %v6002 = vrot.slane %v5995, %v6001
  %6011 = vst.msk [vmem:[%s13] sm:$0xff] %vm295, %v5729
  %6012 = vst.msk [vmem:[%s13 + $0x8] sm:$0xff] %vm295, %v5778
  %6013 = vst.msk [vmem:[%s13 + $0x10] sm:$0xff] %vm295, %v5827
  %6014 = vst.msk [vmem:[%s13 + $0x18] sm:$0x1] %vm4666, %v5841
  %6015 = vst.msk [vmem:[%s13 + $0x20] sm:$0xff] %vm295, %v5890
  %6016 = vst.msk [vmem:[%s13 + $0x28] sm:$0xff] %vm295, %v5939
  %6017 = vst.msk [vmem:[%s13 + $0x30] sm:$0xff] %vm295, %v5988
  %6018 = vst.msk [vmem:[%s13 + $0x38] sm:$0x1] %vm4666, %v6002
  // Predicated region
  $region54: #{tpu_custom_call.1} parent=0 // pred_check
    _
  $region55: #{tpu_custom_call.1} parent=0 // pred_check_branch
    %6020 = sbr.rel (0) target = $region57
  $region56: #{tpu_custom_call.1} parent=0 // pred_region
    _
  $region57: #{tpu_custom_call.1} parent=0 // pred_fallthru
    _
  // Predicated region
  $region58: #{tpu_custom_call.1} parent=0 // pred_check
    _
  $region59: #{tpu_custom_call.1} parent=0 // pred_check_branch
    %6022 = sbr.rel (0) target = $region61
  $region60: #{tpu_custom_call.1} parent=0 // pred_region
    _
  $region61: #{tpu_custom_call.1} parent=0 // pred_fallthru
    _

</llo_original>
